<compile_context>
chip_gen: v6e
topology: v6e:2x2x1
jax: 0.10.0
libtpu: 0.0.40
codegen_flags: <defaults>
</compile_context>

<pallas_src>
import functools

import jax
import jax.numpy as jnp
from jax import lax
from jax.experimental import pallas as pl
from jax.experimental.pallas import tpu as pltpu

EPS = 1e-5
LANE = 128
SUBLANE = 8
ROW_ALIGN = 16                  # bf16 sublane packing -> keep M tiles 16-aligned
KMULT = 16                      # contraction padding for the im2col (stride!=1) path
VMEM_LIMIT = 32 * 1024 * 1024   # safe on v5e/v6e/v7x


# -----------------------------------------------------------------------------
# small helpers
# -----------------------------------------------------------------------------
def _round_up(x, m):
    return (x + m - 1) // m * m


def _cdiv(a, b):
    return -(-a // b)


def _pad2d(a, rows, cols):
    r, c = a.shape
    if r == rows and c == cols:
        return a
    return jnp.pad(a, ((0, rows - r), (0, cols - c)))


def _pick_tile_a(m, tm_user):
    """Pass-A tile: <= user tm, ~>=4 grid tiles, 16-row aligned."""
    cap = max(ROW_ALIGN, _round_up(_cdiv(m, 4), ROW_ALIGN))
    return max(ROW_ALIGN, min(_round_up(tm_user, ROW_ALIGN), cap))


def _pick_tile_b(mp, tm_a):
    """Pass-B (elementwise) tile: bigger than pass A but keep >=2 tiles."""
    mt = mp // tm_a
    for k in (8, 4, 2):
        if mt % k == 0 and mt // k >= 2 and tm_a * k <= 1024:
            return tm_a * k
    return tm_a


def _compiler_params(parallel=True):
    sem = "parallel" if parallel else "arbitrary"
    return pltpu.CompilerParams(dimension_semantics=(sem,),
                                vmem_limit_bytes=VMEM_LIMIT)


# -----------------------------------------------------------------------------
# in-kernel helpers
# -----------------------------------------------------------------------------
def _emit_stats(y, mbool, nv, st_ref):
    """Per-tile BN partials (Chan style): row0 = sum, row1 = centered SSQ."""
    ym = jnp.where(mbool, y, 0.0)
    tsum = jnp.sum(ym, axis=0, keepdims=True)              # (1, C)
    cen = jnp.where(mbool, y - tsum / nv, 0.0)
    st_ref[0:1, :] = tsum
    st_ref[1:2, :] = jnp.sum(cen * cen, axis=0, keepdims=True)


def _halo_fetch(x_hbm, xbuf, sem, tm):
    """Cross-step double-buffered halo DMA: rows [i*tm, i*tm + tm + 2*halop)."""
    i = pl.program_id(0)
    nt = pl.num_programs(0)
    rows = xbuf.shape[1]

    def _copy(tile, slot):
        start = pl.multiple_of(tile * tm, SUBLANE)
        return pltpu.make_async_copy(x_hbm.at[pl.ds(start, rows), :],
                                     xbuf.at[slot], sem.at[slot])

    @pl.when(i == 0)
    def _():
        _copy(i, 0).start()

    slot = i % 2
    _copy(i, slot).wait()

    @pl.when(i + 1 < nt)
    def _():
        _copy(i + 1, 1 - slot).start()

    # Upcast once: all 9 tap slices then happen on an unpacked f32 value.
    return xbuf[slot].astype(jnp.float32)


# -----------------------------------------------------------------------------
# Pass A kernels (conv as 9 shifted matmuls + BN stat partials)
# -----------------------------------------------------------------------------
def _tap_conv_kernel(m_ref, w_ref, x_hbm, y_ref, st_ref, xbuf, sem,
                     *, tm, halop, offs, mmdt):
    xb = _halo_fetch(x_hbm, xbuf, sem, tm)
    acc = jnp.zeros((tm, y_ref.shape[1]), jnp.float32)
    for t, off in enumerate(offs):
        lhs = xb[halop + off:halop + off + tm, :].astype(mmdt)
        acc = acc + jnp.dot(lhs, w_ref[t], preferred_element_type=jnp.float32)
    m = m_ref[...]
    mbool = m > 0.5
    nv = jnp.maximum(jnp.sum(m, axis=0, keepdims=True), 1.0)
    y_ref[...] = acc.astype(y_ref.dtype)
    _emit_stats(acc, mbool, nv, st_ref)


def _tap_conv_proj_kernel(m_ref, w_ref, wsc_ref, x_hbm,
                          y_ref, st_ref, ysc_ref, stsc_ref, xbuf, sem,
                          *, tm, halop, offs, mmdt):
    xb = _halo_fetch(x_hbm, xbuf, sem, tm)
    cp = y_ref.shape[1]
    acc = jnp.zeros((tm, cp), jnp.float32)
    lhs_c = None
    for t, off in enumerate(offs):
        lhs = xb[halop + off:halop + off + tm, :].astype(mmdt)
        if off == 0:                       # centre tap == 1x1 shortcut input
            lhs_c = lhs
        acc = acc + jnp.dot(lhs, w_ref[t], preferred_element_type=jnp.float32)
    acc_sc = jnp.dot(lhs_c, wsc_ref[...], preferred_element_type=jnp.float32)
    m = m_ref[...]
    mbool = m > 0.5
    nv = jnp.maximum(jnp.sum(m, axis=0, keepdims=True), 1.0)
    y_ref[...] = acc.astype(y_ref.dtype)
    ysc_ref[...] = acc_sc.astype(ysc_ref.dtype)
    _emit_stats(acc, mbool, nv, st_ref)
    _emit_stats(acc_sc, mbool, nv, stsc_ref)


def _im2col_conv_proj_kernel(p_ref, w_ref, m_ref,
                             y_ref, st_ref, ysc_ref, stsc_ref, *, cp):
    """Strided conv as one matmul; 1x1 shortcut fused as extra RHS columns."""
    yy = jnp.dot(p_ref[...], w_ref[...], preferred_element_type=jnp.float32)
    y = yy[:, :cp]
    ysc = yy[:, cp:]
    m = m_ref[...]
    mbool = m > 0.5
    nv = jnp.maximum(jnp.sum(m, axis=0, keepdims=True), 1.0)
    y_ref[...] = y.astype(y_ref.dtype)
    ysc_ref[...] = ysc.astype(ysc_ref.dtype)
    _emit_stats(y, mbool, nv, st_ref)
    _emit_stats(ysc, mbool, nv, stsc_ref)


# -----------------------------------------------------------------------------
# Pass B kernels (normalize + residual + ReLU, affines pre-folded)
# -----------------------------------------------------------------------------
def _bn_add_relu_kernel(y_ref, res_ref, m_ref, sc_ref, sh_ref, o_ref):
    a = (y_ref[...].astype(jnp.float32) * sc_ref[...] + sh_ref[...]
         + res_ref[...].astype(jnp.float32))
    o_ref[...] = jnp.where(m_ref[...] > 0.5, jnp.maximum(a, 0.0),
                           0.0).astype(o_ref.dtype)


def _bn2_add_relu_kernel(y_ref, ysc_ref, m_ref, sc1_ref, sh1_ref,
                         scs_ref, shs_ref, o_ref):
    a = y_ref[...].astype(jnp.float32) * sc1_ref[...] + sh1_ref[...]
    b = ysc_ref[...].astype(jnp.float32) * scs_ref[...] + shs_ref[...]
    o_ref[...] = jnp.where(m_ref[...] > 0.5, jnp.maximum(a + b, 0.0),
                           0.0).astype(o_ref.dtype)


# -----------------------------------------------------------------------------
# pallas_call wrappers
# -----------------------------------------------------------------------------
def _tap_conv(xbig, w_taps, rowmask, tm, halop, wp, out_dtype, wsc=None):
    mp = rowmask.shape[0]
    mt = mp // tm
    cin_p = xbig.shape[1]
    cp = w_taps.shape[2]
    rows = tm + 2 * halop
    offs = tuple((kh - 1) * wp + (kw - 1) for kh in range(3) for kw in range(3))
    mmdt = xbig.dtype

    y_shape = jax.ShapeDtypeStruct((mp, cp), out_dtype)
    st_shape = jax.ShapeDtypeStruct((mt * SUBLANE, cp), jnp.float32)
    y_spec = pl.BlockSpec((tm, cp), lambda i: (i, 0))
    st_spec = pl.BlockSpec((SUBLANE, cp), lambda i: (i, 0))
    m_spec = pl.BlockSpec((tm, 1), lambda i: (i, 0))
    w_spec = pl.BlockSpec((9, cin_p, cp), lambda i: (0, 0, 0))
    x_spec = pl.BlockSpec(memory_space=pl.ANY)           # halo DMA'd manually
    scratch = [pltpu.VMEM((2, rows, cin_p), mmdt), pltpu.SemaphoreType.DMA((2,))]
    # "arbitrary": the manual double-buffered DMA carries state across steps.
    cparams = _compiler_params(parallel=False)

    if wsc is None:
        kern = functools.partial(_tap_conv_kernel, tm=tm, halop=halop,
                                 offs=offs, mmdt=mmdt)
        y, st = pl.pallas_call(
            kern, grid=(mt,),
            in_specs=[m_spec, w_spec, x_spec],
            out_specs=(y_spec, st_spec),
            out_shape=(y_shape, st_shape),
            scratch_shapes=scratch,
            compiler_params=cparams,
        )(rowmask, w_taps, xbig)
        return y, st, None, None

    wsc_spec = pl.BlockSpec((cin_p, cp), lambda i: (0, 0))
    kern = functools.partial(_tap_conv_proj_kernel, tm=tm, halop=halop,
                             offs=offs, mmdt=mmdt)
    y, st, ysc, stsc = pl.pallas_call(
        kern, grid=(mt,),
        in_specs=[m_spec, w_spec, wsc_spec, x_spec],
        out_specs=(y_spec, st_spec, y_spec, st_spec),
        out_shape=(y_shape, st_shape, y_shape, st_shape),
        scratch_shapes=scratch,
        compiler_params=cparams,
    )(rowmask, w_taps, wsc, xbig)
    return y, st, ysc, stsc


def _im2col_conv_proj(patches, w_comb, rowmask, tm, cp, out_dtype):
    mp, kp = patches.shape
    mt = mp // tm
    y_shape = jax.ShapeDtypeStruct((mp, cp), out_dtype)
    st_shape = jax.ShapeDtypeStruct((mt * SUBLANE, cp), jnp.float32)
    y_spec = pl.BlockSpec((tm, cp), lambda i: (i, 0))
    st_spec = pl.BlockSpec((SUBLANE, cp), lambda i: (i, 0))
    kern = functools.partial(_im2col_conv_proj_kernel, cp=cp)
    return pl.pallas_call(
        kern, grid=(mt,),
        in_specs=[pl.BlockSpec((tm, kp), lambda i: (i, 0)),
                  pl.BlockSpec((kp, 2 * cp), lambda i: (0, 0)),
                  pl.BlockSpec((tm, 1), lambda i: (i, 0))],
        out_specs=(y_spec, st_spec, y_spec, st_spec),
        out_shape=(y_shape, st_shape, y_shape, st_shape),
        compiler_params=_compiler_params(parallel=True),
    )(patches, w_comb, rowmask)


def _bn_add_relu(y, res, rowmask, scale, shift, tmb):
    mp, cp = y.shape
    mt = mp // tmb
    tile = pl.BlockSpec((tmb, cp), lambda i: (i, 0))
    mtile = pl.BlockSpec((tmb, 1), lambda i: (i, 0))
    vec = pl.BlockSpec((1, cp), lambda i: (0, 0))
    return pl.pallas_call(
        _bn_add_relu_kernel, grid=(mt,),
        in_specs=[tile, tile, mtile, vec, vec], out_specs=tile,
        out_shape=jax.ShapeDtypeStruct((mp, cp), y.dtype),
        input_output_aliases={0: 0},
        compiler_params=_compiler_params(parallel=True),
    )(y, res, rowmask, scale, shift)


def _bn2_add_relu(y, ysc, rowmask, sc1, sh1, scs, shs, tmb):
    mp, cp = y.shape
    mt = mp // tmb
    tile = pl.BlockSpec((tmb, cp), lambda i: (i, 0))
    mtile = pl.BlockSpec((tmb, 1), lambda i: (i, 0))
    vec = pl.BlockSpec((1, cp), lambda i: (0, 0))
    return pl.pallas_call(
        _bn2_add_relu_kernel, grid=(mt,),
        in_specs=[tile, tile, mtile, vec, vec, vec, vec], out_specs=tile,
        out_shape=jax.ShapeDtypeStruct((mp, cp), y.dtype),
        input_output_aliases={0: 0},
        compiler_params=_compiler_params(parallel=True),
    )(y, ysc, rowmask, sc1, sh1, scs, shs)


# -----------------------------------------------------------------------------
# BN statistics combination / folding (tiny per-channel vectors; plain JAX)
# -----------------------------------------------------------------------------
def _combine_stats(st, counts, m_total):
    mt = counts.shape[0]
    st = st.reshape(mt, SUBLANE, -1)
    tsum = st[:, 0, :]
    tm2 = st[:, 1, :]
    c = counts.astype(jnp.float32)                      # true per-tile counts
    tmean = tsum / jnp.maximum(c, 1.0)[:, None]
    mean = jnp.sum(tsum, axis=0) / m_total
    m2 = jnp.sum(tm2, axis=0) + jnp.sum(c[:, None] * (tmean - mean[None, :]) ** 2,
                                        axis=0)
    var = jnp.maximum(m2 / m_total, 0.0)                # biased (PyTorch train BN)
    return mean, var


def _fold_bn(mean, var, gamma, beta, cp):
    g = jnp.pad(gamma.astype(jnp.float32), (0, cp - gamma.shape[0]))
    b = jnp.pad(beta.astype(jnp.float32), (0, cp - beta.shape[0]))
    scale = g * lax.rsqrt(var + EPS)
    shift = b - mean * scale
    return scale.reshape(1, cp), shift.reshape(1, cp)


# -----------------------------------------------------------------------------
# layout glue (plain JAX)
# -----------------------------------------------------------------------------
def im2col(x_nhwc, ksize, stride, pad):
    """[N,H,W,C] -> ([N*Ho*Wo, k*k*C] tap-major/channel-minor patches, Ho, Wo)."""
    n, h, w, c = x_nhwc.shape
    xp = jnp.pad(x_nhwc, ((0, 0), (pad, pad), (pad, pad), (0, 0)))
    ho = (h + 2 * pad - ksize) // stride + 1
    wo = (w + 2 * pad - ksize) // stride + 1
    cols = []
    for kh in range(ksize):
        for kw in range(ksize):
            cols.append(xp[:, kh:kh + stride * ho:stride, kw:kw + stride * wo:stride, :])
    patches = jnp.concatenate(cols, axis=-1)
    return patches.reshape(n * ho * wo, ksize * ksize * c), ho, wo


def _w_to_matmul(w_oihw):
    cout, cin, kh, kw = w_oihw.shape
    return jnp.transpose(w_oihw, (2, 3, 1, 0)).reshape(kh * kw * cin, cout)


def _w_to_taps(w_oihw, cin_p, cp):
    """[Cout,Cin,3,3] -> [9, cin_p, cp] per-tap matmul RHS (tap-major)."""
    cout, cin, kh, kw = w_oihw.shape
    wt = jnp.transpose(w_oihw, (2, 3, 1, 0)).reshape(kh * kw, cin, cout)
    return jnp.pad(wt, ((0, 0), (0, cin_p - cin), (0, cp - cout)))


def _interior_mask(n, hp, wp, mp):
    m = jnp.zeros((n, hp, wp), jnp.float32).at[:, 1:hp - 1, 1:wp - 1].set(1.0)
    return jnp.pad(m.reshape(n * hp * wp, 1), ((0, mp - n * hp * wp), (0, 0)))


def _tail_mask(m_valid, mp):
    return (jnp.arange(mp, dtype=jnp.int32) < m_valid).astype(jnp.float32).reshape(mp, 1)


def _counts(rowmask, tm):
    return rowmask[:, 0].reshape(-1, tm).sum(axis=1)


# -----------------------------------------------------------------------------
# Full block forward (NCHW in / NCHW out, PyTorch training-mode BN semantics)
# -----------------------------------------------------------------------------
def basic_block_r1_forward(x_nchw, params, stride, *, tm=256,
                           matmul_dtype=jnp.bfloat16):
    x = jnp.transpose(x_nchw, (0, 2, 3, 1)).astype(jnp.float32)   # NHWC, f32
    n, h, w, cin = x.shape
    cout = params["conv1_w"].shape[0]
    use_proj = (stride != 1) or (cin != cout)
    cp = _round_up(cout, LANE)          # lane-dense output channels
    mmdt = matmul_dtype                 # matmul & big-intermediate storage dtype

    if stride == 1:
        # ---- stage 1 as a tap-conv on the padded grid (no im2col) -----------
        hp, wp = h + 2, w + 2
        mg = n * hp * wp                # padded-grid rows
        mv = n * h * w                  # valid rows (BN population)
        tm1 = _pick_tile_a(mg, tm)
        mp1 = _round_up(mg, tm1)
        halop = _round_up(wp + 1, SUBLANE)
        cin_p = _round_up(cin, SUBLANE)

        ap = jnp.pad(x, ((0, 0), (1, 1), (1, 1), (0, 0)))          # zero border
        af = ap.reshape(mg, cin)
        xbig = jnp.pad(af.astype(mmdt),
                       ((halop, halop + mp1 - mg), (0, cin_p - cin)))
        mask1 = _interior_mask(n, hp, wp, mp1)
        cnt1 = _counts(mask1, tm1)
        w1 = _w_to_taps(params["conv1_w"], cin_p, cp).astype(mmdt)

        if use_proj:
            wsc = jnp.transpose(params["sc_w"][:, :, 0, 0], (1, 0))   # (cin,cout)
            wsc = _pad2d(wsc, cin_p, cp).astype(mmdt)
            y1, st1, ysc, stsc = _tap_conv(xbig, w1, mask1, tm1, halop, wp,
                                           mmdt, wsc=wsc)
        else:
            y1, st1, _, _ = _tap_conv(xbig, w1, mask1, tm1, halop, wp, mmdt)
            res1 = _pad2d(af, mp1, cp).astype(mmdt)     # identity shortcut

        mean1, var1 = _combine_stats(st1, cnt1, mv)
        sc1, sh1 = _fold_bn(mean1, var1, params["bn1_gamma"], params["bn1_beta"], cp)
        tmb1 = _pick_tile_b(mp1, tm1)
        if use_proj:
            msc, vsc = _combine_stats(stsc, cnt1, mv)
            scs, shs = _fold_bn(msc, vsc, params["sc_gamma"], params["sc_beta"], cp)
            a1 = _bn2_add_relu(y1, ysc, mask1, sc1, sh1, scs, shs, tmb1)
        else:
            a1 = _bn_add_relu(y1, res1, mask1, sc1, sh1, tmb1)

        # a1 lives on the same padded grid with exact zeros outside the interior
        # -> already spatially padded for the stage-2 conv; only guard rows for
        # the halo DMA are added.
        hp2, wp2, mg2, mv2 = hp, wp, mg, mv
        tm2, mp2, halop2 = tm1, mp1, halop
        res2, mask2, cnt2 = a1, mask1, cnt1
        xbig2 = jnp.pad(a1, ((halop2, halop2), (0, 0)))
    else:
        # ---- stage 1 via im2col matmul (strided conv + fused 1x1 shortcut) --
        # TODO(synk): strided taps don't reduce to constant row shifts; patches
        # are still built in plain JAX for this (downsampling) case.
        ho = (h + 2 - 3) // stride + 1
        wo = (w + 2 - 3) // stride + 1
        m1 = n * ho * wo
        tm1 = _pick_tile_a(m1, tm)
        mp1 = _round_up(m1, tm1)
        p1, _, _ = im2col(x.astype(mmdt), 3, stride, 1)
        k1p = _round_up(p1.shape[1], KMULT)
        p1 = _pad2d(p1, mp1, k1p)
        mask1 = _tail_mask(m1, mp1)
        cnt1 = _counts(mask1, tm1)

        w_main = _pad2d(_w_to_matmul(params["conv1_w"]), k1p, cp)
        wsc = jnp.transpose(params["sc_w"][:, :, 0, 0], (1, 0))      # (cin,cout)
        w_scf = jnp.zeros((k1p, cp), jnp.float32).at[4 * cin:5 * cin, :cout].set(wsc)
        w_comb = jnp.concatenate([w_main, w_scf], axis=1).astype(mmdt)
        y1, st1, ysc, stsc = _im2col_conv_proj(p1, w_comb, mask1, tm1, cp, mmdt)

        mean1, var1 = _combine_stats(st1, cnt1, m1)
        sc1, sh1 = _fold_bn(mean1, var1, params["bn1_gamma"], params["bn1_beta"], cp)
        msc, vsc = _combine_stats(stsc, cnt1, m1)
        scs, shs = _fold_bn(msc, vsc, params["sc_gamma"], params["sc_beta"], cp)
        tmb1 = _pick_tile_b(mp1, tm1)
        a1 = _bn2_add_relu(y1, ysc, mask1, sc1, sh1, scs, shs, tmb1)

        # Relayout a1 onto the stage-2 padded grid.
        hp2, wp2 = ho + 2, wo + 2
        mg2, mv2 = n * hp2 * wp2, m1
        tm2 = _pick_tile_a(mg2, tm)
        mp2 = _round_up(mg2, tm2)
        halop2 = _round_up(wp2 + 1, SUBLANE)
        a1_img = a1[:m1].reshape(n, ho, wo, cp)
        a1_pad = jnp.pad(a1_img, ((0, 0), (1, 1), (1, 1), (0, 0))).reshape(mg2, cp)
        res2 = jnp.pad(a1_pad, ((0, mp2 - mg2), (0, 0)))
        mask2 = _interior_mask(n, hp2, wp2, mp2)
        cnt2 = _counts(mask2, tm2)
        xbig2 = jnp.pad(res2, ((halop2, halop2), (0, 0)))

    # ---------------- stage 2: conv2 + bn2 + residual add + relu -------------
    w2 = _w_to_taps(params["conv2_w"], cp, cp).astype(mmdt)
    y2, st2, _, _ = _tap_conv(xbig2, w2, mask2, tm2, halop2, wp2, mmdt)
    mean2, var2 = _combine_stats(st2, cnt2, mv2)
    sc2, sh2 = _fold_bn(mean2, var2, params["bn2_gamma"], params["bn2_beta"], cp)
    tmb2 = _pick_tile_b(mp2, tm2)
    a2 = _bn_add_relu(y2, res2, mask2, sc2, sh2, tmb2)

    out = a2[:mg2].reshape(n, hp2, wp2, cp)[:, 1:-1, 1:-1, :cout]
    return jnp.transpose(out, (0, 3, 1, 2)).astype(jnp.float32)     # NCHW


# -----------------------------------------------------------------------------
# Pure-JAX reference (correctness check)
# -----------------------------------------------------------------------------
def _ref_conv(x, w, stride, pad):
    return lax.conv_general_dilated(
        x, w, (stride, stride), [(pad, pad), (pad, pad)],
        dimension_numbers=("NCHW", "OIHW", "NCHW"))


def _ref_bn(y, gamma, beta):
    mean = jnp.mean(y, axis=(0, 2, 3), keepdims=True)
    var = jnp.mean((y - mean) ** 2, axis=(0, 2, 3), keepdims=True)
    return (y - mean) * lax.rsqrt(var + EPS) * gamma.reshape(1, -1, 1, 1) \
        + beta.reshape(1, -1, 1, 1)


def ref_forward(x, params, stride):
    cin = x.shape[1]
    cout = params["conv1_w"].shape[0]
    use_proj = (stride != 1) or (cin != cout)
    y1 = _ref_bn(_ref_conv(x, params["conv1_w"], stride, 1),
                 params["bn1_gamma"], params["bn1_beta"])
    if use_proj:
        sc = _ref_bn(_ref_conv(x, params["sc_w"], stride, 0),
                     params["sc_gamma"], params["sc_beta"])
    else:
        sc = x
    a1 = jax.nn.relu(y1 + sc)
    y2 = _ref_bn(_ref_conv(a1, params["conv2_w"], 1, 1),
                 params["bn2_gamma"], params["bn2_beta"])
    return jax.nn.relu(y2 + a1)


# -----------------------------------------------------------------------------
# Main
# -----------------------------------------------------------------------------
if __name__ == "__main__":
    def make_params(key, cin, cout, use_proj):
        ks = jax.random.split(key, 10)
        p = {
            "conv1_w": 0.1 * jax.random.normal(ks[1], (cout, cin, 3, 3), jnp.float32),
            "bn1_gamma": 1.0 + 0.1 * jax.random.normal(ks[2], (cout,), jnp.float32),
            "bn1_beta": 0.1 * jax.random.normal(ks[3], (cout,), jnp.float32),
            "conv2_w": 0.1 * jax.random.normal(ks[4], (cout, cout, 3, 3), jnp.float32),
            "bn2_gamma": 1.0 + 0.1 * jax.random.normal(ks[5], (cout,), jnp.float32),
            "bn2_beta": 0.1 * jax.random.normal(ks[6], (cout,), jnp.float32),
        }
        if use_proj:
            p.update({
                "sc_w": 0.1 * jax.random.normal(ks[7], (cout, cin, 1, 1), jnp.float32),
                "sc_gamma": 1.0 + 0.1 * jax.random.normal(ks[8], (cout,), jnp.float32),
                "sc_beta": 0.1 * jax.random.normal(ks[9], (cout,), jnp.float32),
            })
        return p, ks[0]

    fwd = jax.jit(basic_block_r1_forward,
                  static_argnames=("stride", "tm", "matmul_dtype"))

    # --- Config 1: projection shortcut (stride=2, Cin=4 -> Cout=8) -----------
    n1, cin1, hs, ws, cout1, stride1 = 2, 4, 16, 16, 8, 2
    params, kx = make_params(jax.random.PRNGKey(0), cin1, cout1, True)
    x = jax.random.normal(kx, (n1, cin1, hs, ws), jnp.float32)
    ref = jax.block_until_ready(ref_forward(x, params, stride1))

    out32 = jax.block_until_ready(
        fwd(x, params, stride=stride1, tm=64, matmul_dtype=jnp.float32))
    assert out32.shape == (n1, cout1, hs // stride1, ws // stride1), out32.shape
    assert jnp.allclose(out32, ref, rtol=5e-4, atol=5e-4), \
        f"f32 max abs err {jnp.max(jnp.abs(out32 - ref))}"

    outbf = jax.block_until_ready(
        fwd(x, params, stride=stride1, tm=64, matmul_dtype=jnp.bfloat16))
    assert jnp.allclose(outbf, ref, rtol=1e-1, atol=1e-1), \
        f"bf16 max abs err {jnp.max(jnp.abs(outbf - ref))}"
    assert jnp.mean(jnp.abs(outbf - ref)) < 5e-2

    # --- Config 2: identity shortcut (stride=1, Cin==Cout), ragged grid ------
    n2, c2, h2 = 2, 8, 9
    params2, kx2 = make_params(jax.random.PRNGKey(1), c2, c2, False)
    x2 = jax.random.normal(kx2, (n2, c2, h2, h2), jnp.float32)
    ref2 = jax.block_until_ready(ref_forward(x2, params2, 1))
    out2 = jax.block_until_ready(
        fwd(x2, params2, stride=1, tm=64, matmul_dtype=jnp.float32))
    assert out2.shape == (n2, c2, h2, h2), out2.shape
    assert jnp.allclose(out2, ref2, rtol=5e-4, atol=5e-4), \
        f"identity max abs err {jnp.max(jnp.abs(out2 - ref2))}"

    # --- Config 3: projection shortcut at stride=1 (fused 1x1 tap path) ------
    n3, cin3, cout3, h3 = 2, 4, 8, 10
    params3, kx3 = make_params(jax.random.PRNGKey(2), cin3, cout3, True)
    x3 = jax.random.normal(kx3, (n3, cin3, h3, h3), jnp.float32)
    ref3 = jax.block_until_ready(ref_forward(x3, params3, 1))
    out3 = jax.block_until_ready(
        fwd(x3, params3, stride=1, tm=64, matmul_dtype=jnp.float32))
    assert out3.shape == (n3, cout3, h3, h3), out3.shape
    assert jnp.allclose(out3, ref3, rtol=5e-4, atol=5e-4), \
        f"stride1-proj max abs err {jnp.max(jnp.abs(out3 - ref3))}"

    print("KERNEL_OK")
</pallas_src>

<mosaic_0001>
module attributes {stable_mosaic.version = 11 : i64} {
  func.func @_im2col_conv_proj_kernel(%arg0: i32, %arg1: memref<32x48xf32, #tpu.memory_space<vmem>>, %arg2: memref<48x256xf32, #tpu.memory_space<vmem>>, %arg3: memref<32x1xf32, #tpu.memory_space<vmem>>, %arg4: memref<32x128xf32, #tpu.memory_space<vmem>>, %arg5: memref<8x128xf32, #tpu.memory_space<vmem>>, %arg6: memref<32x128xf32, #tpu.memory_space<vmem>>, %arg7: memref<8x128xf32, #tpu.memory_space<vmem>>) attributes {dimension_semantics = [#tpu.dimension_semantics<parallel>], iteration_bounds = array<i64: 4>, scalar_prefetch = 0 : i64, scratch_operands = 0 : i64, tpu.core_type = #tpu.core_type<tc>, window_params = [{transform_indices = @transform_0, window_bounds = array<i64: 32, 48>}, {pipeline_mode = #tpu.pipeline_mode<synchronous>, transform_indices = @transform_1, window_bounds = array<i64: 48, 256>}, {transform_indices = @transform_2, window_bounds = array<i64: 32, 1>}, {transform_indices = @transform_3, window_bounds = array<i64: 32, 128>}, {transform_indices = @transform_4, window_bounds = array<i64: 8, 128>}, {transform_indices = @transform_5, window_bounds = array<i64: 32, 128>}, {transform_indices = @transform_6, window_bounds = array<i64: 8, 128>}]} {
    %c0 = arith.constant 0 : index
    %c0_0 = arith.constant 0 : index
    %0 = vector.load %arg1[%c0, %c0_0] : memref<32x48xf32, #tpu.memory_space<vmem>>, vector<32x48xf32>
    %c0_1 = arith.constant 0 : index
    %c0_2 = arith.constant 0 : index
    %1 = vector.load %arg2[%c0_1, %c0_2] : memref<48x256xf32, #tpu.memory_space<vmem>>, vector<48x256xf32>
    %cst = arith.constant dense<0.000000e+00> : vector<32x256xf32>
    %2 = tpu.matmul %0, %1, %cst {dimension_numbers = #tpu.dot_dimension_numbers<[1], [0], [0], [1], [0, 0, 1, 1], [], []>} : vector<32x48xf32>, vector<48x256xf32>, vector<32x256xf32> -> vector<32x256xf32>
    %3 = vector.extract_strided_slice %2 {offsets = [0, 0], sizes = [32, 128], strides = [1, 1]} : vector<32x256xf32> to vector<32x128xf32>
    %4 = vector.extract_strided_slice %2 {offsets = [0, 128], sizes = [32, 128], strides = [1, 1]} : vector<32x256xf32> to vector<32x128xf32>
    %c0_3 = arith.constant 0 : index
    %c0_4 = arith.constant 0 : index
    %5 = vector.load %arg3[%c0_3, %c0_4] : memref<32x1xf32, #tpu.memory_space<vmem>>, vector<32x1xf32>
    %cst_5 = arith.constant 5.000000e-01 : f32
    %6 = vector.broadcast %cst_5 : f32 to vector<32x1xf32>
    %7 = arith.cmpf ogt, %5, %6 : vector<32x1xf32>
    %cst_6 = arith.constant dense<0.000000e+00> : vector<1xf32>
    %8 = vector.multi_reduction <add>, %5, %cst_6 [0] : vector<32x1xf32> to vector<1xf32>
    %9 = vector.shape_cast %8 : vector<1xf32> to vector<1x1xf32>
    %cst_7 = arith.constant 1.000000e+00 : f32
    %10 = vector.broadcast %cst_7 : f32 to vector<1x1xf32>
    %11 = arith.maximumf %9, %10 : vector<1x1xf32>
    %c0_8 = arith.constant 0 : index
    %c0_9 = arith.constant 0 : index
    %12 = vector.load %arg4[%c0_8, %c0_9] : memref<32x128xf32, #tpu.memory_space<vmem>>, vector<32x128xf32>
    tpu.vector_store %arg4[%c0_8, %c0_9], %3 {strides = array<i32>} : memref<32x128xf32, #tpu.memory_space<vmem>>, vector<32x128xf32>,
    %c0_10 = arith.constant 0 : index
    %c0_11 = arith.constant 0 : index
    %13 = vector.load %arg6[%c0_10, %c0_11] : memref<32x128xf32, #tpu.memory_space<vmem>>, vector<32x128xf32>
    tpu.vector_store %arg6[%c0_10, %c0_11], %4 {strides = array<i32>} : memref<32x128xf32, #tpu.memory_space<vmem>>, vector<32x128xf32>,
    %cst_12 = arith.constant 0.000000e+00 : f32
    %14 = vector.shape_cast %7 : vector<32x1xi1> to vector<32x1xi1>
    %15 = vector.broadcast %14 : vector<32x1xi1> to vector<32x128xi1>
    %16 = vector.broadcast %cst_12 : f32 to vector<32x128xf32>
    %17 = arith.select %15, %3, %16 : vector<32x128xi1>, vector<32x128xf32>
    %cst_13 = arith.constant dense<0.000000e+00> : vector<128xf32>
    %18 = vector.multi_reduction <add>, %17, %cst_13 [0] : vector<32x128xf32> to vector<128xf32>
    %19 = vector.shape_cast %18 : vector<128xf32> to vector<1x128xf32>
    %20 = vector.broadcast %11 : vector<1x1xf32> to vector<1x128xf32>
    %21 = arith.divf %19, %20 : vector<1x128xf32>
    %22 = vector.broadcast %21 : vector<1x128xf32> to vector<32x128xf32>
    %23 = arith.subf %3, %22 : vector<32x128xf32>
    %cst_14 = arith.constant 0.000000e+00 : f32
    %24 = vector.shape_cast %7 : vector<32x1xi1> to vector<32x1xi1>
    %25 = vector.broadcast %24 : vector<32x1xi1> to vector<32x128xi1>
    %26 = vector.broadcast %cst_14 : f32 to vector<32x128xf32>
    %27 = arith.select %25, %23, %26 : vector<32x128xi1>, vector<32x128xf32>
    %c0_15 = arith.constant 0 : index
    %c0_16 = arith.constant 0 : index
    %28 = vector.load %arg5[%c0_15, %c0_16] : memref<8x128xf32, #tpu.memory_space<vmem>>, vector<1x128xf32>
    tpu.vector_store %arg5[%c0_15, %c0_16], %19 {strides = array<i32>} : memref<8x128xf32, #tpu.memory_space<vmem>>, vector<1x128xf32>,
    %29 = arith.mulf %27, %27 : vector<32x128xf32>
    %cst_17 = arith.constant dense<0.000000e+00> : vector<128xf32>
    %30 = vector.multi_reduction <add>, %29, %cst_17 [0] : vector<32x128xf32> to vector<128xf32>
    %31 = vector.shape_cast %30 : vector<128xf32> to vector<1x128xf32>
    %c1 = arith.constant 1 : index
    %c0_18 = arith.constant 0 : index
    %32 = vector.load %arg5[%c1, %c0_18] : memref<8x128xf32, #tpu.memory_space<vmem>>, vector<1x128xf32>
    tpu.vector_store %arg5[%c1, %c0_18], %31 {strides = array<i32>} : memref<8x128xf32, #tpu.memory_space<vmem>>, vector<1x128xf32>,
    %cst_19 = arith.constant 0.000000e+00 : f32
    %33 = vector.shape_cast %7 : vector<32x1xi1> to vector<32x1xi1>
    %34 = vector.broadcast %33 : vector<32x1xi1> to vector<32x128xi1>
    %35 = vector.broadcast %cst_19 : f32 to vector<32x128xf32>
    %36 = arith.select %34, %4, %35 : vector<32x128xi1>, vector<32x128xf32>
    %cst_20 = arith.constant dense<0.000000e+00> : vector<128xf32>
    %37 = vector.multi_reduction <add>, %36, %cst_20 [0] : vector<32x128xf32> to vector<128xf32>
    %38 = vector.shape_cast %37 : vector<128xf32> to vector<1x128xf32>
    %39 = vector.broadcast %11 : vector<1x1xf32> to vector<1x128xf32>
    %40 = arith.divf %38, %39 : vector<1x128xf32>
    %41 = vector.broadcast %40 : vector<1x128xf32> to vector<32x128xf32>
    %42 = arith.subf %4, %41 : vector<32x128xf32>
    %cst_21 = arith.constant 0.000000e+00 : f32
    %43 = vector.shape_cast %7 : vector<32x1xi1> to vector<32x1xi1>
    %44 = vector.broadcast %43 : vector<32x1xi1> to vector<32x128xi1>
    %45 = vector.broadcast %cst_21 : f32 to vector<32x128xf32>
    %46 = arith.select %44, %42, %45 : vector<32x128xi1>, vector<32x128xf32>
    %c0_22 = arith.constant 0 : index
    %c0_23 = arith.constant 0 : index
    %47 = vector.load %arg7[%c0_22, %c0_23] : memref<8x128xf32, #tpu.memory_space<vmem>>, vector<1x128xf32>
    tpu.vector_store %arg7[%c0_22, %c0_23], %38 {strides = array<i32>} : memref<8x128xf32, #tpu.memory_space<vmem>>, vector<1x128xf32>,
    %48 = arith.mulf %46, %46 : vector<32x128xf32>
    %cst_24 = arith.constant dense<0.000000e+00> : vector<128xf32>
    %49 = vector.multi_reduction <add>, %48, %cst_24 [0] : vector<32x128xf32> to vector<128xf32>
    %50 = vector.shape_cast %49 : vector<128xf32> to vector<1x128xf32>
    %c1_25 = arith.constant 1 : index
    %c0_26 = arith.constant 0 : index
    %51 = vector.load %arg7[%c1_25, %c0_26] : memref<8x128xf32, #tpu.memory_space<vmem>>, vector<1x128xf32>
    tpu.vector_store %arg7[%c1_25, %c0_26], %50 {strides = array<i32>} : memref<8x128xf32, #tpu.memory_space<vmem>>, vector<1x128xf32>,
    return
  }
  func.func @transform_0(%arg0: i32) -> (i32, i32) {
    %c0_i32 = arith.constant 0 : i32
    %c0_i32_0 = arith.constant 0 : i32
    return %arg0, %c0_i32 : i32, i32
  }
  func.func @transform_1(%arg0: i32) -> (i32, i32) {
    %c0_i32 = arith.constant 0 : i32
    %c0_i32_0 = arith.constant 0 : i32
    %c0_i32_1 = arith.constant 0 : i32
    return %c0_i32, %c0_i32_0 : i32, i32
  }
  func.func @transform_2(%arg0: i32) -> (i32, i32) {
    %c0_i32 = arith.constant 0 : i32
    %c0_i32_0 = arith.constant 0 : i32
    return %arg0, %c0_i32 : i32, i32
  }
  func.func @transform_3(%arg0: i32) -> (i32, i32) {
    %c0_i32 = arith.constant 0 : i32
    %c0_i32_0 = arith.constant 0 : i32
    return %arg0, %c0_i32 : i32, i32
  }
  func.func @transform_4(%arg0: i32) -> (i32, i32) {
    %c0_i32 = arith.constant 0 : i32
    %c0_i32_0 = arith.constant 0 : i32
    return %arg0, %c0_i32 : i32, i32
  }
  func.func @transform_5(%arg0: i32) -> (i32, i32) {
    %c0_i32 = arith.constant 0 : i32
    %c0_i32_0 = arith.constant 0 : i32
    return %arg0, %c0_i32 : i32, i32
  }
  func.func @transform_6(%arg0: i32) -> (i32, i32) {
    %c0_i32 = arith.constant 0 : i32
    %c0_i32_0 = arith.constant 0 : i32
    return %arg0, %c0_i32 : i32, i32
  }
}

module attributes {stable_mosaic.version = 11 : i64} {
  func.func @_bn2_add_relu_kernel(%arg0: i32, %arg1: memref<64x128xf32, #tpu.memory_space<vmem>>, %arg2: memref<64x128xf32, #tpu.memory_space<vmem>>, %arg3: memref<64x1xf32, #tpu.memory_space<vmem>>, %arg4: memref<1x128xf32, #tpu.memory_space<vmem>>, %arg5: memref<1x128xf32, #tpu.memory_space<vmem>>, %arg6: memref<1x128xf32, #tpu.memory_space<vmem>>, %arg7: memref<1x128xf32, #tpu.memory_space<vmem>>, %arg8: memref<64x128xf32, #tpu.memory_space<vmem>>) attributes {dimension_semantics = [#tpu.dimension_semantics<parallel>], iteration_bounds = array<i64: 2>, scalar_prefetch = 0 : i64, scratch_operands = 0 : i64, tpu.core_type = #tpu.core_type<tc>, window_params = [{transform_indices = @transform_0, window_bounds = array<i64: 64, 128>}, {transform_indices = @transform_1, window_bounds = array<i64: 64, 128>}, {transform_indices = @transform_2, window_bounds = array<i64: 64, 1>}, {pipeline_mode = #tpu.pipeline_mode<synchronous>, transform_indices = @transform_3, window_bounds = array<i64: 1, 128>}, {pipeline_mode = #tpu.pipeline_mode<synchronous>, transform_indices = @transform_4, window_bounds = array<i64: 1, 128>}, {pipeline_mode = #tpu.pipeline_mode<synchronous>, transform_indices = @transform_5, window_bounds = array<i64: 1, 128>}, {pipeline_mode = #tpu.pipeline_mode<synchronous>, transform_indices = @transform_6, window_bounds = array<i64: 1, 128>}, {transform_indices = @transform_7, window_bounds = array<i64: 64, 128>}]} {
    %c0 = arith.constant 0 : index
    %c0_0 = arith.constant 0 : index
    %0 = vector.load %arg1[%c0, %c0_0] : memref<64x128xf32, #tpu.memory_space<vmem>>, vector<64x128xf32>
    %c0_1 = arith.constant 0 : index
    %c0_2 = arith.constant 0 : index
    %1 = vector.load %arg4[%c0_1, %c0_2] : memref<1x128xf32, #tpu.memory_space<vmem>>, vector<1x128xf32>
    %2 = vector.broadcast %1 : vector<1x128xf32> to vector<64x128xf32>
    %3 = arith.mulf %0, %2 : vector<64x128xf32>
    %c0_3 = arith.constant 0 : index
    %c0_4 = arith.constant 0 : index
    %4 = vector.load %arg5[%c0_3, %c0_4] : memref<1x128xf32, #tpu.memory_space<vmem>>, vector<1x128xf32>
    %5 = vector.broadcast %4 : vector<1x128xf32> to vector<64x128xf32>
    %6 = arith.addf %3, %5 : vector<64x128xf32>
    %c0_5 = arith.constant 0 : index
    %c0_6 = arith.constant 0 : index
    %7 = vector.load %arg2[%c0_5, %c0_6] : memref<64x128xf32, #tpu.memory_space<vmem>>, vector<64x128xf32>
    %c0_7 = arith.constant 0 : index
    %c0_8 = arith.constant 0 : index
    %8 = vector.load %arg6[%c0_7, %c0_8] : memref<1x128xf32, #tpu.memory_space<vmem>>, vector<1x128xf32>
    %9 = vector.broadcast %8 : vector<1x128xf32> to vector<64x128xf32>
    %10 = arith.mulf %7, %9 : vector<64x128xf32>
    %c0_9 = arith.constant 0 : index
    %c0_10 = arith.constant 0 : index
    %11 = vector.load %arg7[%c0_9, %c0_10] : memref<1x128xf32, #tpu.memory_space<vmem>>, vector<1x128xf32>
    %12 = vector.broadcast %11 : vector<1x128xf32> to vector<64x128xf32>
    %13 = arith.addf %10, %12 : vector<64x128xf32>
    %c0_11 = arith.constant 0 : index
    %c0_12 = arith.constant 0 : index
    %14 = vector.load %arg3[%c0_11, %c0_12] : memref<64x1xf32, #tpu.memory_space<vmem>>, vector<64x1xf32>
    %cst = arith.constant 5.000000e-01 : f32
    %15 = vector.broadcast %cst : f32 to vector<64x1xf32>
    %16 = arith.cmpf ogt, %14, %15 : vector<64x1xf32>
    %17 = arith.addf %6, %13 : vector<64x128xf32>
    %cst_13 = arith.constant 0.000000e+00 : f32
    %18 = vector.broadcast %cst_13 : f32 to vector<64x128xf32>
    %19 = arith.maximumf %17, %18 : vector<64x128xf32>
    %cst_14 = arith.constant 0.000000e+00 : f32
    %20 = vector.shape_cast %16 : vector<64x1xi1> to vector<64x1xi1>
    %21 = vector.broadcast %20 : vector<64x1xi1> to vector<64x128xi1>
    %22 = vector.broadcast %cst_14 : f32 to vector<64x128xf32>
    %23 = arith.select %21, %19, %22 : vector<64x128xi1>, vector<64x128xf32>
    %c0_15 = arith.constant 0 : index
    %c0_16 = arith.constant 0 : index
    %24 = vector.load %arg8[%c0_15, %c0_16] : memref<64x128xf32, #tpu.memory_space<vmem>>, vector<64x128xf32>
    tpu.vector_store %arg8[%c0_15, %c0_16], %23 {strides = array<i32>} : memref<64x128xf32, #tpu.memory_space<vmem>>, vector<64x128xf32>,
    return
  }
  func.func @transform_0(%arg0: i32) -> (i32, i32) {
    %c0_i32 = arith.constant 0 : i32
    %c0_i32_0 = arith.constant 0 : i32
    return %arg0, %c0_i32 : i32, i32
  }
  func.func @transform_1(%arg0: i32) -> (i32, i32) {
    %c0_i32 = arith.constant 0 : i32
    %c0_i32_0 = arith.constant 0 : i32
    return %arg0, %c0_i32 : i32, i32
  }
  func.func @transform_2(%arg0: i32) -> (i32, i32) {
    %c0_i32 = arith.constant 0 : i32
    %c0_i32_0 = arith.constant 0 : i32
    return %arg0, %c0_i32 : i32, i32
  }
  func.func @transform_3(%arg0: i32) -> (i32, i32) {
    %c0_i32 = arith.constant 0 : i32
    %c0_i32_0 = arith.constant 0 : i32
    %c0_i32_1 = arith.constant 0 : i32
    return %c0_i32, %c0_i32_0 : i32, i32
  }
  func.func @transform_4(%arg0: i32) -> (i32, i32) {
    %c0_i32 = arith.constant 0 : i32
    %c0_i32_0 = arith.constant 0 : i32
    %c0_i32_1 = arith.constant 0 : i32
    return %c0_i32, %c0_i32_0 : i32, i32
  }
  func.func @transform_5(%arg0: i32) -> (i32, i32) {
    %c0_i32 = arith.constant 0 : i32
    %c0_i32_0 = arith.constant 0 : i32
    %c0_i32_1 = arith.constant 0 : i32
    return %c0_i32, %c0_i32_0 : i32, i32
  }
  func.func @transform_6(%arg0: i32) -> (i32, i32) {
    %c0_i32 = arith.constant 0 : i32
    %c0_i32_0 = arith.constant 0 : i32
    %c0_i32_1 = arith.constant 0 : i32
    return %c0_i32, %c0_i32_0 : i32, i32
  }
  func.func @transform_7(%arg0: i32) -> (i32, i32) {
    %c0_i32 = arith.constant 0 : i32
    %c0_i32_0 = arith.constant 0 : i32
    return %arg0, %c0_i32 : i32, i32
  }
}

module attributes {stable_mosaic.version = 11 : i64} {
  func.func @_tap_conv_kernel(%arg0: i32, %arg1: memref<64x1xf32, #tpu.memory_space<vmem>>, %arg2: memref<9x128x128xf32, #tpu.memory_space<vmem>>, %arg3: memref<288x128xf32, #tpu.memory_space<any>>, %arg4: memref<64x128xf32, #tpu.memory_space<vmem>>, %arg5: memref<8x128xf32, #tpu.memory_space<vmem>>, %arg6: memref<2x96x128xf32, #tpu.memory_space<vmem>>, %arg7: memref<2x!tpu.dma_semaphore, #tpu.memory_space<semaphore_mem>>) attributes {dimension_semantics = [#tpu.dimension_semantics<arbitrary>], iteration_bounds = array<i64: 4>, scalar_prefetch = 0 : i64, scratch_operands = 2 : i64, tpu.core_type = #tpu.core_type<tc>, window_params = [{transform_indices = @transform_0, window_bounds = array<i64: 64, 1>}, {pipeline_mode = #tpu.pipeline_mode<synchronous>, transform_indices = @transform_1, window_bounds = array<i64: 9, 128, 128>}, {}, {transform_indices = @transform_3, window_bounds = array<i64: 64, 128>}, {transform_indices = @transform_4, window_bounds = array<i64: 8, 128>}]} {
    %c0_i32 = arith.constant 0 : i32
    %0 = arith.cmpi eq, %arg0, %c0_i32 : i32
    %1 = arith.extui %0 : i1 to i32
    %c0_i32_0 = arith.constant 0 : i32
    %2 = arith.cmpi ne, %1, %c0_i32_0 : i32
    scf.if %2 {
      %c64_i32_54 = arith.constant 64 : i32
      %100 = arith.muli %arg0, %c64_i32_54 : i32
      %101 = tpu.assume_multiple %100, 8 : i32
      %c0_i32_55 = arith.constant 0 : i32
      %c0_i32_56 = arith.constant 0 : i32
      %c0_i32_57 = arith.constant 0 : i32
      %102 = tpu.memref_slice %arg3[%101, %c0_i32_57] : memref<288x128xf32, #tpu.memory_space<any>> -> memref<96x128xf32, #tpu.memory_space<any>>
      %c0_i32_58 = arith.constant 0 : i32
      %c0_i32_59 = arith.constant 0 : i32
      %103 = tpu.memref_slice %arg6[%c0_i32_55, %c0_i32_58, %c0_i32_59] : memref<2x96x128xf32, #tpu.memory_space<vmem>> -> memref<1x96x128xf32, #tpu.memory_space<vmem>>
      %104 = tpu.memref_squeeze %103 : memref<1x96x128xf32, #tpu.memory_space<vmem>> -> memref<96x128xf32, #tpu.memory_space<vmem>>
      %105 = tpu.memref_slice %arg7[%c0_i32_56] : memref<2x!tpu.dma_semaphore, #tpu.memory_space<semaphore_mem>> -> memref<1x!tpu.dma_semaphore, #tpu.memory_space<semaphore_mem>>
      %106 = tpu.memref_squeeze %105 : memref<1x!tpu.dma_semaphore, #tpu.memory_space<semaphore_mem>> -> memref<!tpu.dma_semaphore, #tpu.memory_space<semaphore_mem>>
      tpu.enqueue_dma source(%102 : memref<96x128xf32, #tpu.memory_space<any>>) target(%104 : memref<96x128xf32, #tpu.memory_space<vmem>>) target_semaphore(%106 : memref<!tpu.dma_semaphore, #tpu.memory_space<semaphore_mem>>)
    } else {
    }
    %c2_i32 = arith.constant 2 : i32
    %c0_i32_1 = arith.constant 0 : i32
    %3 = arith.cmpi eq, %c2_i32, %c0_i32_1 : i32
    %c1_i32 = arith.constant 1 : i32
    %4 = arith.select %3, %c1_i32, %c2_i32 : i32
    %5 = arith.remsi %arg0, %4 : i32
    %c0_i32_2 = arith.constant 0 : i32
    %6 = arith.cmpi ne, %5, %c0_i32_2 : i32
    %c0_i32_3 = arith.constant 0 : i32
    %7 = arith.cmpi slt, %5, %c0_i32_3 : i32
    %c0_i32_4 = arith.constant 0 : i32
    %8 = arith.cmpi slt, %4, %c0_i32_4 : i32
    %9 = arith.xori %7, %8 : i1
    %10 = arith.andi %9, %6 : i1
    %11 = arith.addi %5, %4 : i32
    %12 = arith.select %10, %11, %5 : i32
    %c64_i32 = arith.constant 64 : i32
    %13 = arith.muli %arg0, %c64_i32 : i32
    %14 = tpu.assume_multiple %13, 8 : i32
    %c0_i32_5 = arith.constant 0 : i32
    %15 = tpu.memref_slice %arg3[%14, %c0_i32_5] : memref<288x128xf32, #tpu.memory_space<any>> -> memref<96x128xf32, #tpu.memory_space<any>>
    %c0_i32_6 = arith.constant 0 : i32
    %c0_i32_7 = arith.constant 0 : i32
    %16 = tpu.memref_slice %arg6[%12, %c0_i32_6, %c0_i32_7] : memref<2x96x128xf32, #tpu.memory_space<vmem>> -> memref<1x96x128xf32, #tpu.memory_space<vmem>>
    %17 = tpu.memref_squeeze %16 : memref<1x96x128xf32, #tpu.memory_space<vmem>> -> memref<96x128xf32, #tpu.memory_space<vmem>>
    %18 = tpu.memref_slice %arg7[%12] : memref<2x!tpu.dma_semaphore, #tpu.memory_space<semaphore_mem>> -> memref<1x!tpu.dma_semaphore, #tpu.memory_space<semaphore_mem>>
    %19 = tpu.memref_squeeze %18 : memref<1x!tpu.dma_semaphore, #tpu.memory_space<semaphore_mem>> -> memref<!tpu.dma_semaphore, #tpu.memory_space<semaphore_mem>>
    tpu.wait_dma2 semaphore(%19 : memref<!tpu.dma_semaphore, #tpu.memory_space<semaphore_mem>>) src(%15 : memref<96x128xf32, #tpu.memory_space<any>>) dst(%17 : memref<96x128xf32, #tpu.memory_space<vmem>>)
    %c1_i32_8 = arith.constant 1 : i32
    %20 = arith.addi %arg0, %c1_i32_8 : i32
    %c4_i32 = arith.constant 4 : i32
    %21 = arith.cmpi slt, %20, %c4_i32 : i32
    %22 = arith.extui %21 : i1 to i32
    %c0_i32_9 = arith.constant 0 : i32
    %23 = arith.cmpi ne, %22, %c0_i32_9 : i32
    scf.if %23 {
      %c1_i32_54 = arith.constant 1 : i32
      %100 = arith.addi %arg0, %c1_i32_54 : i32
      %c1_i32_55 = arith.constant 1 : i32
      %101 = arith.subi %c1_i32_55, %12 : i32
      %c64_i32_56 = arith.constant 64 : i32
      %102 = arith.muli %100, %c64_i32_56 : i32
      %103 = tpu.assume_multiple %102, 8 : i32
      %c0_i32_57 = arith.constant 0 : i32
      %104 = tpu.memref_slice %arg3[%103, %c0_i32_57] : memref<288x128xf32, #tpu.memory_space<any>> -> memref<96x128xf32, #tpu.memory_space<any>>
      %c0_i32_58 = arith.constant 0 : i32
      %c0_i32_59 = arith.constant 0 : i32
      %105 = tpu.memref_slice %arg6[%101, %c0_i32_58, %c0_i32_59] : memref<2x96x128xf32, #tpu.memory_space<vmem>> -> memref<1x96x128xf32, #tpu.memory_space<vmem>>
      %106 = tpu.memref_squeeze %105 : memref<1x96x128xf32, #tpu.memory_space<vmem>> -> memref<96x128xf32, #tpu.memory_space<vmem>>
      %107 = tpu.memref_slice %arg7[%101] : memref<2x!tpu.dma_semaphore, #tpu.memory_space<semaphore_mem>> -> memref<1x!tpu.dma_semaphore, #tpu.memory_space<semaphore_mem>>
      %108 = tpu.memref_squeeze %107 : memref<1x!tpu.dma_semaphore, #tpu.memory_space<semaphore_mem>> -> memref<!tpu.dma_semaphore, #tpu.memory_space<semaphore_mem>>
      tpu.enqueue_dma source(%104 : memref<96x128xf32, #tpu.memory_space<any>>) target(%106 : memref<96x128xf32, #tpu.memory_space<vmem>>) target_semaphore(%108 : memref<!tpu.dma_semaphore, #tpu.memory_space<semaphore_mem>>)
    } else {
    }
    %24 = arith.index_cast %12 : i32 to index
    %c0 = arith.constant 0 : index
    %c0_10 = arith.constant 0 : index
    %25 = vector.load %arg6[%24, %c0, %c0_10] : memref<2x96x128xf32, #tpu.memory_space<vmem>>, vector<1x96x128xf32>
    %26 = vector.shape_cast %25 : vector<1x96x128xf32> to vector<96x128xf32>
    %cst = arith.constant 0.000000e+00 : f32
    %27 = vector.broadcast %cst : f32 to vector<64x128xf32>
    %28 = vector.extract_strided_slice %26 {offsets = [5, 0], sizes = [64, 128], strides = [1, 1]} : vector<96x128xf32> to vector<64x128xf32>
    %c0_11 = arith.constant 0 : index
    %c0_12 = arith.constant 0 : index
    %c0_13 = arith.constant 0 : index
    %29 = vector.load %arg2[%c0_11, %c0_12, %c0_13] : memref<9x128x128xf32, #tpu.memory_space<vmem>>, vector<1x128x128xf32>
    %30 = vector.shape_cast %29 : vector<1x128x128xf32> to vector<128x128xf32>
    %cst_14 = arith.constant dense<0.000000e+00> : vector<64x128xf32>
    %31 = tpu.matmul %28, %30, %cst_14 {dimension_numbers = #tpu.dot_dimension_numbers<[1], [0], [0], [1], [0, 0, 1, 1], [], []>} : vector<64x128xf32>, vector<128x128xf32>, vector<64x128xf32> -> vector<64x128xf32>
    %32 = arith.addf %27, %31 : vector<64x128xf32>
    %33 = vector.extract_strided_slice %26 {offsets = [6, 0], sizes = [64, 128], strides = [1, 1]} : vector<96x128xf32> to vector<64x128xf32>
    %c1 = arith.constant 1 : index
    %c0_15 = arith.constant 0 : index
    %c0_16 = arith.constant 0 : index
    %34 = vector.load %arg2[%c1, %c0_15, %c0_16] : memref<9x128x128xf32, #tpu.memory_space<vmem>>, vector<1x128x128xf32>
    %35 = vector.shape_cast %34 : vector<1x128x128xf32> to vector<128x128xf32>
    %cst_17 = arith.constant dense<0.000000e+00> : vector<64x128xf32>
    %36 = tpu.matmul %33, %35, %cst_17 {dimension_numbers = #tpu.dot_dimension_numbers<[1], [0], [0], [1], [0, 0, 1, 1], [], []>} : vector<64x128xf32>, vector<128x128xf32>, vector<64x128xf32> -> vector<64x128xf32>
    %37 = arith.addf %32, %36 : vector<64x128xf32>
    %38 = vector.extract_strided_slice %26 {offsets = [7, 0], sizes = [64, 128], strides = [1, 1]} : vector<96x128xf32> to vector<64x128xf32>
    %c2 = arith.constant 2 : index
    %c0_18 = arith.constant 0 : index
    %c0_19 = arith.constant 0 : index
    %39 = vector.load %arg2[%c2, %c0_18, %c0_19] : memref<9x128x128xf32, #tpu.memory_space<vmem>>, vector<1x128x128xf32>
    %40 = vector.shape_cast %39 : vector<1x128x128xf32> to vector<128x128xf32>
    %cst_20 = arith.constant dense<0.000000e+00> : vector<64x128xf32>
    %41 = tpu.matmul %38, %40, %cst_20 {dimension_numbers = #tpu.dot_dimension_numbers<[1], [0], [0], [1], [0, 0, 1, 1], [], []>} : vector<64x128xf32>, vector<128x128xf32>, vector<64x128xf32> -> vector<64x128xf32>
    %42 = arith.addf %37, %41 : vector<64x128xf32>
    %43 = vector.extract_strided_slice %26 {offsets = [15, 0], sizes = [64, 128], strides = [1, 1]} : vector<96x128xf32> to vector<64x128xf32>
    %c3 = arith.constant 3 : index
    %c0_21 = arith.constant 0 : index
    %c0_22 = arith.constant 0 : index
    %44 = vector.load %arg2[%c3, %c0_21, %c0_22] : memref<9x128x128xf32, #tpu.memory_space<vmem>>, vector<1x128x128xf32>
    %45 = vector.shape_cast %44 : vector<1x128x128xf32> to vector<128x128xf32>
    %cst_23 = arith.constant dense<0.000000e+00> : vector<64x128xf32>
    %46 = tpu.matmul %43, %45, %cst_23 {dimension_numbers = #tpu.dot_dimension_numbers<[1], [0], [0], [1], [0, 0, 1, 1], [], []>} : vector<64x128xf32>, vector<128x128xf32>, vector<64x128xf32> -> vector<64x128xf32>
    %47 = arith.addf %42, %46 : vector<64x128xf32>
    %48 = vector.extract_strided_slice %26 {offsets = [16, 0], sizes = [64, 128], strides = [1, 1]} : vector<96x128xf32> to vector<64x128xf32>
    %c4 = arith.constant 4 : index
    %c0_24 = arith.constant 0 : index
    %c0_25 = arith.constant 0 : index
    %49 = vector.load %arg2[%c4, %c0_24, %c0_25] : memref<9x128x128xf32, #tpu.memory_space<vmem>>, vector<1x128x128xf32>
    %50 = vector.shape_cast %49 : vector<1x128x128xf32> to vector<128x128xf32>
    %cst_26 = arith.constant dense<0.000000e+00> : vector<64x128xf32>
    %51 = tpu.matmul %48, %50, %cst_26 {dimension_numbers = #tpu.dot_dimension_numbers<[1], [0], [0], [1], [0, 0, 1, 1], [], []>} : vector<64x128xf32>, vector<128x128xf32>, vector<64x128xf32> -> vector<64x128xf32>
    %52 = arith.addf %47, %51 : vector<64x128xf32>
    %53 = vector.extract_strided_slice %26 {offsets = [17, 0], sizes = [64, 128], strides = [1, 1]} : vector<96x128xf32> to vector<64x128xf32>
    %c5 = arith.constant 5 : index
    %c0_27 = arith.constant 0 : index
    %c0_28 = arith.constant 0 : index
    %54 = vector.load %arg2[%c5, %c0_27, %c0_28] : memref<9x128x128xf32, #tpu.memory_space<vmem>>, vector<1x128x128xf32>
    %55 = vector.shape_cast %54 : vector<1x128x128xf32> to vector<128x128xf32>
    %cst_29 = arith.constant dense<0.000000e+00> : vector<64x128xf32>
    %56 = tpu.matmul %53, %55, %cst_29 {dimension_numbers = #tpu.dot_dimension_numbers<[1], [0], [0], [1], [0, 0, 1, 1], [], []>} : vector<64x128xf32>, vector<128x128xf32>, vector<64x128xf32> -> vector<64x128xf32>
    %57 = arith.addf %52, %56 : vector<64x128xf32>
    %58 = vector.extract_strided_slice %26 {offsets = [25, 0], sizes = [64, 128], strides = [1, 1]} : vector<96x128xf32> to vector<64x128xf32>
    %c6 = arith.constant 6 : index
    %c0_30 = arith.constant 0 : index
    %c0_31 = arith.constant 0 : index
    %59 = vector.load %arg2[%c6, %c0_30, %c0_31] : memref<9x128x128xf32, #tpu.memory_space<vmem>>, vector<1x128x128xf32>
    %60 = vector.shape_cast %59 : vector<1x128x128xf32> to vector<128x128xf32>
    %cst_32 = arith.constant dense<0.000000e+00> : vector<64x128xf32>
    %61 = tpu.matmul %58, %60, %cst_32 {dimension_numbers = #tpu.dot_dimension_numbers<[1], [0], [0], [1], [0, 0, 1, 1], [], []>} : vector<64x128xf32>, vector<128x128xf32>, vector<64x128xf32> -> vector<64x128xf32>
    %62 = arith.addf %57, %61 : vector<64x128xf32>
    %63 = vector.extract_strided_slice %26 {offsets = [26, 0], sizes = [64, 128], strides = [1, 1]} : vector<96x128xf32> to vector<64x128xf32>
    %c7 = arith.constant 7 : index
    %c0_33 = arith.constant 0 : index
    %c0_34 = arith.constant 0 : index
    %64 = vector.load %arg2[%c7, %c0_33, %c0_34] : memref<9x128x128xf32, #tpu.memory_space<vmem>>, vector<1x128x128xf32>
    %65 = vector.shape_cast %64 : vector<1x128x128xf32> to vector<128x128xf32>
    %cst_35 = arith.constant dense<0.000000e+00> : vector<64x128xf32>
    %66 = tpu.matmul %63, %65, %cst_35 {dimension_numbers = #tpu.dot_dimension_numbers<[1], [0], [0], [1], [0, 0, 1, 1], [], []>} : vector<64x128xf32>, vector<128x128xf32>, vector<64x128xf32> -> vector<64x128xf32>
    %67 = arith.addf %62, %66 : vector<64x128xf32>
    %68 = vector.extract_strided_slice %26 {offsets = [27, 0], sizes = [64, 128], strides = [1, 1]} : vector<96x128xf32> to vector<64x128xf32>
    %c8 = arith.constant 8 : index
    %c0_36 = arith.constant 0 : index
    %c0_37 = arith.constant 0 : index
    %69 = vector.load %arg2[%c8, %c0_36, %c0_37] : memref<9x128x128xf32, #tpu.memory_space<vmem>>, vector<1x128x128xf32>
    %70 = vector.shape_cast %69 : vector<1x128x128xf32> to vector<128x128xf32>
    %cst_38 = arith.constant dense<0.000000e+00> : vector<64x128xf32>
    %71 = tpu.matmul %68, %70, %cst_38 {dimension_numbers = #tpu.dot_dimension_numbers<[1], [0], [0], [1], [0, 0, 1, 1], [], []>} : vector<64x128xf32>, vector<128x128xf32>, vector<64x128xf32> -> vector<64x128xf32>
    %72 = arith.addf %67, %71 : vector<64x128xf32>
    %c0_39 = arith.constant 0 : index
    %c0_40 = arith.constant 0 : index
    %73 = vector.load %arg1[%c0_39, %c0_40] : memref<64x1xf32, #tpu.memory_space<vmem>>, vector<64x1xf32>
    %cst_41 = arith.constant 5.000000e-01 : f32
    %74 = vector.broadcast %cst_41 : f32 to vector<64x1xf32>
    %75 = arith.cmpf ogt, %73, %74 : vector<64x1xf32>
    %cst_42 = arith.constant dense<0.000000e+00> : vector<1xf32>
    %76 = vector.multi_reduction <add>, %73, %cst_42 [0] : vector<64x1xf32> to vector<1xf32>
    %77 = vector.shape_cast %76 : vector<1xf32> to vector<1x1xf32>
    %cst_43 = arith.constant 1.000000e+00 : f32
    %78 = vector.broadcast %cst_43 : f32 to vector<1x1xf32>
    %79 = arith.maximumf %77, %78 : vector<1x1xf32>
    %c0_44 = arith.constant 0 : index
    %c0_45 = arith.constant 0 : index
    %80 = vector.load %arg4[%c0_44, %c0_45] : memref<64x128xf32, #tpu.memory_space<vmem>>, vector<64x128xf32>
    tpu.vector_store %arg4[%c0_44, %c0_45], %72 {strides = array<i32>} : memref<64x128xf32, #tpu.memory_space<vmem>>, vector<64x128xf32>,
    %cst_46 = arith.constant 0.000000e+00 : f32
    %81 = vector.shape_cast %75 : vector<64x1xi1> to vector<64x1xi1>
    %82 = vector.broadcast %81 : vector<64x1xi1> to vector<64x128xi1>
    %83 = vector.broadcast %cst_46 : f32 to vector<64x128xf32>
    %84 = arith.select %82, %72, %83 : vector<64x128xi1>, vector<64x128xf32>
    %cst_47 = arith.constant dense<0.000000e+00> : vector<128xf32>
    %85 = vector.multi_reduction <add>, %84, %cst_47 [0] : vector<64x128xf32> to vector<128xf32>
    %86 = vector.shape_cast %85 : vector<128xf32> to vector<1x128xf32>
    %87 = vector.broadcast %79 : vector<1x1xf32> to vector<1x128xf32>
    %88 = arith.divf %86, %87 : vector<1x128xf32>
    %89 = vector.broadcast %88 : vector<1x128xf32> to vector<64x128xf32>
    %90 = arith.subf %72, %89 : vector<64x128xf32>
    %cst_48 = arith.constant 0.000000e+00 : f32
    %91 = vector.shape_cast %75 : vector<64x1xi1> to vector<64x1xi1>
    %92 = vector.broadcast %91 : vector<64x1xi1> to vector<64x128xi1>
    %93 = vector.broadcast %cst_48 : f32 to vector<64x128xf32>
    %94 = arith.select %92, %90, %93 : vector<64x128xi1>, vector<64x128xf32>
    %c0_49 = arith.constant 0 : index
    %c0_50 = arith.constant 0 : index
    %95 = vector.load %arg5[%c0_49, %c0_50] : memref<8x128xf32, #tpu.memory_space<vmem>>, vector<1x128xf32>
    tpu.vector_store %arg5[%c0_49, %c0_50], %86 {strides = array<i32>} : memref<8x128xf32, #tpu.memory_space<vmem>>, vector<1x128xf32>,
    %96 = arith.mulf %94, %94 : vector<64x128xf32>
    %cst_51 = arith.constant dense<0.000000e+00> : vector<128xf32>
    %97 = vector.multi_reduction <add>, %96, %cst_51 [0] : vector<64x128xf32> to vector<128xf32>
    %98 = vector.shape_cast %97 : vector<128xf32> to vector<1x128xf32>
    %c1_52 = arith.constant 1 : index
    %c0_53 = arith.constant 0 : index
    %99 = vector.load %arg5[%c1_52, %c0_53] : memref<8x128xf32, #tpu.memory_space<vmem>>, vector<1x128xf32>
    tpu.vector_store %arg5[%c1_52, %c0_53], %98 {strides = array<i32>} : memref<8x128xf32, #tpu.memory_space<vmem>>, vector<1x128xf32>,
    return
  }
  func.func @transform_0(%arg0: i32) -> (i32, i32) {
    %c0_i32 = arith.constant 0 : i32
    %c0_i32_0 = arith.constant 0 : i32
    return %arg0, %c0_i32 : i32, i32
  }
  func.func @transform_1(%arg0: i32) -> (i32, i32, i32) {
    %c0_i32 = arith.constant 0 : i32
    %c0_i32_0 = arith.constant 0 : i32
    %c0_i32_1 = arith.constant 0 : i32
    %c0_i32_2 = arith.constant 0 : i32
    return %c0_i32, %c0_i32_0, %c0_i32_1 : i32, i32, i32
  }
  func.func @transform_3(%arg0: i32) -> (i32, i32) {
    %c0_i32 = arith.constant 0 : i32
    %c0_i32_0 = arith.constant 0 : i32
    return %arg0, %c0_i32 : i32, i32
  }
  func.func @transform_4(%arg0: i32) -> (i32, i32) {
    %c0_i32 = arith.constant 0 : i32
    %c0_i32_0 = arith.constant 0 : i32
    return %arg0, %c0_i32 : i32, i32
  }
}

module attributes {stable_mosaic.version = 11 : i64} {
  func.func @_bn_add_relu_kernel(%arg0: i32, %arg1: memref<128x128xf32, #tpu.memory_space<vmem>>, %arg2: memref<128x128xf32, #tpu.memory_space<vmem>>, %arg3: memref<128x1xf32, #tpu.memory_space<vmem>>, %arg4: memref<1x128xf32, #tpu.memory_space<vmem>>, %arg5: memref<1x128xf32, #tpu.memory_space<vmem>>, %arg6: memref<128x128xf32, #tpu.memory_space<vmem>>) attributes {dimension_semantics = [#tpu.dimension_semantics<parallel>], iteration_bounds = array<i64: 2>, scalar_prefetch = 0 : i64, scratch_operands = 0 : i64, tpu.core_type = #tpu.core_type<tc>, window_params = [{transform_indices = @transform_0, window_bounds = array<i64: 128, 128>}, {transform_indices = @transform_1, window_bounds = array<i64: 128, 128>}, {transform_indices = @transform_2, window_bounds = array<i64: 128, 1>}, {pipeline_mode = #tpu.pipeline_mode<synchronous>, transform_indices = @transform_3, window_bounds = array<i64: 1, 128>}, {pipeline_mode = #tpu.pipeline_mode<synchronous>, transform_indices = @transform_4, window_bounds = array<i64: 1, 128>}, {transform_indices = @transform_5, window_bounds = array<i64: 128, 128>}]} {
    %c0 = arith.constant 0 : index
    %c0_0 = arith.constant 0 : index
    %0 = vector.load %arg1[%c0, %c0_0] : memref<128x128xf32, #tpu.memory_space<vmem>>, vector<128x128xf32>
    %c0_1 = arith.constant 0 : index
    %c0_2 = arith.constant 0 : index
    %1 = vector.load %arg4[%c0_1, %c0_2] : memref<1x128xf32, #tpu.memory_space<vmem>>, vector<1x128xf32>
    %2 = vector.broadcast %1 : vector<1x128xf32> to vector<128x128xf32>
    %3 = arith.mulf %0, %2 : vector<128x128xf32>
    %c0_3 = arith.constant 0 : index
    %c0_4 = arith.constant 0 : index
    %4 = vector.load %arg5[%c0_3, %c0_4] : memref<1x128xf32, #tpu.memory_space<vmem>>, vector<1x128xf32>
    %5 = vector.broadcast %4 : vector<1x128xf32> to vector<128x128xf32>
    %6 = arith.addf %3, %5 : vector<128x128xf32>
    %c0_5 = arith.constant 0 : index
    %c0_6 = arith.constant 0 : index
    %7 = vector.load %arg2[%c0_5, %c0_6] : memref<128x128xf32, #tpu.memory_space<vmem>>, vector<128x128xf32>
    %8 = arith.addf %6, %7 : vector<128x128xf32>
    %c0_7 = arith.constant 0 : index
    %c0_8 = arith.constant 0 : index
    %9 = vector.load %arg3[%c0_7, %c0_8] : memref<128x1xf32, #tpu.memory_space<vmem>>, vector<128x1xf32>
    %cst = arith.constant 5.000000e-01 : f32
    %10 = vector.broadcast %cst : f32 to vector<128x1xf32>
    %11 = arith.cmpf ogt, %9, %10 : vector<128x1xf32>
    %cst_9 = arith.constant 0.000000e+00 : f32
    %12 = vector.broadcast %cst_9 : f32 to vector<128x128xf32>
    %13 = arith.maximumf %8, %12 : vector<128x128xf32>
    %cst_10 = arith.constant 0.000000e+00 : f32
    %14 = vector.shape_cast %11 : vector<128x1xi1> to vector<128x1xi1>
    %15 = vector.broadcast %14 : vector<128x1xi1> to vector<128x128xi1>
    %16 = vector.broadcast %cst_10 : f32 to vector<128x128xf32>
    %17 = arith.select %15, %13, %16 : vector<128x128xi1>, vector<128x128xf32>
    %c0_11 = arith.constant 0 : index
    %c0_12 = arith.constant 0 : index
    %18 = vector.load %arg6[%c0_11, %c0_12] : memref<128x128xf32, #tpu.memory_space<vmem>>, vector<128x128xf32>
    tpu.vector_store %arg6[%c0_11, %c0_12], %17 {strides = array<i32>} : memref<128x128xf32, #tpu.memory_space<vmem>>, vector<128x128xf32>,
    return
  }
  func.func @transform_0(%arg0: i32) -> (i32, i32) {
    %c0_i32 = arith.constant 0 : i32
    %c0_i32_0 = arith.constant 0 : i32
    return %arg0, %c0_i32 : i32, i32
  }
  func.func @transform_1(%arg0: i32) -> (i32, i32) {
    %c0_i32 = arith.constant 0 : i32
    %c0_i32_0 = arith.constant 0 : i32
    return %arg0, %c0_i32 : i32, i32
  }
  func.func @transform_2(%arg0: i32) -> (i32, i32) {
    %c0_i32 = arith.constant 0 : i32
    %c0_i32_0 = arith.constant 0 : i32
    return %arg0, %c0_i32 : i32, i32
  }
  func.func @transform_3(%arg0: i32) -> (i32, i32) {
    %c0_i32 = arith.constant 0 : i32
    %c0_i32_0 = arith.constant 0 : i32
    %c0_i32_1 = arith.constant 0 : i32
    return %c0_i32, %c0_i32_0 : i32, i32
  }
  func.func @transform_4(%arg0: i32) -> (i32, i32) {
    %c0_i32 = arith.constant 0 : i32
    %c0_i32_0 = arith.constant 0 : i32
    %c0_i32_1 = arith.constant 0 : i32
    return %c0_i32, %c0_i32_0 : i32, i32
  }
  func.func @transform_5(%arg0: i32) -> (i32, i32) {
    %c0_i32 = arith.constant 0 : i32
    %c0_i32_0 = arith.constant 0 : i32
    return %arg0, %c0_i32 : i32, i32
  }
}

</mosaic_0001>

<llo_original>
// kernel: squeeze.13
$region0: #{squeeze.13}
  %s0 = inlined_call_operand.vmem [shape: f32[256], index: 0, kind: input, shape index: {}]
  %s1 = inlined_call_operand.vmem [shape: f32[4,64], index: 1, kind: output, shape index: {}]
  $region1: #{squeeze.13} parent=0
    #allocation0 [shape = 'u8[4096]{0}', space=vmem, size = 0x1000, scoped, tag = 'scoped mem for output reshape']
    #allocation1 [shape = 'u8[4096]{0}', space=vmem, size = 0x1000, scoped, tag = 'scoped mem for input reshape']
    %s3 = sshll.u32 1, 2
    %s4 = ssub.s32 %s3, 1
    %v5 = vld [vmem:[%s0] sm:%s4]
    %6 = vst [vmem:[#allocation1] sm:%s4] %v5
    %v7 = vld [vmem:[#allocation1] sm:$0x3]
    %vm8 = vcmask 523264
    %9 = vst.msk [vmem:[#allocation0] ss:$2 sm:$0x3] %vm8, %v7
    %v10 = vld [vmem:[#allocation1] sm:$0x3]
    %11 = vrot.lane.b32.xlu0 %v10, 64
    %v12 = vpop.permute.xlu0 %11
    %vm13 = vcmask 523264
    %s14 = scalar_lea.vmem [#allocation0], 1
    %15 = vst.msk [vmem:[%s14] ss:$2 sm:$0x3] %vm13, %v12
    %s17 = sshll.u32 1, 4
    %s18 = ssub.s32 %s17, 1
    %v20 = vld [vmem:[#allocation0] sm:%s18]
    %s21 = sshll.u32 1, 4
    %s22 = ssub.s32 %s21, 1
    %23 = vst [vmem:[%s1] sm:%s22] %v20

// kernel: basic_block_r1_forward.5
$region0: #{basic_block_r1_forward.5}
  #allocation0 [shape = 'u32[]', space=smem, size = 0x4, offset = 0x4, fixed_abs, tag = 'smem constant byte address 0x4 - core index']
  #allocation1 [shape = 'u32[144,128]{1,0:T(1,128)}', space=vmem, size = 0x12000, scoped, tag = 'internal scratch']
  %s0 = inlined_call_operand.vmem [shape: f32[128,128], index: 0, kind: input, shape index: {}, may-alias: {0,7}]
  %s1 = inlined_call_operand.vmem [shape: f32[128,128], index: 1, kind: input, shape index: {}]
  %s2 = inlined_call_operand.vmem [shape: f32[128,1], index: 2, kind: input, shape index: {}]
  %s3 = inlined_call_operand.vmem [shape: f32[1,128], index: 3, kind: input, shape index: {}]
  %s4 = inlined_call_operand.vmem [shape: f32[1,128], index: 4, kind: input, shape index: {}]
  %s5 = inlined_call_operand.vmem [shape: f32[1,128], index: 5, kind: input, shape index: {}]
  %s6 = inlined_call_operand.vmem [shape: f32[1,128], index: 6, kind: input, shape index: {}]
  %s7 = inlined_call_operand.vmem [shape: f32[128,128], index: 7, kind: output, shape index: {}, may-alias: {0,7}]
  %s8 = sld [smem:[#allocation0]]
  $region61: #{basic_block_r1_forward.5} parent=0
    _
  %s10 = ssub.s32 1, %s8
  %s11 = scalar_select 0, %s10, %s8
  loop: start=0, step=1, limit=4
  $region2: #{basic_block_r1_forward.5} parent=0 // loop_pre_header
    _
  $region3: #{basic_block_r1_forward.5} parent=0 // loop_header
    %s13 = sphi 0, %s17
    %p14 = scmp.ge.s32.totalorder %s13, 4
    %s23 = sphi 0, %s25
    %s26 = sphi 0, %s23
    %s27 = sphi 0, %s26
    %s43 = sphi 0, %s27
    %s49 = sphi 0, %s51
    %s52 = sphi 0, %s49
    %s53 = sphi 0, %s52
    %s69 = sphi 0, %s53
    %s75 = sphi 0, %s77
    %s78 = sphi 0, %s75
    %s79 = sphi 0, %s78
    %s95 = sphi 0, %s79
    %s99 = sphi 0, %s99
    %s101 = sphi 0, %s99
    %s102 = sphi 0, %s101
    %s116 = sphi 0, %s102
    %s120 = sphi 0, %s120
    %s122 = sphi 0, %s120
    %s123 = sphi 0, %s122
    %s137 = sphi 0, %s123
    %s141 = sphi 0, %s141
    %s143 = sphi 0, %s141
    %s144 = sphi 0, %s143
    %s158 = sphi 0, %s144
    %s162 = sphi 0, %s162
    %s164 = sphi 0, %s162
    %s165 = sphi 0, %s164
    %s179 = sphi 0, %s165
    %s185 = sphi 0, %s187
    %s188 = sphi 0, %s185
    %s189 = sphi 0, %s188
    %s205 = sphi 0, %s189
  $region4: #{basic_block_r1_forward.5} parent=0 // loop_header_branch
    %16 = sbr.rel (%p14) target = $region8
  $region5: #{basic_block_r1_forward.5} parent=0 // loop_body
    %s18 = ssub.s32 %s13, 1
    %s19 = ssub.s32 %s13, 2
    %s20 = sadd.s32 %s13, 1
    %s21 = ssub.s32 %s13, %s20
    %p22 = scmp.eq.s32.totalorder %s21, 0
    %s24 = sadd.s32 %s23, 1
    %s25 = scalar_select %p22, %s23, %s24
    %p28 = pneg %p22
    %p29 = scmp.eq.s32.totalorder %s13, 1
    %p30 = por %p28, %p29
    %p31 = scmp.ne.s32.totalorder %s23, %s26
    %p32 = scmp.eq.s32.totalorder %s13, 0
    %p33 = por %p31, %p32
    %p34 = scmp.ne.s32.totalorder %s23, %s26
    %p35 = scmp.eq.s32.totalorder %s18, 1
    %p36 = por %p34, %p35
    %p37 = scmp.ne.s32.totalorder %s26, %s27
    %p38 = scmp.eq.s32.totalorder %s18, 0
    %p39 = por %p37, %p38
    %p40 = scmp.ne.s32.totalorder %s26, %s27
    %p41 = scmp.eq.s32.totalorder %s19, 1
    %p42 = por %p40, %p41
    %p44 = scmp.ne.s32.totalorder %s27, %s43
    %p45 = scmp.eq.s32.totalorder %s19, 0
    %p46 = por %p44, %p45
    %s47 = ssub.s32 %s13, %s20
    %p48 = scmp.eq.s32.totalorder %s47, 0
    %s50 = sadd.s32 %s49, 1
    %s51 = scalar_select %p48, %s49, %s50
    %p54 = pneg %p48
    %p55 = scmp.eq.s32.totalorder %s13, 1
    %p56 = por %p54, %p55
    %p57 = scmp.ne.s32.totalorder %s49, %s52
    %p58 = scmp.eq.s32.totalorder %s13, 0
    %p59 = por %p57, %p58
    %p60 = scmp.ne.s32.totalorder %s49, %s52
    %p61 = scmp.eq.s32.totalorder %s18, 1
    %p62 = por %p60, %p61
    %p63 = scmp.ne.s32.totalorder %s52, %s53
    %p64 = scmp.eq.s32.totalorder %s18, 0
    %p65 = por %p63, %p64
    %p66 = scmp.ne.s32.totalorder %s52, %s53
    %p67 = scmp.eq.s32.totalorder %s19, 1
    %p68 = por %p66, %p67
    %p70 = scmp.ne.s32.totalorder %s53, %s69
    %p71 = scmp.eq.s32.totalorder %s19, 0
    %p72 = por %p70, %p71
    %s73 = ssub.s32 %s13, %s20
    %p74 = scmp.eq.s32.totalorder %s73, 0
    %s76 = sadd.s32 %s75, 1
    %s77 = scalar_select %p74, %s75, %s76
    %p80 = pneg %p74
    %p81 = scmp.eq.s32.totalorder %s13, 1
    %p82 = por %p80, %p81
    %p83 = scmp.ne.s32.totalorder %s75, %s78
    %p84 = scmp.eq.s32.totalorder %s13, 0
    %p85 = por %p83, %p84
    %p86 = scmp.ne.s32.totalorder %s75, %s78
    %p87 = scmp.eq.s32.totalorder %s18, 1
    %p88 = por %p86, %p87
    %p89 = scmp.ne.s32.totalorder %s78, %s79
    %p90 = scmp.eq.s32.totalorder %s18, 0
    %p91 = por %p89, %p90
    %p92 = scmp.ne.s32.totalorder %s78, %s79
    %p93 = scmp.eq.s32.totalorder %s19, 1
    %p94 = por %p92, %p93
    %p96 = scmp.ne.s32.totalorder %s79, %s95
    %p97 = scmp.eq.s32.totalorder %s19, 0
    %p98 = por %p96, %p97
    %s100 = sadd.s32 %s99, 1
    %p103 = scmp.eq.s32.totalorder %s13, 1
    %p104 = scmp.ne.s32.totalorder %s99, %s101
    %p105 = scmp.eq.s32.totalorder %s13, 0
    %p106 = por %p104, %p105
    %p107 = scmp.ne.s32.totalorder %s99, %s101
    %p108 = scmp.eq.s32.totalorder %s18, 1
    %p109 = por %p107, %p108
    %p110 = scmp.ne.s32.totalorder %s101, %s102
    %p111 = scmp.eq.s32.totalorder %s18, 0
    %p112 = por %p110, %p111
    %p113 = scmp.ne.s32.totalorder %s101, %s102
    %p114 = scmp.eq.s32.totalorder %s19, 1
    %p115 = por %p113, %p114
    %p117 = scmp.ne.s32.totalorder %s102, %s116
    %p118 = scmp.eq.s32.totalorder %s19, 0
    %p119 = por %p117, %p118
    %s121 = sadd.s32 %s120, 1
    %p124 = scmp.eq.s32.totalorder %s13, 1
    %p125 = scmp.ne.s32.totalorder %s120, %s122
    %p126 = scmp.eq.s32.totalorder %s13, 0
    %p127 = por %p125, %p126
    %p128 = scmp.ne.s32.totalorder %s120, %s122
    %p129 = scmp.eq.s32.totalorder %s18, 1
    %p130 = por %p128, %p129
    %p131 = scmp.ne.s32.totalorder %s122, %s123
    %p132 = scmp.eq.s32.totalorder %s18, 0
    %p133 = por %p131, %p132
    %p134 = scmp.ne.s32.totalorder %s122, %s123
    %p135 = scmp.eq.s32.totalorder %s19, 1
    %p136 = por %p134, %p135
    %p138 = scmp.ne.s32.totalorder %s123, %s137
    %p139 = scmp.eq.s32.totalorder %s19, 0
    %p140 = por %p138, %p139
    %s142 = sadd.s32 %s141, 1
    %p145 = scmp.eq.s32.totalorder %s13, 1
    %p146 = scmp.ne.s32.totalorder %s141, %s143
    %p147 = scmp.eq.s32.totalorder %s13, 0
    %p148 = por %p146, %p147
    %p149 = scmp.ne.s32.totalorder %s141, %s143
    %p150 = scmp.eq.s32.totalorder %s18, 1
    %p151 = por %p149, %p150
    %p152 = scmp.ne.s32.totalorder %s143, %s144
    %p153 = scmp.eq.s32.totalorder %s18, 0
    %p154 = por %p152, %p153
    %p155 = scmp.ne.s32.totalorder %s143, %s144
    %p156 = scmp.eq.s32.totalorder %s19, 1
    %p157 = por %p155, %p156
    %p159 = scmp.ne.s32.totalorder %s144, %s158
    %p160 = scmp.eq.s32.totalorder %s19, 0
    %p161 = por %p159, %p160
    %s163 = sadd.s32 %s162, 1
    %p166 = scmp.eq.s32.totalorder %s13, 1
    %p167 = scmp.ne.s32.totalorder %s162, %s164
    %p168 = scmp.eq.s32.totalorder %s13, 0
    %p169 = por %p167, %p168
    %p170 = scmp.ne.s32.totalorder %s162, %s164
    %p171 = scmp.eq.s32.totalorder %s18, 1
    %p172 = por %p170, %p171
    %p173 = scmp.ne.s32.totalorder %s164, %s165
    %p174 = scmp.eq.s32.totalorder %s18, 0
    %p175 = por %p173, %p174
    %p176 = scmp.ne.s32.totalorder %s164, %s165
    %p177 = scmp.eq.s32.totalorder %s19, 1
    %p178 = por %p176, %p177
    %p180 = scmp.ne.s32.totalorder %s165, %s179
    %p181 = scmp.eq.s32.totalorder %s19, 0
    %p182 = por %p180, %p181
    %s183 = ssub.s32 %s13, %s20
    %p184 = scmp.eq.s32.totalorder %s183, 0
    %s186 = sadd.s32 %s185, 1
    %s187 = scalar_select %p184, %s185, %s186
    %p190 = pneg %p184
    %p191 = scmp.eq.s32.totalorder %s13, 1
    %p192 = por %p190, %p191
    %p193 = scmp.ne.s32.totalorder %s185, %s188
    %p194 = scmp.eq.s32.totalorder %s13, 0
    %p195 = por %p193, %p194
    %p196 = scmp.ne.s32.totalorder %s185, %s188
    %p197 = scmp.eq.s32.totalorder %s18, 1
    %p198 = por %p196, %p197
    %p199 = scmp.ne.s32.totalorder %s188, %s189
    %p200 = scmp.eq.s32.totalorder %s18, 0
    %p201 = por %p199, %p200
    %p202 = scmp.ne.s32.totalorder %s188, %s189
    %p203 = scmp.eq.s32.totalorder %s19, 1
    %p204 = por %p202, %p203
    %p206 = scmp.ne.s32.totalorder %s189, %s205
    %p207 = scmp.eq.s32.totalorder %s19, 0
    %p208 = por %p206, %p207
    %p209 = scmp.le.s32.totalorder 1, %s13
    %p210 = scmp.lt.s32.totalorder %s13, 3
    %p211 = pnand %p209, %p210
    %p212 = pneg %p211
    // Predicated region
    $region9: #{basic_block_r1_forward.5} parent=5 // pred_check
      _
    $region10: #{basic_block_r1_forward.5} parent=5 // pred_check_branch
      %214 = sbr.rel (%p211) target = $region12
    $region11: #{basic_block_r1_forward.5} parent=5 // pred_region
      %s215 = ssub.s32 %s13, 1
      // Predicated region
      $region13: #{basic_block_r1_forward.5} parent=11 // pred_check
        %p216 = pneg %p112
      $region14: #{basic_block_r1_forward.5} parent=11 // pred_check_branch
        %218 = sbr.rel (%p216) target = $region16
      $region15: #{basic_block_r1_forward.5} parent=11 // pred_region
        _
      $region16: #{basic_block_r1_forward.5} parent=11 // pred_fallthru
        _
      // Predicated region
      $region17: #{basic_block_r1_forward.5} parent=11 // pred_check
        %p219 = pneg %p133
      $region18: #{basic_block_r1_forward.5} parent=11 // pred_check_branch
        %221 = sbr.rel (%p219) target = $region20
      $region19: #{basic_block_r1_forward.5} parent=11 // pred_region
        _
      $region20: #{basic_block_r1_forward.5} parent=11 // pred_fallthru
        _
      // Predicated region
      $region21: #{basic_block_r1_forward.5} parent=11 // pred_check
        %p222 = pneg %p154
      $region22: #{basic_block_r1_forward.5} parent=11 // pred_check_branch
        %224 = sbr.rel (%p222) target = $region24
      $region23: #{basic_block_r1_forward.5} parent=11 // pred_region
        _
      $region24: #{basic_block_r1_forward.5} parent=11 // pred_fallthru
        _
      // Predicated region
      $region25: #{basic_block_r1_forward.5} parent=11 // pred_check
        %p225 = pneg %p175
      $region26: #{basic_block_r1_forward.5} parent=11 // pred_check_branch
        %227 = sbr.rel (%p225) target = $region28
      $region27: #{basic_block_r1_forward.5} parent=11 // pred_region
        _
      $region28: #{basic_block_r1_forward.5} parent=11 // pred_fallthru
        _
    $region12: #{basic_block_r1_forward.5} parent=5 // pred_fallthru
      _
    %p228 = scmp.lt.s32.totalorder %s13, 2
    // Predicated region
    $region29: #{basic_block_r1_forward.5} parent=5 // pred_check
      %p229 = pneg %p228
    $region30: #{basic_block_r1_forward.5} parent=5 // pred_check_branch
      %231 = sbr.rel (%p229) target = $region32
    $region31: #{basic_block_r1_forward.5} parent=5 // pred_region
      // Predicated region
      $region33: #{basic_block_r1_forward.5} parent=31 // pred_check
        %p232 = pneg %p33
      $region34: #{basic_block_r1_forward.5} parent=31 // pred_check_branch
        %234 = sbr.rel (%p232) target = $region36
      $region35: #{basic_block_r1_forward.5} parent=31 // pred_region
        %s235 = smul.u32 8, %s13
        %p236 = scmp.lt.s32.totalorder %s235, 15
        %s237 = scalar_select %p236, %s235, 15
        %s238 = smul.addr %s237, 8
        %s239 = scalar_lea.vmem %s0, %s238
        %s240 = smul.u32 8, %s13
      $region36: #{basic_block_r1_forward.5} parent=31 // pred_fallthru
        _
      // Predicated region
      $region37: #{basic_block_r1_forward.5} parent=31 // pred_check
        %p241 = pneg %p59
      $region38: #{basic_block_r1_forward.5} parent=31 // pred_check_branch
        %243 = sbr.rel (%p241) target = $region40
      $region39: #{basic_block_r1_forward.5} parent=31 // pred_region
        %s244 = smul.u32 8, %s13
        %p245 = scmp.lt.s32.totalorder %s244, 15
        %s246 = scalar_select %p245, %s244, 15
        %s247 = smul.addr %s246, 8
        %s248 = scalar_lea.vmem %s1, %s247
        %s249 = smul.u32 8, %s13
      $region40: #{basic_block_r1_forward.5} parent=31 // pred_fallthru
        _
      // Predicated region
      $region41: #{basic_block_r1_forward.5} parent=31 // pred_check
        %p250 = pneg %p85
      $region42: #{basic_block_r1_forward.5} parent=31 // pred_check_branch
        %252 = sbr.rel (%p250) target = $region44
      $region43: #{basic_block_r1_forward.5} parent=31 // pred_region
        %s253 = smul.u32 8, %s13
        %p254 = scmp.lt.s32.totalorder %s253, 15
        %s255 = scalar_select %p254, %s253, 15
        %s256 = smul.addr %s255, 8
        %s257 = scalar_lea.vmem %s2, %s256
        %s258 = smul.u32 8, %s13
      $region44: #{basic_block_r1_forward.5} parent=31 // pred_fallthru
        _
    $region32: #{basic_block_r1_forward.5} parent=5 // pred_fallthru
      _
    %p259 = scmp.le.s32.totalorder 1, %s13
    %p260 = scmp.lt.s32.totalorder %s13, 3
    %p261 = pnand %p259, %p260
    %p262 = pneg %p261
    // Predicated region
    $region45: #{basic_block_r1_forward.5} parent=5 // pred_check
      _
    $region46: #{basic_block_r1_forward.5} parent=5 // pred_check_branch
      %264 = sbr.rel (%p261) target = $region48
    $region47: #{basic_block_r1_forward.5} parent=5 // pred_region
      %s265 = ssub.s32 %s13, 1
      %s266 = smul.u32 8, %s18
      %p267 = scmp.lt.s32.totalorder %s266, 15
      %s268 = scalar_select %p267, %s266, 15
      %s269 = smul.addr %s268, 8
      %s270 = scalar_lea.vmem %s0, %s269
      %p271 = pneg %p39
      %p272 = pneg %p36
      %s273 = smul.u32 8, %s18
      %p274 = scmp.lt.s32.totalorder %s273, 15
      %s275 = scalar_select %p274, %s273, 15
      %s276 = smul.addr %s275, 8
      %s277 = scalar_lea.vmem %s1, %s276
      %p278 = pneg %p65
      %p279 = pneg %p62
      %s280 = smul.u32 8, %s18
      %p281 = scmp.lt.s32.totalorder %s280, 15
      %s282 = scalar_select %p281, %s280, 15
      %s283 = smul.addr %s282, 8
      %s284 = scalar_lea.vmem %s2, %s283
      %p285 = pneg %p91
      %p286 = pneg %p88
      %p287 = pneg %p112
      %p288 = pneg %p109
      %p289 = pneg %p133
      %p290 = pneg %p130
      %p291 = pneg %p154
      %p292 = pneg %p151
      %p293 = pneg %p175
      %p294 = pneg %p172
      %p295 = pneg %p201
      %p296 = pneg %p198
      %s297 = smul.u32 8, %s18
      %p298 = scmp.lt.s32.totalorder %s297, 15
      %s299 = scalar_select %p298, %s297, 15
      %s300 = smul.addr %s299, 8
      %s301 = scalar_lea.vmem %s7, %s300
      %s302 = smul.u32 8, %s18
      %p303 = scmp.lt.s32.totalorder %s302, 15
      %s304 = scalar_select %p303, %s302, 15
      %s305 = smul.addr %s304, 8
      %s306 = scalar_lea.vmem %s0, %s305
      %s307 = smul.u32 8, %s18
      %s308 = smul.u32 8, %s18
      %p309 = scmp.lt.s32.totalorder %s308, 15
      %s310 = scalar_select %p309, %s308, 15
      %s311 = smul.addr %s310, 8
      %s312 = scalar_lea.vmem %s1, %s311
      %s313 = smul.u32 8, %s18
      %s314 = smul.u32 8, %s18
      %p315 = scmp.lt.s32.totalorder %s314, 15
      %s316 = scalar_select %p315, %s314, 15
      %s317 = smul.addr %s316, 8
      %s318 = scalar_lea.vmem %s2, %s317
      %s319 = smul.u32 8, %s18
      %s320 = smul.u32 8, %s18
      %p321 = scmp.lt.s32.totalorder %s320, 15
      %s322 = scalar_select %p321, %s320, 15
      %s323 = smul.addr %s322, 8
      %s324 = scalar_lea.vmem %s7, %s323
      %s325 = smul.u32 8, %s18
      %v326 = vld [vmem:[%s306] sm:$0xff]
      %v327 = vld [vmem:[%s306 + $0x8] sm:$0xff]
      %v328 = vld [vmem:[%s306 + $0x10] sm:$0xff]
      %v329 = vld [vmem:[%s306 + $0x18] sm:$0xff]
      %v330 = vld [vmem:[%s306 + $0x20] sm:$0xff]
      %v331 = vld [vmem:[%s306 + $0x28] sm:$0xff]
      %v332 = vld [vmem:[%s306 + $0x30] sm:$0xff]
      %v333 = vld [vmem:[%s306 + $0x38] sm:$0xff]
      %v334 = vld [vmem:[%s3] sm:$0x1]
      %v336 = vlaneseq
      %v337 = vshrl.u32 %v336, 7
      %v338 = vsub.s32 0, %v337
      %v339 = vrot.slane %v334, %v338
      %v341 = vmul.f32 %v326, %v339
      %v342 = vmul.f32 %v327, %v339
      %v343 = vmul.f32 %v328, %v339
      %v344 = vmul.f32 %v329, %v339
      %v345 = vmul.f32 %v330, %v339
      %v346 = vmul.f32 %v331, %v339
      %v347 = vmul.f32 %v332, %v339
      %v348 = vmul.f32 %v333, %v339
      %v349 = vld [vmem:[%s4] sm:$0x1]
      %v351 = vlaneseq
      %v352 = vshrl.u32 %v351, 7
      %v353 = vsub.s32 0, %v352
      %v354 = vrot.slane %v349, %v353
      %v356 = vadd.f32 %v341, %v354
      %v357 = vadd.f32 %v342, %v354
      %v358 = vadd.f32 %v343, %v354
      %v359 = vadd.f32 %v344, %v354
      %v360 = vadd.f32 %v345, %v354
      %v361 = vadd.f32 %v346, %v354
      %v362 = vadd.f32 %v347, %v354
      %v363 = vadd.f32 %v348, %v354
      %v364 = vld [vmem:[%s312] sm:$0xff]
      %v365 = vld [vmem:[%s312 + $0x8] sm:$0xff]
      %v366 = vld [vmem:[%s312 + $0x10] sm:$0xff]
      %v367 = vld [vmem:[%s312 + $0x18] sm:$0xff]
      %v368 = vld [vmem:[%s312 + $0x20] sm:$0xff]
      %v369 = vld [vmem:[%s312 + $0x28] sm:$0xff]
      %v370 = vld [vmem:[%s312 + $0x30] sm:$0xff]
      %v371 = vld [vmem:[%s312 + $0x38] sm:$0xff]
      %v372 = vld [vmem:[%s5] sm:$0x1]
      %v374 = vlaneseq
      %v375 = vshrl.u32 %v374, 7
      %v376 = vsub.s32 0, %v375
      %v377 = vrot.slane %v372, %v376
      %v379 = vmul.f32 %v364, %v377
      %v380 = vmul.f32 %v365, %v377
      %v381 = vmul.f32 %v366, %v377
      %v382 = vmul.f32 %v367, %v377
      %v383 = vmul.f32 %v368, %v377
      %v384 = vmul.f32 %v369, %v377
      %v385 = vmul.f32 %v370, %v377
      %v386 = vmul.f32 %v371, %v377
      %v387 = vld [vmem:[%s6] sm:$0x1]
      %v389 = vlaneseq
      %v390 = vshrl.u32 %v389, 7
      %v391 = vsub.s32 0, %v390
      %v392 = vrot.slane %v387, %v391
      %v394 = vadd.f32 %v379, %v392
      %v395 = vadd.f32 %v380, %v392
      %v396 = vadd.f32 %v381, %v392
      %v397 = vadd.f32 %v382, %v392
      %v398 = vadd.f32 %v383, %v392
      %v399 = vadd.f32 %v384, %v392
      %v400 = vadd.f32 %v385, %v392
      %v401 = vadd.f32 %v386, %v392
      %v402 = vld [vmem:[%s318] sm:$0xff]
      %v403 = vld [vmem:[%s318 + $0x8] sm:$0xff]
      %v404 = vld [vmem:[%s318 + $0x10] sm:$0xff]
      %v405 = vld [vmem:[%s318 + $0x18] sm:$0xff]
      %v406 = vld [vmem:[%s318 + $0x20] sm:$0xff]
      %v407 = vld [vmem:[%s318 + $0x28] sm:$0xff]
      %v408 = vld [vmem:[%s318 + $0x30] sm:$0xff]
      %v409 = vld [vmem:[%s318 + $0x38] sm:$0xff]
      %vm410 = vcmp.gt.f32.partialorder %v402, 0.5
      %vm411 = vcmp.gt.f32.partialorder %v403, 0.5
      %vm412 = vcmp.gt.f32.partialorder %v404, 0.5
      %vm413 = vcmp.gt.f32.partialorder %v405, 0.5
      %vm414 = vcmp.gt.f32.partialorder %v406, 0.5
      %vm415 = vcmp.gt.f32.partialorder %v407, 0.5
      %vm416 = vcmp.gt.f32.partialorder %v408, 0.5
      %vm417 = vcmp.gt.f32.partialorder %v409, 0.5
      %v418 = vadd.f32 %v356, %v394
      %v419 = vadd.f32 %v357, %v395
      %v420 = vadd.f32 %v358, %v396
      %v421 = vadd.f32 %v359, %v397
      %v422 = vadd.f32 %v360, %v398
      %v423 = vadd.f32 %v361, %v399
      %v424 = vadd.f32 %v362, %v400
      %v425 = vadd.f32 %v363, %v401
      %v426 = vmax.f32 %v418, 0.0
      %v427 = vmax.f32 %v419, 0.0
      %v428 = vmax.f32 %v420, 0.0
      %v429 = vmax.f32 %v421, 0.0
      %v430 = vmax.f32 %v422, 0.0
      %v431 = vmax.f32 %v423, 0.0
      %v432 = vmax.f32 %v424, 0.0
      %v433 = vmax.f32 %v425, 0.0
      %v434 = vsel %vm410, 1, 0
      %v435 = vsel %vm411, 1, 0
      %v436 = vsel %vm412, 1, 0
      %v437 = vsel %vm413, 1, 0
      %v438 = vsel %vm414, 1, 0
      %v439 = vsel %vm415, 1, 0
      %v440 = vsel %vm416, 1, 0
      %v441 = vsel %vm417, 1, 0
      %442 = vset.pattern.permute.xlu0 0
      %443 = vperm.xlu0 %442, %v434
      %v444 = vpop.permute.xlu0 %443
      %445 = vset.pattern.permute.xlu0 0
      %446 = vperm.xlu0 %445, %v435
      %v447 = vpop.permute.xlu0 %446
      %448 = vset.pattern.permute.xlu0 0
      %449 = vperm.xlu0 %448, %v436
      %v450 = vpop.permute.xlu0 %449
      %451 = vset.pattern.permute.xlu0 0
      %452 = vperm.xlu0 %451, %v437
      %v453 = vpop.permute.xlu0 %452
      %454 = vset.pattern.permute.xlu0 0
      %455 = vperm.xlu0 %454, %v438
      %v456 = vpop.permute.xlu0 %455
      %457 = vset.pattern.permute.xlu0 0
      %458 = vperm.xlu0 %457, %v439
      %v459 = vpop.permute.xlu0 %458
      %460 = vset.pattern.permute.xlu0 0
      %461 = vperm.xlu0 %460, %v440
      %v462 = vpop.permute.xlu0 %461
      %463 = vset.pattern.permute.xlu0 0
      %464 = vperm.xlu0 %463, %v441
      %v465 = vpop.permute.xlu0 %464
      %vm466 = vcmp.eq.s32.totalorder %v444, 1
      %vm467 = vcmp.eq.s32.totalorder %v447, 1
      %vm468 = vcmp.eq.s32.totalorder %v450, 1
      %vm469 = vcmp.eq.s32.totalorder %v453, 1
      %vm470 = vcmp.eq.s32.totalorder %v456, 1
      %vm471 = vcmp.eq.s32.totalorder %v459, 1
      %vm472 = vcmp.eq.s32.totalorder %v462, 1
      %vm473 = vcmp.eq.s32.totalorder %v465, 1
      %v474 = vsel %vm466, %v426, 0.0
      %v475 = vsel %vm467, %v427, 0.0
      %v476 = vsel %vm468, %v428, 0.0
      %v477 = vsel %vm469, %v429, 0.0
      %v478 = vsel %vm470, %v430, 0.0
      %v479 = vsel %vm471, %v431, 0.0
      %v480 = vsel %vm472, %v432, 0.0
      %v481 = vsel %vm473, %v433, 0.0
      %482 = vst [vmem:[%s324] sm:$0xff] %v474
      %483 = vst [vmem:[%s324 + $0x8] sm:$0xff] %v475
      %484 = vst [vmem:[%s324 + $0x10] sm:$0xff] %v476
      %485 = vst [vmem:[%s324 + $0x18] sm:$0xff] %v477
      %486 = vst [vmem:[%s324 + $0x20] sm:$0xff] %v478
      %487 = vst [vmem:[%s324 + $0x28] sm:$0xff] %v479
      %488 = vst [vmem:[%s324 + $0x30] sm:$0xff] %v480
      %489 = vst [vmem:[%s324 + $0x38] sm:$0xff] %v481
      %s490 = smul.u32 8, %s18
      %p491 = scmp.lt.s32.totalorder %s490, 15
      %s492 = scalar_select %p491, %s490, 15
      %s493 = smul.addr %s492, 8
      %s494 = scalar_lea.vmem %s7, %s493
      // Predicated region
      $region49: #{basic_block_r1_forward.5} parent=47 // pred_check
        %p495 = pneg %p198
      $region50: #{basic_block_r1_forward.5} parent=47 // pred_check_branch
        %497 = sbr.rel (%p495) target = $region52
      $region51: #{basic_block_r1_forward.5} parent=47 // pred_region
        %s498 = smul.u32 8, %s18
      $region52: #{basic_block_r1_forward.5} parent=47 // pred_fallthru
        _
    $region48: #{basic_block_r1_forward.5} parent=5 // pred_fallthru
      _
    %p499 = scmp.le.s32.totalorder 2, %s13
    // Predicated region
    $region53: #{basic_block_r1_forward.5} parent=5 // pred_check
      %p500 = pneg %p499
    $region54: #{basic_block_r1_forward.5} parent=5 // pred_check_branch
      %502 = sbr.rel (%p500) target = $region56
    $region55: #{basic_block_r1_forward.5} parent=5 // pred_region
      %s503 = ssub.s32 %s13, 2
      // Predicated region
      $region57: #{basic_block_r1_forward.5} parent=55 // pred_check
        %p504 = pneg %p204
      $region58: #{basic_block_r1_forward.5} parent=55 // pred_check_branch
        %506 = sbr.rel (%p504) target = $region60
      $region59: #{basic_block_r1_forward.5} parent=55 // pred_region
        %s507 = smul.u32 8, %s19
        %p508 = scmp.lt.s32.totalorder %s507, 15
        %s509 = scalar_select %p508, %s507, 15
        %s510 = smul.addr %s509, 8
        %s511 = scalar_lea.vmem %s7, %s510
      $region60: #{basic_block_r1_forward.5} parent=55 // pred_fallthru
        _
    $region56: #{basic_block_r1_forward.5} parent=5 // pred_fallthru
      _
  $region6: #{basic_block_r1_forward.5} parent=0 // loop_footer
    %s17 = sadd.s32 1, %s13
  $region7: #{basic_block_r1_forward.5} parent=0 // loop_footer_branch
    %12 = sbr.rel target = $region3
  $region8: #{basic_block_r1_forward.5} parent=0 // loop_exit
    _

// kernel: basic_block_r1_forward.4
$region0: #{basic_block_r1_forward.4}
  #allocation0 [shape = 'u32[]', space=smem, size = 0x4, offset = 0x4, fixed_abs, tag = 'smem constant byte address 0x4 - core index']
  #allocation1 [shape = 'u32[144,128]{1,0:T(1,128)}', space=vmem, size = 0x12000, scoped, tag = 'internal scratch']
  %s0 = inlined_call_operand.vmem [shape: f32[128,48], index: 0, kind: input, shape index: {}]
  %s1 = inlined_call_operand.vmem [shape: f32[48,256], index: 1, kind: input, shape index: {}]
  %s2 = inlined_call_operand.vmem [shape: f32[128,1], index: 2, kind: input, shape index: {}]
  %s3 = inlined_call_operand.vmem [shape: f32[128,128], index: 3, kind: output, shape index: {0}]
  %s4 = inlined_call_operand.vmem [shape: f32[32,128], index: 4, kind: output, shape index: {1}]
  %s5 = inlined_call_operand.vmem [shape: f32[128,128], index: 5, kind: output, shape index: {2}]
  %s6 = inlined_call_operand.vmem [shape: f32[32,128], index: 6, kind: output, shape index: {3}]
  %7 = xla_tuple %s3, %s4, %s5, %s6
  %s8 = sld [smem:[#allocation0]]
  $region69: #{basic_block_r1_forward.4} parent=0
    _
  %s10 = ssub.s32 1, %s8
  %s11 = scalar_select 0, %s10, %s8
  loop: start=0, step=1, limit=6
  $region2: #{basic_block_r1_forward.4} parent=0 // loop_pre_header
    _
  $region3: #{basic_block_r1_forward.4} parent=0 // loop_header
    %s13 = sphi 0, %s17
    %p14 = scmp.ge.s32.totalorder %s13, 6
    %s23 = sphi 0, %s25
    %s26 = sphi 0, %s23
    %s27 = sphi 0, %s26
    %s43 = sphi 0, %s27
    %s47 = sphi 0, %s47
    %s49 = sphi 0, %s47
    %s50 = sphi 0, %s49
    %s64 = sphi 0, %s50
    %s70 = sphi 0, %s72
    %s73 = sphi 0, %s70
    %s74 = sphi 0, %s73
    %s90 = sphi 0, %s74
    %s96 = sphi 0, %s98
    %s99 = sphi 0, %s96
    %s100 = sphi 0, %s99
    %s116 = sphi 0, %s100
    %s122 = sphi 0, %s124
    %s125 = sphi 0, %s122
    %s126 = sphi 0, %s125
    %s142 = sphi 0, %s126
    %s148 = sphi 0, %s150
    %s151 = sphi 0, %s148
    %s152 = sphi 0, %s151
    %s168 = sphi 0, %s152
    %s174 = sphi 0, %s176
    %s177 = sphi 0, %s174
    %s178 = sphi 0, %s177
    %s194 = sphi 0, %s178
  $region4: #{basic_block_r1_forward.4} parent=0 // loop_header_branch
    %16 = sbr.rel (%p14) target = $region8
  $region5: #{basic_block_r1_forward.4} parent=0 // loop_body
    %s18 = ssub.s32 %s13, 1
    %s19 = ssub.s32 %s13, 2
    %s20 = sadd.s32 %s13, 1
    %s21 = ssub.s32 %s13, %s20
    %p22 = scmp.eq.s32.totalorder %s21, 0
    %s24 = sadd.s32 %s23, 1
    %s25 = scalar_select %p22, %s23, %s24
    %p28 = pneg %p22
    %p29 = scmp.eq.s32.totalorder %s13, 3
    %p30 = por %p28, %p29
    %p31 = scmp.ne.s32.totalorder %s23, %s26
    %p32 = scmp.eq.s32.totalorder %s13, 0
    %p33 = por %p31, %p32
    %p34 = scmp.ne.s32.totalorder %s23, %s26
    %p35 = scmp.eq.s32.totalorder %s18, 3
    %p36 = por %p34, %p35
    %p37 = scmp.ne.s32.totalorder %s26, %s27
    %p38 = scmp.eq.s32.totalorder %s18, 0
    %p39 = por %p37, %p38
    %p40 = scmp.ne.s32.totalorder %s26, %s27
    %p41 = scmp.eq.s32.totalorder %s19, 3
    %p42 = por %p40, %p41
    %p44 = scmp.ne.s32.totalorder %s27, %s43
    %p45 = scmp.eq.s32.totalorder %s19, 0
    %p46 = por %p44, %p45
    %s48 = sadd.s32 %s47, 1
    %p51 = scmp.eq.s32.totalorder %s13, 3
    %p52 = scmp.ne.s32.totalorder %s47, %s49
    %p53 = scmp.eq.s32.totalorder %s13, 0
    %p54 = por %p52, %p53
    %p55 = scmp.ne.s32.totalorder %s47, %s49
    %p56 = scmp.eq.s32.totalorder %s18, 3
    %p57 = por %p55, %p56
    %p58 = scmp.ne.s32.totalorder %s49, %s50
    %p59 = scmp.eq.s32.totalorder %s18, 0
    %p60 = por %p58, %p59
    %p61 = scmp.ne.s32.totalorder %s49, %s50
    %p62 = scmp.eq.s32.totalorder %s19, 3
    %p63 = por %p61, %p62
    %p65 = scmp.ne.s32.totalorder %s50, %s64
    %p66 = scmp.eq.s32.totalorder %s19, 0
    %p67 = por %p65, %p66
    %s68 = ssub.s32 %s13, %s20
    %p69 = scmp.eq.s32.totalorder %s68, 0
    %s71 = sadd.s32 %s70, 1
    %s72 = scalar_select %p69, %s70, %s71
    %p75 = pneg %p69
    %p76 = scmp.eq.s32.totalorder %s13, 3
    %p77 = por %p75, %p76
    %p78 = scmp.ne.s32.totalorder %s70, %s73
    %p79 = scmp.eq.s32.totalorder %s13, 0
    %p80 = por %p78, %p79
    %p81 = scmp.ne.s32.totalorder %s70, %s73
    %p82 = scmp.eq.s32.totalorder %s18, 3
    %p83 = por %p81, %p82
    %p84 = scmp.ne.s32.totalorder %s73, %s74
    %p85 = scmp.eq.s32.totalorder %s18, 0
    %p86 = por %p84, %p85
    %p87 = scmp.ne.s32.totalorder %s73, %s74
    %p88 = scmp.eq.s32.totalorder %s19, 3
    %p89 = por %p87, %p88
    %p91 = scmp.ne.s32.totalorder %s74, %s90
    %p92 = scmp.eq.s32.totalorder %s19, 0
    %p93 = por %p91, %p92
    %s94 = ssub.s32 %s13, %s20
    %p95 = scmp.eq.s32.totalorder %s94, 0
    %s97 = sadd.s32 %s96, 1
    %s98 = scalar_select %p95, %s96, %s97
    %p101 = pneg %p95
    %p102 = scmp.eq.s32.totalorder %s13, 3
    %p103 = por %p101, %p102
    %p104 = scmp.ne.s32.totalorder %s96, %s99
    %p105 = scmp.eq.s32.totalorder %s13, 0
    %p106 = por %p104, %p105
    %p107 = scmp.ne.s32.totalorder %s96, %s99
    %p108 = scmp.eq.s32.totalorder %s18, 3
    %p109 = por %p107, %p108
    %p110 = scmp.ne.s32.totalorder %s99, %s100
    %p111 = scmp.eq.s32.totalorder %s18, 0
    %p112 = por %p110, %p111
    %p113 = scmp.ne.s32.totalorder %s99, %s100
    %p114 = scmp.eq.s32.totalorder %s19, 3
    %p115 = por %p113, %p114
    %p117 = scmp.ne.s32.totalorder %s100, %s116
    %p118 = scmp.eq.s32.totalorder %s19, 0
    %p119 = por %p117, %p118
    %s120 = ssub.s32 %s13, %s20
    %p121 = scmp.eq.s32.totalorder %s120, 0
    %s123 = sadd.s32 %s122, 1
    %s124 = scalar_select %p121, %s122, %s123
    %p127 = pneg %p121
    %p128 = scmp.eq.s32.totalorder %s13, 3
    %p129 = por %p127, %p128
    %p130 = scmp.ne.s32.totalorder %s122, %s125
    %p131 = scmp.eq.s32.totalorder %s13, 0
    %p132 = por %p130, %p131
    %p133 = scmp.ne.s32.totalorder %s122, %s125
    %p134 = scmp.eq.s32.totalorder %s18, 3
    %p135 = por %p133, %p134
    %p136 = scmp.ne.s32.totalorder %s125, %s126
    %p137 = scmp.eq.s32.totalorder %s18, 0
    %p138 = por %p136, %p137
    %p139 = scmp.ne.s32.totalorder %s125, %s126
    %p140 = scmp.eq.s32.totalorder %s19, 3
    %p141 = por %p139, %p140
    %p143 = scmp.ne.s32.totalorder %s126, %s142
    %p144 = scmp.eq.s32.totalorder %s19, 0
    %p145 = por %p143, %p144
    %s146 = ssub.s32 %s13, %s20
    %p147 = scmp.eq.s32.totalorder %s146, 0
    %s149 = sadd.s32 %s148, 1
    %s150 = scalar_select %p147, %s148, %s149
    %p153 = pneg %p147
    %p154 = scmp.eq.s32.totalorder %s13, 3
    %p155 = por %p153, %p154
    %p156 = scmp.ne.s32.totalorder %s148, %s151
    %p157 = scmp.eq.s32.totalorder %s13, 0
    %p158 = por %p156, %p157
    %p159 = scmp.ne.s32.totalorder %s148, %s151
    %p160 = scmp.eq.s32.totalorder %s18, 3
    %p161 = por %p159, %p160
    %p162 = scmp.ne.s32.totalorder %s151, %s152
    %p163 = scmp.eq.s32.totalorder %s18, 0
    %p164 = por %p162, %p163
    %p165 = scmp.ne.s32.totalorder %s151, %s152
    %p166 = scmp.eq.s32.totalorder %s19, 3
    %p167 = por %p165, %p166
    %p169 = scmp.ne.s32.totalorder %s152, %s168
    %p170 = scmp.eq.s32.totalorder %s19, 0
    %p171 = por %p169, %p170
    %s172 = ssub.s32 %s13, %s20
    %p173 = scmp.eq.s32.totalorder %s172, 0
    %s175 = sadd.s32 %s174, 1
    %s176 = scalar_select %p173, %s174, %s175
    %p179 = pneg %p173
    %p180 = scmp.eq.s32.totalorder %s13, 3
    %p181 = por %p179, %p180
    %p182 = scmp.ne.s32.totalorder %s174, %s177
    %p183 = scmp.eq.s32.totalorder %s13, 0
    %p184 = por %p182, %p183
    %p185 = scmp.ne.s32.totalorder %s174, %s177
    %p186 = scmp.eq.s32.totalorder %s18, 3
    %p187 = por %p185, %p186
    %p188 = scmp.ne.s32.totalorder %s177, %s178
    %p189 = scmp.eq.s32.totalorder %s18, 0
    %p190 = por %p188, %p189
    %p191 = scmp.ne.s32.totalorder %s177, %s178
    %p192 = scmp.eq.s32.totalorder %s19, 3
    %p193 = por %p191, %p192
    %p195 = scmp.ne.s32.totalorder %s178, %s194
    %p196 = scmp.eq.s32.totalorder %s19, 0
    %p197 = por %p195, %p196
    %p198 = scmp.le.s32.totalorder 1, %s13
    %p199 = scmp.lt.s32.totalorder %s13, 5
    %p200 = pnand %p198, %p199
    %p201 = pneg %p200
    // Predicated region
    $region9: #{basic_block_r1_forward.4} parent=5 // pred_check
      _
    $region10: #{basic_block_r1_forward.4} parent=5 // pred_check_branch
      %203 = sbr.rel (%p200) target = $region12
    $region11: #{basic_block_r1_forward.4} parent=5 // pred_region
      %s204 = ssub.s32 %s13, 1
      // Predicated region
      $region13: #{basic_block_r1_forward.4} parent=11 // pred_check
        %p205 = pneg %p60
      $region14: #{basic_block_r1_forward.4} parent=11 // pred_check_branch
        %207 = sbr.rel (%p205) target = $region16
      $region15: #{basic_block_r1_forward.4} parent=11 // pred_region
        _
      $region16: #{basic_block_r1_forward.4} parent=11 // pred_fallthru
        _
    $region12: #{basic_block_r1_forward.4} parent=5 // pred_fallthru
      _
    %p208 = scmp.lt.s32.totalorder %s13, 4
    // Predicated region
    $region17: #{basic_block_r1_forward.4} parent=5 // pred_check
      %p209 = pneg %p208
    $region18: #{basic_block_r1_forward.4} parent=5 // pred_check_branch
      %211 = sbr.rel (%p209) target = $region20
    $region19: #{basic_block_r1_forward.4} parent=5 // pred_region
      // Predicated region
      $region21: #{basic_block_r1_forward.4} parent=19 // pred_check
        %p212 = pneg %p33
      $region22: #{basic_block_r1_forward.4} parent=19 // pred_check_branch
        %214 = sbr.rel (%p212) target = $region24
      $region23: #{basic_block_r1_forward.4} parent=19 // pred_region
        %s215 = smul.u32 4, %s13
        %p216 = scmp.lt.s32.totalorder %s215, 15
        %s217 = scalar_select %p216, %s215, 15
        %s218 = smul.addr %s217, 8
        %s219 = scalar_lea.vmem %s0, %s218
        %s220 = smul.u32 4, %s13
      $region24: #{basic_block_r1_forward.4} parent=19 // pred_fallthru
        _
      // Predicated region
      $region25: #{basic_block_r1_forward.4} parent=19 // pred_check
        %p221 = pneg %p80
      $region26: #{basic_block_r1_forward.4} parent=19 // pred_check_branch
        %223 = sbr.rel (%p221) target = $region28
      $region27: #{basic_block_r1_forward.4} parent=19 // pred_region
        %s224 = smul.u32 4, %s13
        %p225 = scmp.lt.s32.totalorder %s224, 15
        %s226 = scalar_select %p225, %s224, 15
        %s227 = smul.addr %s226, 8
        %s228 = scalar_lea.vmem %s2, %s227
        %s229 = smul.u32 4, %s13
      $region28: #{basic_block_r1_forward.4} parent=19 // pred_fallthru
        _
    $region20: #{basic_block_r1_forward.4} parent=5 // pred_fallthru
      _
    %p230 = scmp.le.s32.totalorder 1, %s13
    %p231 = scmp.lt.s32.totalorder %s13, 5
    %p232 = pnand %p230, %p231
    %p233 = pneg %p232
    // Predicated region
    $region29: #{basic_block_r1_forward.4} parent=5 // pred_check
      _
    $region30: #{basic_block_r1_forward.4} parent=5 // pred_check_branch
      %235 = sbr.rel (%p232) target = $region32
    $region31: #{basic_block_r1_forward.4} parent=5 // pred_region
      %s236 = ssub.s32 %s13, 1
      %s237 = smul.u32 4, %s18
      %p238 = scmp.lt.s32.totalorder %s237, 15
      %s239 = scalar_select %p238, %s237, 15
      %s240 = smul.addr %s239, 8
      %s241 = scalar_lea.vmem %s0, %s240
      %p242 = pneg %p39
      %p243 = pneg %p36
      %p244 = pneg %p60
      %p245 = pneg %p57
      %s246 = smul.u32 4, %s18
      %p247 = scmp.lt.s32.totalorder %s246, 15
      %s248 = scalar_select %p247, %s246, 15
      %s249 = smul.addr %s248, 8
      %s250 = scalar_lea.vmem %s2, %s249
      %p251 = pneg %p86
      %p252 = pneg %p83
      %p253 = pneg %p112
      %p254 = pneg %p109
      %s255 = smul.u32 4, %s18
      %p256 = scmp.lt.s32.totalorder %s255, 15
      %s257 = scalar_select %p256, %s255, 15
      %s258 = smul.addr %s257, 8
      %s259 = scalar_lea.vmem %s3, %s258
      %p260 = pneg %p138
      %p261 = pneg %p135
      %p262 = scmp.lt.s32.totalorder %s18, 3
      %s263 = scalar_select %p262, %s18, 3
      %s264 = smul.addr %s263, 8
      %s265 = scalar_lea.vmem %s4, %s264
      %p266 = pneg %p164
      %p267 = pneg %p161
      %s268 = smul.u32 4, %s18
      %p269 = scmp.lt.s32.totalorder %s268, 15
      %s270 = scalar_select %p269, %s268, 15
      %s271 = smul.addr %s270, 8
      %s272 = scalar_lea.vmem %s5, %s271
      %p273 = pneg %p190
      %p274 = pneg %p187
      %p275 = scmp.lt.s32.totalorder %s18, 3
      %s276 = scalar_select %p275, %s18, 3
      %s277 = smul.addr %s276, 8
      %s278 = scalar_lea.vmem %s6, %s277
      %s279 = smul.u32 4, %s18
      %p280 = scmp.lt.s32.totalorder %s279, 15
      %s281 = scalar_select %p280, %s279, 15
      %s282 = smul.addr %s281, 8
      %s283 = scalar_lea.vmem %s0, %s282
      %s284 = smul.u32 4, %s18
      %s285 = smul.u32 4, %s18
      %p286 = scmp.lt.s32.totalorder %s285, 15
      %s287 = scalar_select %p286, %s285, 15
      %s288 = smul.addr %s287, 8
      %s289 = scalar_lea.vmem %s2, %s288
      %s290 = smul.u32 4, %s18
      %s291 = smul.u32 4, %s18
      %p292 = scmp.lt.s32.totalorder %s291, 15
      %s293 = scalar_select %p292, %s291, 15
      %s294 = smul.addr %s293, 8
      %s295 = scalar_lea.vmem %s3, %s294
      %s296 = smul.u32 4, %s18
      %p297 = scmp.lt.s32.totalorder %s18, 3
      %s298 = scalar_select %p297, %s18, 3
      %s299 = smul.addr %s298, 8
      %s300 = scalar_lea.vmem %s4, %s299
      %s301 = smul.u32 4, %s18
      %p302 = scmp.lt.s32.totalorder %s301, 15
      %s303 = scalar_select %p302, %s301, 15
      %s304 = smul.addr %s303, 8
      %s305 = scalar_lea.vmem %s5, %s304
      %s306 = smul.u32 4, %s18
      %p307 = scmp.lt.s32.totalorder %s18, 3
      %s308 = scalar_select %p307, %s18, 3
      %s309 = smul.addr %s308, 8
      %s310 = scalar_lea.vmem %s6, %s309
      %v311 = vld [vmem:[%s283] sm:$0xff]
      %v312 = vld [vmem:[%s283 + $0x8] sm:$0xff]
      %v313 = vld [vmem:[%s283 + $0x10] sm:$0xff]
      %v314 = vld [vmem:[%s283 + $0x18] sm:$0xff]
      %v315 = vld [vmem:[%s1] sm:$0xff]
      %v316 = vld [vmem:[%s1 + $0x8] sm:$0xff]
      %v317 = vld [vmem:[%s1 + $0x10] sm:$0xff]
      %v318 = vld [vmem:[%s1 + $0x18] sm:$0xff]
      %v319 = vld [vmem:[%s1 + $0x20] sm:$0xff]
      %v320 = vld [vmem:[%s1 + $0x28] sm:$0xff]
      %v321 = vld [vmem:[%s1 + $0x30] sm:$0xff]
      %v322 = vld [vmem:[%s1 + $0x38] sm:$0xff]
      %v323 = vld [vmem:[%s1 + $0x40] sm:$0xff]
      %v324 = vld [vmem:[%s1 + $0x48] sm:$0xff]
      %v325 = vld [vmem:[%s1 + $0x50] sm:$0xff]
      %v326 = vld [vmem:[%s1 + $0x58] sm:$0xff]
      %vm327 = vcmask 392192
      %v329 = vsel %vm327, %v311, 0
      %v332 = vsel %vm327, %v312, 0
      %v335 = vsel %vm327, %v313, 0
      %v338 = vsel %vm327, %v314, 0
      %340 = vmatprep.subr.mxu0 0.0
      %341 = vmatpush1.msra.mxu0 0.0
      %342 = vmatprep.subr.mxu0 0.0
      %343 = vmatpush1.msra.mxu0 0.0
      %344 = vmatprep.subr.mxu0 0.0
      %345 = vmatpush1.msra.mxu0 0.0
      %346 = vmatprep.subr.mxu0 0.0
      %347 = vmatpush1.msra.mxu0 0.0
      %348 = vmatprep.subr.mxu0 0.0
      %349 = vmatpush1.msra.mxu0 0.0
      %350 = vmatprep.subr.mxu0 0.0
      %351 = vmatpush1.msra.mxu0 0.0
      %352 = vmatprep.subr.mxu0 0.0
      %353 = vmatpush1.msra.mxu0 0.0
      %354 = vmatprep.subr.mxu0 0.0
      %355 = vmatpush1.msra.mxu0 0.0
      %356 = vmatprep.subr.mxu0 0.0
      %357 = vmatpush1.msra.mxu0 0.0
      %358 = vmatprep.subr.mxu0 0.0
      %359 = vmatpush1.msra.mxu0 0.0
      %360 = vmatprep.subr.mxu0 %v326
      %361 = vmatpush1.msra.mxu0 %v325
      %362 = vmatprep.subr.mxu0 %v324
      %363 = vmatpush1.msra.mxu0 %v323
      %364 = vmatprep.subr.mxu0 %v322
      %365 = vmatpush1.msra.mxu0 %v321
      %366 = vmatprep.subr.mxu0 %v320
      %367 = vmatpush1.msra.mxu0 %v319
      %368 = vmatprep.subr.mxu0 %v318
      %369 = vmatpush1.msra.mxu0 %v317
      %370 = vmatprep.subr.mxu0 %v316
      %371 = vmatpush1.msra.mxu0 %v315
      %372 = vmatprep.subr.mxu0 0.0
      %373 = vmatpush2.msra.mxu0 0.0
      %374 = vmatprep.subr.mxu0 0.0
      %375 = vmatpush2.msra.mxu0 0.0
      %376 = vmatprep.subr.mxu0 0.0
      %377 = vmatpush2.msra.mxu0 0.0
      %378 = vmatprep.subr.mxu0 0.0
      %379 = vmatpush2.msra.mxu0 0.0
      %380 = vmatprep.subr.mxu0 0.0
      %381 = vmatpush2.msra.mxu0 0.0
      %382 = vmatprep.subr.mxu0 0.0
      %383 = vmatpush2.msra.mxu0 0.0
      %384 = vmatprep.subr.mxu0 0.0
      %385 = vmatpush2.msra.mxu0 0.0
      %386 = vmatprep.subr.mxu0 0.0
      %387 = vmatpush2.msra.mxu0 0.0
      %388 = vmatprep.subr.mxu0 0.0
      %389 = vmatpush2.msra.mxu0 0.0
      %390 = vmatprep.subr.mxu0 0.0
      %391 = vmatpush2.msra.mxu0 0.0
      %392 = vmatprep.subr.mxu0 0.0
      %393 = vmatpush2.msra.mxu0 0.0
      %394 = vmatprep.subr.mxu0 0.0
      %395 = vmatpush2.msra.mxu0 0.0
      %396 = vmatprep.subr.mxu0 0.0
      %397 = vmatpush2.msra.mxu0 0.0
      %398 = vmatprep.subr.mxu0 0.0
      %399 = vmatpush2.msra.mxu0 0.0
      %400 = vmatprep.subr.mxu0 0.0
      %401 = vmatpush2.msra.mxu0 0.0
      %402 = vmatprep.subr.mxu0 0.0
      %403 = vmatpush2.msra.mxu0 0.0
      %404 = vmatprep.mubr.f32.mxu0 0.0
      %405 = vmatmul.mubr.f32.gmra.mxu0 %v329
      %v406 = vpop.f32.mrf.mxu0
      %v407 = vadd.f32 0.0, %v406
      %v408 = vpop.f32.mrf.mxu0
      %v409 = vadd.f32 0.0, %v408
      %410 = vmatprep.mubr.f32.mxu0 0.0
      %411 = vmatmul.mubr.f32.gmra.mxu0 %v332
      %v412 = vpop.f32.mrf.mxu0
      %v413 = vadd.f32 0.0, %v412
      %v414 = vpop.f32.mrf.mxu0
      %v415 = vadd.f32 0.0, %v414
      %416 = vmatprep.mubr.f32.mxu0 0.0
      %417 = vmatmul.mubr.f32.gmra.mxu0 %v335
      %v418 = vpop.f32.mrf.mxu0
      %v419 = vadd.f32 0.0, %v418
      %v420 = vpop.f32.mrf.mxu0
      %v421 = vadd.f32 0.0, %v420
      %422 = vmatprep.mubr.f32.mxu0 0.0
      %423 = vmatmul.mubr.f32.gmra.mxu0 %v338
      %v424 = vpop.f32.mrf.mxu0
      %v425 = vadd.f32 0.0, %v424
      %v426 = vpop.f32.mrf.mxu0
      %v427 = vadd.f32 0.0, %v426
      %428 = vdwg.mxu0
      %v429 = vld [vmem:[%s289] sm:$0xff]
      %v430 = vld [vmem:[%s289 + $0x8] sm:$0xff]
      %v431 = vld [vmem:[%s289 + $0x10] sm:$0xff]
      %v432 = vld [vmem:[%s289 + $0x18] sm:$0xff]
      %vm433 = vcmp.gt.f32.partialorder %v429, 0.5
      %vm434 = vcmp.gt.f32.partialorder %v430, 0.5
      %vm435 = vcmp.gt.f32.partialorder %v431, 0.5
      %vm436 = vcmp.gt.f32.partialorder %v432, 0.5
      %vm437 = vcmask 7168
      %v438 = vsel %vm437, %v429, 0.0
      %v439 = vsel %vm437, %v430, 0.0
      %v440 = vadd.f32 %v438, %v439
      %v441 = vsel %vm437, %v431, 0.0
      %v442 = vadd.f32 %v440, %v441
      %v443 = vsel %vm437, %v432, 0.0
      %v444 = vadd.f32 %v442, %v443
      %v445 = vrot.slane %v444, 4
      %v446 = vadd.f32 %v444, %v445
      %v447 = vrot.slane %v446, 2
      %v448 = vadd.f32 %v446, %v447
      %v449 = vrot.slane %v448, 1
      %v450 = vadd.f32 %v448, %v449
      %v451 = vmax.f32 %v450, 1.0
      %452 = vst [vmem:[%s295] sm:$0xff] %v407
      %453 = vst [vmem:[%s295 + $0x8] sm:$0xff] %v413
      %454 = vst [vmem:[%s295 + $0x10] sm:$0xff] %v419
      %455 = vst [vmem:[%s295 + $0x18] sm:$0xff] %v425
      %456 = vst [vmem:[%s305] sm:$0xff] %v409
      %457 = vst [vmem:[%s305 + $0x8] sm:$0xff] %v415
      %458 = vst [vmem:[%s305 + $0x10] sm:$0xff] %v421
      %459 = vst [vmem:[%s305 + $0x18] sm:$0xff] %v427
      %v460 = vsel %vm433, 1, 0
      %v461 = vsel %vm434, 1, 0
      %v462 = vsel %vm435, 1, 0
      %v463 = vsel %vm436, 1, 0
      %464 = vset.pattern.permute.xlu0 0
      %465 = vperm.xlu0 %464, %v460
      %v466 = vpop.permute.xlu0 %465
      %467 = vset.pattern.permute.xlu0 0
      %468 = vperm.xlu0 %467, %v461
      %v469 = vpop.permute.xlu0 %468
      %470 = vset.pattern.permute.xlu0 0
      %471 = vperm.xlu0 %470, %v462
      %v472 = vpop.permute.xlu0 %471
      %473 = vset.pattern.permute.xlu0 0
      %474 = vperm.xlu0 %473, %v463
      %v475 = vpop.permute.xlu0 %474
      %vm476 = vcmp.eq.s32.totalorder %v466, 1
      %vm477 = vcmp.eq.s32.totalorder %v469, 1
      %vm478 = vcmp.eq.s32.totalorder %v472, 1
      %vm479 = vcmp.eq.s32.totalorder %v475, 1
      %v480 = vsel %vm476, %v407, 0.0
      %v481 = vsel %vm477, %v413, 0.0
      %v482 = vsel %vm478, %v419, 0.0
      %v483 = vsel %vm479, %v425, 0.0
      %v484 = vadd.f32 %v480, %v481
      %v485 = vadd.f32 %v484, %v482
      %v486 = vadd.f32 %v485, %v483
      %v487 = vrot.slane %v486, 4
      %v488 = vadd.f32 %v486, %v487
      %v489 = vrot.slane %v488, 2
      %v490 = vadd.f32 %v488, %v489
      %v491 = vrot.slane %v490, 1
      %v492 = vadd.f32 %v490, %v491
      %494 = vset.pattern.permute.xlu0 0
      %495 = vperm.xlu0 %494, %v451
      %v496 = vpop.permute.xlu0 %495
      %v498 = vrcp.pop %v496
      %v499 = vmul.f32 %v492, %v498
      %v500 = vsub.f32 %v407, %v499
      %v501 = vsub.f32 %v413, %v499
      %v502 = vsub.f32 %v419, %v499
      %v503 = vsub.f32 %v425, %v499
      %v504 = vsel %vm476, %v500, 0.0
      %v505 = vsel %vm477, %v501, 0.0
      %v506 = vsel %vm478, %v502, 0.0
      %v507 = vsel %vm479, %v503, 0.0
      %508 = vst [vmem:[%s300] sm:$0x1] %v492
      %v509 = vmul.f32 %v504, %v504
      %v510 = vmul.f32 %v505, %v505
      %v511 = vmul.f32 %v506, %v506
      %v512 = vmul.f32 %v507, %v507
      %v513 = vadd.f32 %v509, %v510
      %v514 = vadd.f32 %v513, %v511
      %v515 = vadd.f32 %v514, %v512
      %v516 = vrot.slane %v515, 4
      %v517 = vadd.f32 %v515, %v516
      %v518 = vrot.slane %v517, 2
      %v519 = vadd.f32 %v517, %v518
      %v520 = vrot.slane %v519, 1
      %v521 = vadd.f32 %v519, %v520
      %522 = vst [vmem:[%s300 + $0x1] sm:$0x1] %v521
      %v523 = vsel %vm476, %v409, 0.0
      %v524 = vsel %vm477, %v415, 0.0
      %v525 = vsel %vm478, %v421, 0.0
      %v526 = vsel %vm479, %v427, 0.0
      %v527 = vadd.f32 %v523, %v524
      %v528 = vadd.f32 %v527, %v525
      %v529 = vadd.f32 %v528, %v526
      %v530 = vrot.slane %v529, 4
      %v531 = vadd.f32 %v529, %v530
      %v532 = vrot.slane %v531, 2
      %v533 = vadd.f32 %v531, %v532
      %v534 = vrot.slane %v533, 1
      %v535 = vadd.f32 %v533, %v534
      %v536 = vmul.f32 %v535, %v498
      %v537 = vsub.f32 %v409, %v536
      %v538 = vsub.f32 %v415, %v536
      %v539 = vsub.f32 %v421, %v536
      %v540 = vsub.f32 %v427, %v536
      %v541 = vsel %vm476, %v537, 0.0
      %v542 = vsel %vm477, %v538, 0.0
      %v543 = vsel %vm478, %v539, 0.0
      %v544 = vsel %vm479, %v540, 0.0
      %545 = vst [vmem:[%s310] sm:$0x1] %v535
      %v546 = vmul.f32 %v541, %v541
      %v547 = vmul.f32 %v542, %v542
      %v548 = vmul.f32 %v543, %v543
      %v549 = vmul.f32 %v544, %v544
      %v550 = vadd.f32 %v546, %v547
      %v551 = vadd.f32 %v550, %v548
      %v552 = vadd.f32 %v551, %v549
      %v553 = vrot.slane %v552, 4
      %v554 = vadd.f32 %v552, %v553
      %v555 = vrot.slane %v554, 2
      %v556 = vadd.f32 %v554, %v555
      %v557 = vrot.slane %v556, 1
      %v558 = vadd.f32 %v556, %v557
      %559 = vst [vmem:[%s310 + $0x1] sm:$0x1] %v558
      %s560 = smul.u32 4, %s18
      %p561 = scmp.lt.s32.totalorder %s560, 15
      %s562 = scalar_select %p561, %s560, 15
      %s563 = smul.addr %s562, 8
      %s564 = scalar_lea.vmem %s3, %s563
      %p565 = scmp.lt.s32.totalorder %s18, 3
      %s566 = scalar_select %p565, %s18, 3
      %s567 = smul.addr %s566, 8
      %s568 = scalar_lea.vmem %s4, %s567
      %s569 = smul.u32 4, %s18
      %p570 = scmp.lt.s32.totalorder %s569, 15
      %s571 = scalar_select %p570, %s569, 15
      %s572 = smul.addr %s571, 8
      %s573 = scalar_lea.vmem %s5, %s572
      %p574 = scmp.lt.s32.totalorder %s18, 3
      %s575 = scalar_select %p574, %s18, 3
      %s576 = smul.addr %s575, 8
      %s577 = scalar_lea.vmem %s6, %s576
      // Predicated region
      $region33: #{basic_block_r1_forward.4} parent=31 // pred_check
        %p578 = pneg %p109
      $region34: #{basic_block_r1_forward.4} parent=31 // pred_check_branch
        %580 = sbr.rel (%p578) target = $region36
      $region35: #{basic_block_r1_forward.4} parent=31 // pred_region
        %s581 = smul.u32 4, %s18
      $region36: #{basic_block_r1_forward.4} parent=31 // pred_fallthru
        _
      // Predicated region
      $region37: #{basic_block_r1_forward.4} parent=31 // pred_check
        %p582 = pneg %p135
      $region38: #{basic_block_r1_forward.4} parent=31 // pred_check_branch
        %584 = sbr.rel (%p582) target = $region40
      $region39: #{basic_block_r1_forward.4} parent=31 // pred_region
        _
      $region40: #{basic_block_r1_forward.4} parent=31 // pred_fallthru
        _
      // Predicated region
      $region41: #{basic_block_r1_forward.4} parent=31 // pred_check
        %p585 = pneg %p161
      $region42: #{basic_block_r1_forward.4} parent=31 // pred_check_branch
        %587 = sbr.rel (%p585) target = $region44
      $region43: #{basic_block_r1_forward.4} parent=31 // pred_region
        %s588 = smul.u32 4, %s18
      $region44: #{basic_block_r1_forward.4} parent=31 // pred_fallthru
        _
      // Predicated region
      $region45: #{basic_block_r1_forward.4} parent=31 // pred_check
        %p589 = pneg %p187
      $region46: #{basic_block_r1_forward.4} parent=31 // pred_check_branch
        %591 = sbr.rel (%p589) target = $region48
      $region47: #{basic_block_r1_forward.4} parent=31 // pred_region
        _
      $region48: #{basic_block_r1_forward.4} parent=31 // pred_fallthru
        _
    $region32: #{basic_block_r1_forward.4} parent=5 // pred_fallthru
      _
    %p592 = scmp.le.s32.totalorder 2, %s13
    // Predicated region
    $region49: #{basic_block_r1_forward.4} parent=5 // pred_check
      %p593 = pneg %p592
    $region50: #{basic_block_r1_forward.4} parent=5 // pred_check_branch
      %595 = sbr.rel (%p593) target = $region52
    $region51: #{basic_block_r1_forward.4} parent=5 // pred_region
      %s596 = ssub.s32 %s13, 2
      // Predicated region
      $region53: #{basic_block_r1_forward.4} parent=51 // pred_check
        %p597 = pneg %p115
      $region54: #{basic_block_r1_forward.4} parent=51 // pred_check_branch
        %599 = sbr.rel (%p597) target = $region56
      $region55: #{basic_block_r1_forward.4} parent=51 // pred_region
        %s600 = smul.u32 4, %s19
        %p601 = scmp.lt.s32.totalorder %s600, 15
        %s602 = scalar_select %p601, %s600, 15
        %s603 = smul.addr %s602, 8
        %s604 = scalar_lea.vmem %s3, %s603
      $region56: #{basic_block_r1_forward.4} parent=51 // pred_fallthru
        _
      // Predicated region
      $region57: #{basic_block_r1_forward.4} parent=51 // pred_check
        %p605 = pneg %p141
      $region58: #{basic_block_r1_forward.4} parent=51 // pred_check_branch
        %607 = sbr.rel (%p605) target = $region60
      $region59: #{basic_block_r1_forward.4} parent=51 // pred_region
        %p608 = scmp.lt.s32.totalorder %s19, 3
        %s609 = scalar_select %p608, %s19, 3
        %s610 = smul.addr %s609, 8
        %s611 = scalar_lea.vmem %s4, %s610
      $region60: #{basic_block_r1_forward.4} parent=51 // pred_fallthru
        _
      // Predicated region
      $region61: #{basic_block_r1_forward.4} parent=51 // pred_check
        %p612 = pneg %p167
      $region62: #{basic_block_r1_forward.4} parent=51 // pred_check_branch
        %614 = sbr.rel (%p612) target = $region64
      $region63: #{basic_block_r1_forward.4} parent=51 // pred_region
        %s615 = smul.u32 4, %s19
        %p616 = scmp.lt.s32.totalorder %s615, 15
        %s617 = scalar_select %p616, %s615, 15
        %s618 = smul.addr %s617, 8
        %s619 = scalar_lea.vmem %s5, %s618
      $region64: #{basic_block_r1_forward.4} parent=51 // pred_fallthru
        _
      // Predicated region
      $region65: #{basic_block_r1_forward.4} parent=51 // pred_check
        %p620 = pneg %p193
      $region66: #{basic_block_r1_forward.4} parent=51 // pred_check_branch
        %622 = sbr.rel (%p620) target = $region68
      $region67: #{basic_block_r1_forward.4} parent=51 // pred_region
        %p623 = scmp.lt.s32.totalorder %s19, 3
        %s624 = scalar_select %p623, %s19, 3
        %s625 = smul.addr %s624, 8
        %s626 = scalar_lea.vmem %s6, %s625
      $region68: #{basic_block_r1_forward.4} parent=51 // pred_fallthru
        _
    $region52: #{basic_block_r1_forward.4} parent=5 // pred_fallthru
      _
  $region6: #{basic_block_r1_forward.4} parent=0 // loop_footer
    %s17 = sadd.s32 1, %s13
  $region7: #{basic_block_r1_forward.4} parent=0 // loop_footer_branch
    %12 = sbr.rel target = $region3
  $region8: #{basic_block_r1_forward.4} parent=0 // loop_exit
    _

// kernel: basic_block_r1_forward.7
$region0: #{basic_block_r1_forward.7}
  #allocation0 [shape = 'u32[]', space=smem, size = 0x4, offset = 0x4, fixed_abs, tag = 'smem constant byte address 0x4 - core index']
  #allocation1 [shape = 'u32[144,128]{1,0:T(1,128)}', space=vmem, size = 0x12000, scoped, tag = 'internal scratch']
  %s0 = inlined_call_operand.vmem [shape: f32[256,128], index: 0, kind: input, shape index: {}, may-alias: {0,5}]
  %s1 = inlined_call_operand.vmem [shape: f32[256,128], index: 1, kind: input, shape index: {}]
  %s2 = inlined_call_operand.vmem [shape: f32[256,1], index: 2, kind: input, shape index: {}]
  %s3 = inlined_call_operand.vmem [shape: f32[1,128], index: 3, kind: input, shape index: {}]
  %s4 = inlined_call_operand.vmem [shape: f32[1,128], index: 4, kind: input, shape index: {}]
  %s5 = inlined_call_operand.vmem [shape: f32[256,128], index: 5, kind: output, shape index: {}, may-alias: {0,5}]
  %s6 = sld [smem:[#allocation0]]
  $region53: #{basic_block_r1_forward.7} parent=0
    _
  %s8 = ssub.s32 1, %s6
  %s9 = scalar_select 0, %s8, %s6
  loop: start=0, step=1, limit=4
  $region2: #{basic_block_r1_forward.7} parent=0 // loop_pre_header
    _
  $region3: #{basic_block_r1_forward.7} parent=0 // loop_header
    %s11 = sphi 0, %s15
    %p12 = scmp.ge.s32.totalorder %s11, 4
    %s21 = sphi 0, %s23
    %s24 = sphi 0, %s21
    %s25 = sphi 0, %s24
    %s41 = sphi 0, %s25
    %s47 = sphi 0, %s49
    %s50 = sphi 0, %s47
    %s51 = sphi 0, %s50
    %s67 = sphi 0, %s51
    %s73 = sphi 0, %s75
    %s76 = sphi 0, %s73
    %s77 = sphi 0, %s76
    %s93 = sphi 0, %s77
    %s97 = sphi 0, %s97
    %s99 = sphi 0, %s97
    %s100 = sphi 0, %s99
    %s114 = sphi 0, %s100
    %s118 = sphi 0, %s118
    %s120 = sphi 0, %s118
    %s121 = sphi 0, %s120
    %s135 = sphi 0, %s121
    %s141 = sphi 0, %s143
    %s144 = sphi 0, %s141
    %s145 = sphi 0, %s144
    %s161 = sphi 0, %s145
  $region4: #{basic_block_r1_forward.7} parent=0 // loop_header_branch
    %14 = sbr.rel (%p12) target = $region8
  $region5: #{basic_block_r1_forward.7} parent=0 // loop_body
    %s16 = ssub.s32 %s11, 1
    %s17 = ssub.s32 %s11, 2
    %s18 = sadd.s32 %s11, 1
    %s19 = ssub.s32 %s11, %s18
    %p20 = scmp.eq.s32.totalorder %s19, 0
    %s22 = sadd.s32 %s21, 1
    %s23 = scalar_select %p20, %s21, %s22
    %p26 = pneg %p20
    %p27 = scmp.eq.s32.totalorder %s11, 1
    %p28 = por %p26, %p27
    %p29 = scmp.ne.s32.totalorder %s21, %s24
    %p30 = scmp.eq.s32.totalorder %s11, 0
    %p31 = por %p29, %p30
    %p32 = scmp.ne.s32.totalorder %s21, %s24
    %p33 = scmp.eq.s32.totalorder %s16, 1
    %p34 = por %p32, %p33
    %p35 = scmp.ne.s32.totalorder %s24, %s25
    %p36 = scmp.eq.s32.totalorder %s16, 0
    %p37 = por %p35, %p36
    %p38 = scmp.ne.s32.totalorder %s24, %s25
    %p39 = scmp.eq.s32.totalorder %s17, 1
    %p40 = por %p38, %p39
    %p42 = scmp.ne.s32.totalorder %s25, %s41
    %p43 = scmp.eq.s32.totalorder %s17, 0
    %p44 = por %p42, %p43
    %s45 = ssub.s32 %s11, %s18
    %p46 = scmp.eq.s32.totalorder %s45, 0
    %s48 = sadd.s32 %s47, 1
    %s49 = scalar_select %p46, %s47, %s48
    %p52 = pneg %p46
    %p53 = scmp.eq.s32.totalorder %s11, 1
    %p54 = por %p52, %p53
    %p55 = scmp.ne.s32.totalorder %s47, %s50
    %p56 = scmp.eq.s32.totalorder %s11, 0
    %p57 = por %p55, %p56
    %p58 = scmp.ne.s32.totalorder %s47, %s50
    %p59 = scmp.eq.s32.totalorder %s16, 1
    %p60 = por %p58, %p59
    %p61 = scmp.ne.s32.totalorder %s50, %s51
    %p62 = scmp.eq.s32.totalorder %s16, 0
    %p63 = por %p61, %p62
    %p64 = scmp.ne.s32.totalorder %s50, %s51
    %p65 = scmp.eq.s32.totalorder %s17, 1
    %p66 = por %p64, %p65
    %p68 = scmp.ne.s32.totalorder %s51, %s67
    %p69 = scmp.eq.s32.totalorder %s17, 0
    %p70 = por %p68, %p69
    %s71 = ssub.s32 %s11, %s18
    %p72 = scmp.eq.s32.totalorder %s71, 0
    %s74 = sadd.s32 %s73, 1
    %s75 = scalar_select %p72, %s73, %s74
    %p78 = pneg %p72
    %p79 = scmp.eq.s32.totalorder %s11, 1
    %p80 = por %p78, %p79
    %p81 = scmp.ne.s32.totalorder %s73, %s76
    %p82 = scmp.eq.s32.totalorder %s11, 0
    %p83 = por %p81, %p82
    %p84 = scmp.ne.s32.totalorder %s73, %s76
    %p85 = scmp.eq.s32.totalorder %s16, 1
    %p86 = por %p84, %p85
    %p87 = scmp.ne.s32.totalorder %s76, %s77
    %p88 = scmp.eq.s32.totalorder %s16, 0
    %p89 = por %p87, %p88
    %p90 = scmp.ne.s32.totalorder %s76, %s77
    %p91 = scmp.eq.s32.totalorder %s17, 1
    %p92 = por %p90, %p91
    %p94 = scmp.ne.s32.totalorder %s77, %s93
    %p95 = scmp.eq.s32.totalorder %s17, 0
    %p96 = por %p94, %p95
    %s98 = sadd.s32 %s97, 1
    %p101 = scmp.eq.s32.totalorder %s11, 1
    %p102 = scmp.ne.s32.totalorder %s97, %s99
    %p103 = scmp.eq.s32.totalorder %s11, 0
    %p104 = por %p102, %p103
    %p105 = scmp.ne.s32.totalorder %s97, %s99
    %p106 = scmp.eq.s32.totalorder %s16, 1
    %p107 = por %p105, %p106
    %p108 = scmp.ne.s32.totalorder %s99, %s100
    %p109 = scmp.eq.s32.totalorder %s16, 0
    %p110 = por %p108, %p109
    %p111 = scmp.ne.s32.totalorder %s99, %s100
    %p112 = scmp.eq.s32.totalorder %s17, 1
    %p113 = por %p111, %p112
    %p115 = scmp.ne.s32.totalorder %s100, %s114
    %p116 = scmp.eq.s32.totalorder %s17, 0
    %p117 = por %p115, %p116
    %s119 = sadd.s32 %s118, 1
    %p122 = scmp.eq.s32.totalorder %s11, 1
    %p123 = scmp.ne.s32.totalorder %s118, %s120
    %p124 = scmp.eq.s32.totalorder %s11, 0
    %p125 = por %p123, %p124
    %p126 = scmp.ne.s32.totalorder %s118, %s120
    %p127 = scmp.eq.s32.totalorder %s16, 1
    %p128 = por %p126, %p127
    %p129 = scmp.ne.s32.totalorder %s120, %s121
    %p130 = scmp.eq.s32.totalorder %s16, 0
    %p131 = por %p129, %p130
    %p132 = scmp.ne.s32.totalorder %s120, %s121
    %p133 = scmp.eq.s32.totalorder %s17, 1
    %p134 = por %p132, %p133
    %p136 = scmp.ne.s32.totalorder %s121, %s135
    %p137 = scmp.eq.s32.totalorder %s17, 0
    %p138 = por %p136, %p137
    %s139 = ssub.s32 %s11, %s18
    %p140 = scmp.eq.s32.totalorder %s139, 0
    %s142 = sadd.s32 %s141, 1
    %s143 = scalar_select %p140, %s141, %s142
    %p146 = pneg %p140
    %p147 = scmp.eq.s32.totalorder %s11, 1
    %p148 = por %p146, %p147
    %p149 = scmp.ne.s32.totalorder %s141, %s144
    %p150 = scmp.eq.s32.totalorder %s11, 0
    %p151 = por %p149, %p150
    %p152 = scmp.ne.s32.totalorder %s141, %s144
    %p153 = scmp.eq.s32.totalorder %s16, 1
    %p154 = por %p152, %p153
    %p155 = scmp.ne.s32.totalorder %s144, %s145
    %p156 = scmp.eq.s32.totalorder %s16, 0
    %p157 = por %p155, %p156
    %p158 = scmp.ne.s32.totalorder %s144, %s145
    %p159 = scmp.eq.s32.totalorder %s17, 1
    %p160 = por %p158, %p159
    %p162 = scmp.ne.s32.totalorder %s145, %s161
    %p163 = scmp.eq.s32.totalorder %s17, 0
    %p164 = por %p162, %p163
    %p165 = scmp.le.s32.totalorder 1, %s11
    %p166 = scmp.lt.s32.totalorder %s11, 3
    %p167 = pnand %p165, %p166
    %p168 = pneg %p167
    // Predicated region
    $region9: #{basic_block_r1_forward.7} parent=5 // pred_check
      _
    $region10: #{basic_block_r1_forward.7} parent=5 // pred_check_branch
      %170 = sbr.rel (%p167) target = $region12
    $region11: #{basic_block_r1_forward.7} parent=5 // pred_region
      %s171 = ssub.s32 %s11, 1
      // Predicated region
      $region13: #{basic_block_r1_forward.7} parent=11 // pred_check
        %p172 = pneg %p110
      $region14: #{basic_block_r1_forward.7} parent=11 // pred_check_branch
        %174 = sbr.rel (%p172) target = $region16
      $region15: #{basic_block_r1_forward.7} parent=11 // pred_region
        _
      $region16: #{basic_block_r1_forward.7} parent=11 // pred_fallthru
        _
      // Predicated region
      $region17: #{basic_block_r1_forward.7} parent=11 // pred_check
        %p175 = pneg %p131
      $region18: #{basic_block_r1_forward.7} parent=11 // pred_check_branch
        %177 = sbr.rel (%p175) target = $region20
      $region19: #{basic_block_r1_forward.7} parent=11 // pred_region
        _
      $region20: #{basic_block_r1_forward.7} parent=11 // pred_fallthru
        _
    $region12: #{basic_block_r1_forward.7} parent=5 // pred_fallthru
      _
    %p178 = scmp.lt.s32.totalorder %s11, 2
    // Predicated region
    $region21: #{basic_block_r1_forward.7} parent=5 // pred_check
      %p179 = pneg %p178
    $region22: #{basic_block_r1_forward.7} parent=5 // pred_check_branch
      %181 = sbr.rel (%p179) target = $region24
    $region23: #{basic_block_r1_forward.7} parent=5 // pred_region
      // Predicated region
      $region25: #{basic_block_r1_forward.7} parent=23 // pred_check
        %p182 = pneg %p31
      $region26: #{basic_block_r1_forward.7} parent=23 // pred_check_branch
        %184 = sbr.rel (%p182) target = $region28
      $region27: #{basic_block_r1_forward.7} parent=23 // pred_region
        %s185 = smul.u32 16, %s11
        %p186 = scmp.lt.s32.totalorder %s185, 31
        %s187 = scalar_select %p186, %s185, 31
        %s188 = smul.addr %s187, 8
        %s189 = scalar_lea.vmem %s0, %s188
        %s190 = smul.u32 16, %s11
      $region28: #{basic_block_r1_forward.7} parent=23 // pred_fallthru
        _
      // Predicated region
      $region29: #{basic_block_r1_forward.7} parent=23 // pred_check
        %p191 = pneg %p57
      $region30: #{basic_block_r1_forward.7} parent=23 // pred_check_branch
        %193 = sbr.rel (%p191) target = $region32
      $region31: #{basic_block_r1_forward.7} parent=23 // pred_region
        %s194 = smul.u32 16, %s11
        %p195 = scmp.lt.s32.totalorder %s194, 31
        %s196 = scalar_select %p195, %s194, 31
        %s197 = smul.addr %s196, 8
        %s198 = scalar_lea.vmem %s1, %s197
        %s199 = smul.u32 16, %s11
      $region32: #{basic_block_r1_forward.7} parent=23 // pred_fallthru
        _
      // Predicated region
      $region33: #{basic_block_r1_forward.7} parent=23 // pred_check
        %p200 = pneg %p83
      $region34: #{basic_block_r1_forward.7} parent=23 // pred_check_branch
        %202 = sbr.rel (%p200) target = $region36
      $region35: #{basic_block_r1_forward.7} parent=23 // pred_region
        %s203 = smul.u32 16, %s11
        %p204 = scmp.lt.s32.totalorder %s203, 31
        %s205 = scalar_select %p204, %s203, 31
        %s206 = smul.addr %s205, 8
        %s207 = scalar_lea.vmem %s2, %s206
        %s208 = smul.u32 16, %s11
      $region36: #{basic_block_r1_forward.7} parent=23 // pred_fallthru
        _
    $region24: #{basic_block_r1_forward.7} parent=5 // pred_fallthru
      _
    %p209 = scmp.le.s32.totalorder 1, %s11
    %p210 = scmp.lt.s32.totalorder %s11, 3
    %p211 = pnand %p209, %p210
    %p212 = pneg %p211
    // Predicated region
    $region37: #{basic_block_r1_forward.7} parent=5 // pred_check
      _
    $region38: #{basic_block_r1_forward.7} parent=5 // pred_check_branch
      %214 = sbr.rel (%p211) target = $region40
    $region39: #{basic_block_r1_forward.7} parent=5 // pred_region
      %s215 = ssub.s32 %s11, 1
      %s216 = smul.u32 16, %s16
      %p217 = scmp.lt.s32.totalorder %s216, 31
      %s218 = scalar_select %p217, %s216, 31
      %s219 = smul.addr %s218, 8
      %s220 = scalar_lea.vmem %s0, %s219
      %p221 = pneg %p37
      %p222 = pneg %p34
      %s223 = smul.u32 16, %s16
      %p224 = scmp.lt.s32.totalorder %s223, 31
      %s225 = scalar_select %p224, %s223, 31
      %s226 = smul.addr %s225, 8
      %s227 = scalar_lea.vmem %s1, %s226
      %p228 = pneg %p63
      %p229 = pneg %p60
      %s230 = smul.u32 16, %s16
      %p231 = scmp.lt.s32.totalorder %s230, 31
      %s232 = scalar_select %p231, %s230, 31
      %s233 = smul.addr %s232, 8
      %s234 = scalar_lea.vmem %s2, %s233
      %p235 = pneg %p89
      %p236 = pneg %p86
      %p237 = pneg %p110
      %p238 = pneg %p107
      %p239 = pneg %p131
      %p240 = pneg %p128
      %p241 = pneg %p157
      %p242 = pneg %p154
      %s243 = smul.u32 16, %s16
      %p244 = scmp.lt.s32.totalorder %s243, 31
      %s245 = scalar_select %p244, %s243, 31
      %s246 = smul.addr %s245, 8
      %s247 = scalar_lea.vmem %s5, %s246
      %s248 = smul.u32 16, %s16
      %p249 = scmp.lt.s32.totalorder %s248, 31
      %s250 = scalar_select %p249, %s248, 31
      %s251 = smul.addr %s250, 8
      %s252 = scalar_lea.vmem %s0, %s251
      %s253 = smul.u32 16, %s16
      %s254 = smul.u32 16, %s16
      %p255 = scmp.lt.s32.totalorder %s254, 31
      %s256 = scalar_select %p255, %s254, 31
      %s257 = smul.addr %s256, 8
      %s258 = scalar_lea.vmem %s1, %s257
      %s259 = smul.u32 16, %s16
      %s260 = smul.u32 16, %s16
      %p261 = scmp.lt.s32.totalorder %s260, 31
      %s262 = scalar_select %p261, %s260, 31
      %s263 = smul.addr %s262, 8
      %s264 = scalar_lea.vmem %s2, %s263
      %s265 = smul.u32 16, %s16
      %s266 = smul.u32 16, %s16
      %p267 = scmp.lt.s32.totalorder %s266, 31
      %s268 = scalar_select %p267, %s266, 31
      %s269 = smul.addr %s268, 8
      %s270 = scalar_lea.vmem %s5, %s269
      %s271 = smul.u32 16, %s16
      %v272 = vld [vmem:[%s252] sm:$0xff]
      %v273 = vld [vmem:[%s252 + $0x8] sm:$0xff]
      %v274 = vld [vmem:[%s252 + $0x10] sm:$0xff]
      %v275 = vld [vmem:[%s252 + $0x18] sm:$0xff]
      %v276 = vld [vmem:[%s252 + $0x20] sm:$0xff]
      %v277 = vld [vmem:[%s252 + $0x28] sm:$0xff]
      %v278 = vld [vmem:[%s252 + $0x30] sm:$0xff]
      %v279 = vld [vmem:[%s252 + $0x38] sm:$0xff]
      %v280 = vld [vmem:[%s252 + $0x40] sm:$0xff]
      %v281 = vld [vmem:[%s252 + $0x48] sm:$0xff]
      %v282 = vld [vmem:[%s252 + $0x50] sm:$0xff]
      %v283 = vld [vmem:[%s252 + $0x58] sm:$0xff]
      %v284 = vld [vmem:[%s252 + $0x60] sm:$0xff]
      %v285 = vld [vmem:[%s252 + $0x68] sm:$0xff]
      %v286 = vld [vmem:[%s252 + $0x70] sm:$0xff]
      %v287 = vld [vmem:[%s252 + $0x78] sm:$0xff]
      %v288 = vld [vmem:[%s3] sm:$0x1]
      %v290 = vlaneseq
      %v291 = vshrl.u32 %v290, 7
      %v292 = vsub.s32 0, %v291
      %v293 = vrot.slane %v288, %v292
      %v295 = vmul.f32 %v272, %v293
      %v296 = vmul.f32 %v273, %v293
      %v297 = vmul.f32 %v274, %v293
      %v298 = vmul.f32 %v275, %v293
      %v299 = vmul.f32 %v276, %v293
      %v300 = vmul.f32 %v277, %v293
      %v301 = vmul.f32 %v278, %v293
      %v302 = vmul.f32 %v279, %v293
      %v303 = vmul.f32 %v280, %v293
      %v304 = vmul.f32 %v281, %v293
      %v305 = vmul.f32 %v282, %v293
      %v306 = vmul.f32 %v283, %v293
      %v307 = vmul.f32 %v284, %v293
      %v308 = vmul.f32 %v285, %v293
      %v309 = vmul.f32 %v286, %v293
      %v310 = vmul.f32 %v287, %v293
      %v311 = vld [vmem:[%s4] sm:$0x1]
      %v313 = vlaneseq
      %v314 = vshrl.u32 %v313, 7
      %v315 = vsub.s32 0, %v314
      %v316 = vrot.slane %v311, %v315
      %v318 = vadd.f32 %v295, %v316
      %v319 = vadd.f32 %v296, %v316
      %v320 = vadd.f32 %v297, %v316
      %v321 = vadd.f32 %v298, %v316
      %v322 = vadd.f32 %v299, %v316
      %v323 = vadd.f32 %v300, %v316
      %v324 = vadd.f32 %v301, %v316
      %v325 = vadd.f32 %v302, %v316
      %v326 = vadd.f32 %v303, %v316
      %v327 = vadd.f32 %v304, %v316
      %v328 = vadd.f32 %v305, %v316
      %v329 = vadd.f32 %v306, %v316
      %v330 = vadd.f32 %v307, %v316
      %v331 = vadd.f32 %v308, %v316
      %v332 = vadd.f32 %v309, %v316
      %v333 = vadd.f32 %v310, %v316
      %v334 = vld [vmem:[%s258] sm:$0xff]
      %v335 = vld [vmem:[%s258 + $0x8] sm:$0xff]
      %v336 = vld [vmem:[%s258 + $0x10] sm:$0xff]
      %v337 = vld [vmem:[%s258 + $0x18] sm:$0xff]
      %v338 = vld [vmem:[%s258 + $0x20] sm:$0xff]
      %v339 = vld [vmem:[%s258 + $0x28] sm:$0xff]
      %v340 = vld [vmem:[%s258 + $0x30] sm:$0xff]
      %v341 = vld [vmem:[%s258 + $0x38] sm:$0xff]
      %v342 = vld [vmem:[%s258 + $0x40] sm:$0xff]
      %v343 = vld [vmem:[%s258 + $0x48] sm:$0xff]
      %v344 = vld [vmem:[%s258 + $0x50] sm:$0xff]
      %v345 = vld [vmem:[%s258 + $0x58] sm:$0xff]
      %v346 = vld [vmem:[%s258 + $0x60] sm:$0xff]
      %v347 = vld [vmem:[%s258 + $0x68] sm:$0xff]
      %v348 = vld [vmem:[%s258 + $0x70] sm:$0xff]
      %v349 = vld [vmem:[%s258 + $0x78] sm:$0xff]
      %v350 = vadd.f32 %v318, %v334
      %v351 = vadd.f32 %v319, %v335
      %v352 = vadd.f32 %v320, %v336
      %v353 = vadd.f32 %v321, %v337
      %v354 = vadd.f32 %v322, %v338
      %v355 = vadd.f32 %v323, %v339
      %v356 = vadd.f32 %v324, %v340
      %v357 = vadd.f32 %v325, %v341
      %v358 = vadd.f32 %v326, %v342
      %v359 = vadd.f32 %v327, %v343
      %v360 = vadd.f32 %v328, %v344
      %v361 = vadd.f32 %v329, %v345
      %v362 = vadd.f32 %v330, %v346
      %v363 = vadd.f32 %v331, %v347
      %v364 = vadd.f32 %v332, %v348
      %v365 = vadd.f32 %v333, %v349
      %v366 = vld [vmem:[%s264] sm:$0xff]
      %v367 = vld [vmem:[%s264 + $0x8] sm:$0xff]
      %v368 = vld [vmem:[%s264 + $0x10] sm:$0xff]
      %v369 = vld [vmem:[%s264 + $0x18] sm:$0xff]
      %v370 = vld [vmem:[%s264 + $0x20] sm:$0xff]
      %v371 = vld [vmem:[%s264 + $0x28] sm:$0xff]
      %v372 = vld [vmem:[%s264 + $0x30] sm:$0xff]
      %v373 = vld [vmem:[%s264 + $0x38] sm:$0xff]
      %v374 = vld [vmem:[%s264 + $0x40] sm:$0xff]
      %v375 = vld [vmem:[%s264 + $0x48] sm:$0xff]
      %v376 = vld [vmem:[%s264 + $0x50] sm:$0xff]
      %v377 = vld [vmem:[%s264 + $0x58] sm:$0xff]
      %v378 = vld [vmem:[%s264 + $0x60] sm:$0xff]
      %v379 = vld [vmem:[%s264 + $0x68] sm:$0xff]
      %v380 = vld [vmem:[%s264 + $0x70] sm:$0xff]
      %v381 = vld [vmem:[%s264 + $0x78] sm:$0xff]
      %vm382 = vcmp.gt.f32.partialorder %v366, 0.5
      %vm383 = vcmp.gt.f32.partialorder %v367, 0.5
      %vm384 = vcmp.gt.f32.partialorder %v368, 0.5
      %vm385 = vcmp.gt.f32.partialorder %v369, 0.5
      %vm386 = vcmp.gt.f32.partialorder %v370, 0.5
      %vm387 = vcmp.gt.f32.partialorder %v371, 0.5
      %vm388 = vcmp.gt.f32.partialorder %v372, 0.5
      %vm389 = vcmp.gt.f32.partialorder %v373, 0.5
      %vm390 = vcmp.gt.f32.partialorder %v374, 0.5
      %vm391 = vcmp.gt.f32.partialorder %v375, 0.5
      %vm392 = vcmp.gt.f32.partialorder %v376, 0.5
      %vm393 = vcmp.gt.f32.partialorder %v377, 0.5
      %vm394 = vcmp.gt.f32.partialorder %v378, 0.5
      %vm395 = vcmp.gt.f32.partialorder %v379, 0.5
      %vm396 = vcmp.gt.f32.partialorder %v380, 0.5
      %vm397 = vcmp.gt.f32.partialorder %v381, 0.5
      %v398 = vmax.f32 %v350, 0.0
      %v399 = vmax.f32 %v351, 0.0
      %v400 = vmax.f32 %v352, 0.0
      %v401 = vmax.f32 %v353, 0.0
      %v402 = vmax.f32 %v354, 0.0
      %v403 = vmax.f32 %v355, 0.0
      %v404 = vmax.f32 %v356, 0.0
      %v405 = vmax.f32 %v357, 0.0
      %v406 = vmax.f32 %v358, 0.0
      %v407 = vmax.f32 %v359, 0.0
      %v408 = vmax.f32 %v360, 0.0
      %v409 = vmax.f32 %v361, 0.0
      %v410 = vmax.f32 %v362, 0.0
      %v411 = vmax.f32 %v363, 0.0
      %v412 = vmax.f32 %v364, 0.0
      %v413 = vmax.f32 %v365, 0.0
      %v414 = vsel %vm382, 1, 0
      %v415 = vsel %vm383, 1, 0
      %v416 = vsel %vm384, 1, 0
      %v417 = vsel %vm385, 1, 0
      %v418 = vsel %vm386, 1, 0
      %v419 = vsel %vm387, 1, 0
      %v420 = vsel %vm388, 1, 0
      %v421 = vsel %vm389, 1, 0
      %v422 = vsel %vm390, 1, 0
      %v423 = vsel %vm391, 1, 0
      %v424 = vsel %vm392, 1, 0
      %v425 = vsel %vm393, 1, 0
      %v426 = vsel %vm394, 1, 0
      %v427 = vsel %vm395, 1, 0
      %v428 = vsel %vm396, 1, 0
      %v429 = vsel %vm397, 1, 0
      %430 = vset.pattern.permute.xlu0 0
      %431 = vperm.xlu0 %430, %v414
      %v432 = vpop.permute.xlu0 %431
      %433 = vset.pattern.permute.xlu0 0
      %434 = vperm.xlu0 %433, %v415
      %v435 = vpop.permute.xlu0 %434
      %436 = vset.pattern.permute.xlu0 0
      %437 = vperm.xlu0 %436, %v416
      %v438 = vpop.permute.xlu0 %437
      %439 = vset.pattern.permute.xlu0 0
      %440 = vperm.xlu0 %439, %v417
      %v441 = vpop.permute.xlu0 %440
      %442 = vset.pattern.permute.xlu0 0
      %443 = vperm.xlu0 %442, %v418
      %v444 = vpop.permute.xlu0 %443
      %445 = vset.pattern.permute.xlu0 0
      %446 = vperm.xlu0 %445, %v419
      %v447 = vpop.permute.xlu0 %446
      %448 = vset.pattern.permute.xlu0 0
      %449 = vperm.xlu0 %448, %v420
      %v450 = vpop.permute.xlu0 %449
      %451 = vset.pattern.permute.xlu0 0
      %452 = vperm.xlu0 %451, %v421
      %v453 = vpop.permute.xlu0 %452
      %454 = vset.pattern.permute.xlu0 0
      %455 = vperm.xlu0 %454, %v422
      %v456 = vpop.permute.xlu0 %455
      %457 = vset.pattern.permute.xlu0 0
      %458 = vperm.xlu0 %457, %v423
      %v459 = vpop.permute.xlu0 %458
      %460 = vset.pattern.permute.xlu0 0
      %461 = vperm.xlu0 %460, %v424
      %v462 = vpop.permute.xlu0 %461
      %463 = vset.pattern.permute.xlu0 0
      %464 = vperm.xlu0 %463, %v425
      %v465 = vpop.permute.xlu0 %464
      %466 = vset.pattern.permute.xlu0 0
      %467 = vperm.xlu0 %466, %v426
      %v468 = vpop.permute.xlu0 %467
      %469 = vset.pattern.permute.xlu0 0
      %470 = vperm.xlu0 %469, %v427
      %v471 = vpop.permute.xlu0 %470
      %472 = vset.pattern.permute.xlu0 0
      %473 = vperm.xlu0 %472, %v428
      %v474 = vpop.permute.xlu0 %473
      %475 = vset.pattern.permute.xlu0 0
      %476 = vperm.xlu0 %475, %v429
      %v477 = vpop.permute.xlu0 %476
      %vm478 = vcmp.eq.s32.totalorder %v432, 1
      %vm479 = vcmp.eq.s32.totalorder %v435, 1
      %vm480 = vcmp.eq.s32.totalorder %v438, 1
      %vm481 = vcmp.eq.s32.totalorder %v441, 1
      %vm482 = vcmp.eq.s32.totalorder %v444, 1
      %vm483 = vcmp.eq.s32.totalorder %v447, 1
      %vm484 = vcmp.eq.s32.totalorder %v450, 1
      %vm485 = vcmp.eq.s32.totalorder %v453, 1
      %vm486 = vcmp.eq.s32.totalorder %v456, 1
      %vm487 = vcmp.eq.s32.totalorder %v459, 1
      %vm488 = vcmp.eq.s32.totalorder %v462, 1
      %vm489 = vcmp.eq.s32.totalorder %v465, 1
      %vm490 = vcmp.eq.s32.totalorder %v468, 1
      %vm491 = vcmp.eq.s32.totalorder %v471, 1
      %vm492 = vcmp.eq.s32.totalorder %v474, 1
      %vm493 = vcmp.eq.s32.totalorder %v477, 1
      %v494 = vsel %vm478, %v398, 0.0
      %v495 = vsel %vm479, %v399, 0.0
      %v496 = vsel %vm480, %v400, 0.0
      %v497 = vsel %vm481, %v401, 0.0
      %v498 = vsel %vm482, %v402, 0.0
      %v499 = vsel %vm483, %v403, 0.0
      %v500 = vsel %vm484, %v404, 0.0
      %v501 = vsel %vm485, %v405, 0.0
      %v502 = vsel %vm486, %v406, 0.0
      %v503 = vsel %vm487, %v407, 0.0
      %v504 = vsel %vm488, %v408, 0.0
      %v505 = vsel %vm489, %v409, 0.0
      %v506 = vsel %vm490, %v410, 0.0
      %v507 = vsel %vm491, %v411, 0.0
      %v508 = vsel %vm492, %v412, 0.0
      %v509 = vsel %vm493, %v413, 0.0
      %510 = vst [vmem:[%s270] sm:$0xff] %v494
      %511 = vst [vmem:[%s270 + $0x8] sm:$0xff] %v495
      %512 = vst [vmem:[%s270 + $0x10] sm:$0xff] %v496
      %513 = vst [vmem:[%s270 + $0x18] sm:$0xff] %v497
      %514 = vst [vmem:[%s270 + $0x20] sm:$0xff] %v498
      %515 = vst [vmem:[%s270 + $0x28] sm:$0xff] %v499
      %516 = vst [vmem:[%s270 + $0x30] sm:$0xff] %v500
      %517 = vst [vmem:[%s270 + $0x38] sm:$0xff] %v501
      %518 = vst [vmem:[%s270 + $0x40] sm:$0xff] %v502
      %519 = vst [vmem:[%s270 + $0x48] sm:$0xff] %v503
      %520 = vst [vmem:[%s270 + $0x50] sm:$0xff] %v504
      %521 = vst [vmem:[%s270 + $0x58] sm:$0xff] %v505
      %522 = vst [vmem:[%s270 + $0x60] sm:$0xff] %v506
      %523 = vst [vmem:[%s270 + $0x68] sm:$0xff] %v507
      %524 = vst [vmem:[%s270 + $0x70] sm:$0xff] %v508
      %525 = vst [vmem:[%s270 + $0x78] sm:$0xff] %v509
      %s526 = smul.u32 16, %s16
      %p527 = scmp.lt.s32.totalorder %s526, 31
      %s528 = scalar_select %p527, %s526, 31
      %s529 = smul.addr %s528, 8
      %s530 = scalar_lea.vmem %s5, %s529
      // Predicated region
      $region41: #{basic_block_r1_forward.7} parent=39 // pred_check
        %p531 = pneg %p154
      $region42: #{basic_block_r1_forward.7} parent=39 // pred_check_branch
        %533 = sbr.rel (%p531) target = $region44
      $region43: #{basic_block_r1_forward.7} parent=39 // pred_region
        %s534 = smul.u32 16, %s16
      $region44: #{basic_block_r1_forward.7} parent=39 // pred_fallthru
        _
    $region40: #{basic_block_r1_forward.7} parent=5 // pred_fallthru
      _
    %p535 = scmp.le.s32.totalorder 2, %s11
    // Predicated region
    $region45: #{basic_block_r1_forward.7} parent=5 // pred_check
      %p536 = pneg %p535
    $region46: #{basic_block_r1_forward.7} parent=5 // pred_check_branch
      %538 = sbr.rel (%p536) target = $region48
    $region47: #{basic_block_r1_forward.7} parent=5 // pred_region
      %s539 = ssub.s32 %s11, 2
      // Predicated region
      $region49: #{basic_block_r1_forward.7} parent=47 // pred_check
        %p540 = pneg %p160
      $region50: #{basic_block_r1_forward.7} parent=47 // pred_check_branch
        %542 = sbr.rel (%p540) target = $region52
      $region51: #{basic_block_r1_forward.7} parent=47 // pred_region
        %s543 = smul.u32 16, %s17
        %p544 = scmp.lt.s32.totalorder %s543, 31
        %s545 = scalar_select %p544, %s543, 31
        %s546 = smul.addr %s545, 8
        %s547 = scalar_lea.vmem %s5, %s546
      $region52: #{basic_block_r1_forward.7} parent=47 // pred_fallthru
        _
    $region48: #{basic_block_r1_forward.7} parent=5 // pred_fallthru
      _
  $region6: #{basic_block_r1_forward.7} parent=0 // loop_footer
    %s15 = sadd.s32 1, %s11
  $region7: #{basic_block_r1_forward.7} parent=0 // loop_footer_branch
    %10 = sbr.rel target = $region3
  $region8: #{basic_block_r1_forward.7} parent=0 // loop_exit
    _

// kernel: basic_block_r1_forward.6
$region0: #{basic_block_r1_forward.6}
  #allocation0 [shape = 'u32[]', space=smem, size = 0x4, offset = 0x4, fixed_abs, tag = 'smem constant byte address 0x4 - core index']
  #allocation1 [shape = 'u32[144,128]{1,0:T(1,128)}', space=vmem, size = 0x12000, scoped, tag = 'internal scratch']
  #allocation2 [shape = 'f32[2,96,128]{2,1,0:T(8,128)}', space=vmem, size = 0x18000, scoped, tag = 'scratch operand']
  #allocation3 [shape = 's32[2]{0}', space=sflag, size = 0x8, scoped, tag = 'scratch operand']
  #allocation4 [shape = 's32[]', space=sflag, size = 0x4, offset = 0, fixed_abs, tag = 'sflag constant byte address 0x0 - dummy sync flag']
  #allocation5 [shape = 's32[]', space=sflag, size = 0x4, offset = 0, fixed_abs, tag = 'sflag constant byte address 0x0 - dummy sync flag']
  %s0 = inlined_call_operand.vmem [shape: f32[256,1], index: 0, kind: input, shape index: {}]
  %s1 = inlined_call_operand.vmem [shape: f32[9,128,128], index: 1, kind: input, shape index: {}]
  %s2 = inlined_call_operand.vmem [shape: f32[288,128], index: 2, kind: input, shape index: {}]
  %s3 = inlined_call_operand.vmem [shape: f32[256,128], index: 3, kind: output, shape index: {0}]
  %s4 = inlined_call_operand.vmem [shape: f32[32,128], index: 4, kind: output, shape index: {1}]
  %5 = xla_tuple %s3, %s4
  %s6 = sld [smem:[#allocation0]]
  $region125: #{basic_block_r1_forward.6} parent=0
    _
  %s8 = ssub.s32 1, %s6
  %s9 = scalar_select 0, %s8, %s6
  loop: start=0, step=1, limit=6
  $region2: #{basic_block_r1_forward.6} parent=0 // loop_pre_header
    _
  $region3: #{basic_block_r1_forward.6} parent=0 // loop_header
    %s11 = sphi 0, %s15
    %p12 = scmp.ge.s32.totalorder %s11, 6
    %s21 = sphi 0, %s23
    %s24 = sphi 0, %s21
    %s25 = sphi 0, %s24
    %s41 = sphi 0, %s25
    %s45 = sphi 0, %s45
    %s47 = sphi 0, %s45
    %s48 = sphi 0, %s47
    %s62 = sphi 0, %s48
    %s68 = sphi 0, %s70
    %s71 = sphi 0, %s68
    %s72 = sphi 0, %s71
    %s88 = sphi 0, %s72
    %s94 = sphi 0, %s96
    %s97 = sphi 0, %s94
    %s98 = sphi 0, %s97
    %s114 = sphi 0, %s98
  $region4: #{basic_block_r1_forward.6} parent=0 // loop_header_branch
    %14 = sbr.rel (%p12) target = $region8
  $region5: #{basic_block_r1_forward.6} parent=0 // loop_body
    %s16 = ssub.s32 %s11, 1
    %s17 = ssub.s32 %s11, 2
    %s18 = sadd.s32 %s11, 1
    %s19 = ssub.s32 %s11, %s18
    %p20 = scmp.eq.s32.totalorder %s19, 0
    %s22 = sadd.s32 %s21, 1
    %s23 = scalar_select %p20, %s21, %s22
    %p26 = pneg %p20
    %p27 = scmp.eq.s32.totalorder %s11, 3
    %p28 = por %p26, %p27
    %p29 = scmp.ne.s32.totalorder %s21, %s24
    %p30 = scmp.eq.s32.totalorder %s11, 0
    %p31 = por %p29, %p30
    %p32 = scmp.ne.s32.totalorder %s21, %s24
    %p33 = scmp.eq.s32.totalorder %s16, 3
    %p34 = por %p32, %p33
    %p35 = scmp.ne.s32.totalorder %s24, %s25
    %p36 = scmp.eq.s32.totalorder %s16, 0
    %p37 = por %p35, %p36
    %p38 = scmp.ne.s32.totalorder %s24, %s25
    %p39 = scmp.eq.s32.totalorder %s17, 3
    %p40 = por %p38, %p39
    %p42 = scmp.ne.s32.totalorder %s25, %s41
    %p43 = scmp.eq.s32.totalorder %s17, 0
    %p44 = por %p42, %p43
    %s46 = sadd.s32 %s45, 1
    %p49 = scmp.eq.s32.totalorder %s11, 3
    %p50 = scmp.ne.s32.totalorder %s45, %s47
    %p51 = scmp.eq.s32.totalorder %s11, 0
    %p52 = por %p50, %p51
    %p53 = scmp.ne.s32.totalorder %s45, %s47
    %p54 = scmp.eq.s32.totalorder %s16, 3
    %p55 = por %p53, %p54
    %p56 = scmp.ne.s32.totalorder %s47, %s48
    %p57 = scmp.eq.s32.totalorder %s16, 0
    %p58 = por %p56, %p57
    %p59 = scmp.ne.s32.totalorder %s47, %s48
    %p60 = scmp.eq.s32.totalorder %s17, 3
    %p61 = por %p59, %p60
    %p63 = scmp.ne.s32.totalorder %s48, %s62
    %p64 = scmp.eq.s32.totalorder %s17, 0
    %p65 = por %p63, %p64
    %s66 = ssub.s32 %s11, %s18
    %p67 = scmp.eq.s32.totalorder %s66, 0
    %s69 = sadd.s32 %s68, 1
    %s70 = scalar_select %p67, %s68, %s69
    %p73 = pneg %p67
    %p74 = scmp.eq.s32.totalorder %s11, 3
    %p75 = por %p73, %p74
    %p76 = scmp.ne.s32.totalorder %s68, %s71
    %p77 = scmp.eq.s32.totalorder %s11, 0
    %p78 = por %p76, %p77
    %p79 = scmp.ne.s32.totalorder %s68, %s71
    %p80 = scmp.eq.s32.totalorder %s16, 3
    %p81 = por %p79, %p80
    %p82 = scmp.ne.s32.totalorder %s71, %s72
    %p83 = scmp.eq.s32.totalorder %s16, 0
    %p84 = por %p82, %p83
    %p85 = scmp.ne.s32.totalorder %s71, %s72
    %p86 = scmp.eq.s32.totalorder %s17, 3
    %p87 = por %p85, %p86
    %p89 = scmp.ne.s32.totalorder %s72, %s88
    %p90 = scmp.eq.s32.totalorder %s17, 0
    %p91 = por %p89, %p90
    %s92 = ssub.s32 %s11, %s18
    %p93 = scmp.eq.s32.totalorder %s92, 0
    %s95 = sadd.s32 %s94, 1
    %s96 = scalar_select %p93, %s94, %s95
    %p99 = pneg %p93
    %p100 = scmp.eq.s32.totalorder %s11, 3
    %p101 = por %p99, %p100
    %p102 = scmp.ne.s32.totalorder %s94, %s97
    %p103 = scmp.eq.s32.totalorder %s11, 0
    %p104 = por %p102, %p103
    %p105 = scmp.ne.s32.totalorder %s94, %s97
    %p106 = scmp.eq.s32.totalorder %s16, 3
    %p107 = por %p105, %p106
    %p108 = scmp.ne.s32.totalorder %s97, %s98
    %p109 = scmp.eq.s32.totalorder %s16, 0
    %p110 = por %p108, %p109
    %p111 = scmp.ne.s32.totalorder %s97, %s98
    %p112 = scmp.eq.s32.totalorder %s17, 3
    %p113 = por %p111, %p112
    %p115 = scmp.ne.s32.totalorder %s98, %s114
    %p116 = scmp.eq.s32.totalorder %s17, 0
    %p117 = por %p115, %p116
    %p118 = scmp.le.s32.totalorder 1, %s11
    %p119 = scmp.lt.s32.totalorder %s11, 5
    %p120 = pnand %p118, %p119
    %p121 = pneg %p120
    // Predicated region
    $region9: #{basic_block_r1_forward.6} parent=5 // pred_check
      _
    $region10: #{basic_block_r1_forward.6} parent=5 // pred_check_branch
      %123 = sbr.rel (%p120) target = $region12
    $region11: #{basic_block_r1_forward.6} parent=5 // pred_region
      %s124 = ssub.s32 %s11, 1
      // Predicated region
      $region13: #{basic_block_r1_forward.6} parent=11 // pred_check
        %p125 = pneg %p58
      $region14: #{basic_block_r1_forward.6} parent=11 // pred_check_branch
        %127 = sbr.rel (%p125) target = $region16
      $region15: #{basic_block_r1_forward.6} parent=11 // pred_region
        _
      $region16: #{basic_block_r1_forward.6} parent=11 // pred_fallthru
        _
    $region12: #{basic_block_r1_forward.6} parent=5 // pred_fallthru
      _
    %p128 = scmp.lt.s32.totalorder %s11, 4
    // Predicated region
    $region17: #{basic_block_r1_forward.6} parent=5 // pred_check
      %p129 = pneg %p128
    $region18: #{basic_block_r1_forward.6} parent=5 // pred_check_branch
      %131 = sbr.rel (%p129) target = $region20
    $region19: #{basic_block_r1_forward.6} parent=5 // pred_region
      // Predicated region
      $region21: #{basic_block_r1_forward.6} parent=19 // pred_check
        %p132 = pneg %p31
      $region22: #{basic_block_r1_forward.6} parent=19 // pred_check_branch
        %134 = sbr.rel (%p132) target = $region24
      $region23: #{basic_block_r1_forward.6} parent=19 // pred_region
        %s135 = smul.u32 8, %s11
        %p136 = scmp.lt.s32.totalorder %s135, 31
        %s137 = scalar_select %p136, %s135, 31
        %s138 = smul.addr %s137, 8
        %s139 = scalar_lea.vmem %s0, %s138
        %s140 = smul.u32 8, %s11
      $region24: #{basic_block_r1_forward.6} parent=19 // pred_fallthru
        _
    $region20: #{basic_block_r1_forward.6} parent=5 // pred_fallthru
      _
    %p141 = scmp.le.s32.totalorder 1, %s11
    %p142 = scmp.lt.s32.totalorder %s11, 5
    %p143 = pnand %p141, %p142
    %p144 = pneg %p143
    // Predicated region
    $region25: #{basic_block_r1_forward.6} parent=5 // pred_check
      _
    $region26: #{basic_block_r1_forward.6} parent=5 // pred_check_branch
      %146 = sbr.rel (%p143) target = $region28
    $region27: #{basic_block_r1_forward.6} parent=5 // pred_region
      %s147 = ssub.s32 %s11, 1
      %s148 = smul.u32 8, %s16
      %p149 = scmp.lt.s32.totalorder %s148, 31
      %s150 = scalar_select %p149, %s148, 31
      %s151 = smul.addr %s150, 8
      %s152 = scalar_lea.vmem %s0, %s151
      %p153 = pneg %p37
      %p154 = pneg %p34
      %p155 = pneg %p58
      %p156 = pneg %p55
      %p157 = pneg %p84
      %p158 = pneg %p81
      %s159 = smul.u32 8, %s16
      %p160 = scmp.lt.s32.totalorder %s159, 31
      %s161 = scalar_select %p160, %s159, 31
      %s162 = smul.addr %s161, 8
      %s163 = scalar_lea.vmem %s3, %s162
      %p164 = pneg %p110
      %p165 = pneg %p107
      %p166 = scmp.lt.s32.totalorder %s16, 3
      %s167 = scalar_select %p166, %s16, 3
      %s168 = smul.addr %s167, 8
      %s169 = scalar_lea.vmem %s4, %s168
      %s170 = smul.u32 8, %s16
      %p171 = scmp.lt.s32.totalorder %s170, 31
      %s172 = scalar_select %p171, %s170, 31
      %s173 = smul.addr %s172, 8
      %s174 = scalar_lea.vmem %s0, %s173
      %s175 = smul.u32 8, %s16
      %s176 = smul.u32 8, %s16
      %p177 = scmp.lt.s32.totalorder %s176, 31
      %s178 = scalar_select %p177, %s176, 31
      %s179 = smul.addr %s178, 8
      %s180 = scalar_lea.vmem %s3, %s179
      %s181 = smul.u32 8, %s16
      %p182 = scmp.lt.s32.totalorder %s16, 3
      %s183 = scalar_select %p182, %s16, 3
      %s184 = smul.addr %s183, 8
      %s185 = scalar_lea.vmem %s4, %s184
      %p186 = scmp.eq.s32.totalorder %s16, 0
      // Predicated region
      $region29: #{basic_block_r1_forward.6} parent=27 // pred_check
        %p187 = pneg %p186
      $region30: #{basic_block_r1_forward.6} parent=27 // pred_check_branch
        %189 = sbr.rel (%p187) target = $region32
      $region31: #{basic_block_r1_forward.6} parent=27 // pred_region
        %s190 = smul.u32 %s16, 64
        %s191 = scalar_lea.vmem %s2, %s190
        %p193 = scmp.lt.u32.totalorder 96, 8
        %p194 = pneg %p193
        // Predicated region
        $region33: #{basic_block_r1_forward.6} parent=31 // pred_check
          _
        $region34: #{basic_block_r1_forward.6} parent=31 // pred_check_branch
          %196 = sbr.rel (%p193) target = $region36
        $region35: #{basic_block_r1_forward.6} parent=31 // pred_region
          %s212 = sand.u32 96, 7
          %p213 = scmp.eq.s32.totalorder %s212, 0
          // Predicated region
          $region48: #{basic_block_r1_forward.6} parent=35 // pred_check
            %p214 = pneg %p213
          $region49: #{basic_block_r1_forward.6} parent=35 // pred_check_branch
            %216 = sbr.rel (%p214) target = $region51
          $region50: #{basic_block_r1_forward.6} parent=35 // pred_region
            loop: start=0, step=1, limit=1
            $region52: #{basic_block_r1_forward.6} parent=50 // loop_pre_header
              _
            $region53: #{basic_block_r1_forward.6} parent=50 // loop_header
              %s218 = sphi 0, %s222
              %p219 = scmp.ge.s32.totalorder %s218, 1
              %s223 = sphi %s191, %s191
              %s224 = sphi [#allocation2], [#allocation2]
            $region54: #{basic_block_r1_forward.6} parent=50 // loop_header_branch
              %221 = sbr.rel (%p219) target = $region58
            $region55: #{basic_block_r1_forward.6} parent=50 // loop_body
              %v225 = vld [vmem:[%s223] sm:$0xff]
              %226 = vst [vmem:[%s224] sm:$0xff] %v225
              %v227 = vld [vmem:[%s223 + $0x8] sm:$0xff]
              %228 = vst [vmem:[%s224 + $0x8] sm:$0xff] %v227
              %v229 = vld [vmem:[%s223 + $0x10] sm:$0xff]
              %230 = vst [vmem:[%s224 + $0x10] sm:$0xff] %v229
              %v231 = vld [vmem:[%s223 + $0x18] sm:$0xff]
              %232 = vst [vmem:[%s224 + $0x18] sm:$0xff] %v231
              %v233 = vld [vmem:[%s223 + $0x20] sm:$0xff]
              %234 = vst [vmem:[%s224 + $0x20] sm:$0xff] %v233
              %v235 = vld [vmem:[%s223 + $0x28] sm:$0xff]
              %236 = vst [vmem:[%s224 + $0x28] sm:$0xff] %v235
              %v237 = vld [vmem:[%s223 + $0x30] sm:$0xff]
              %238 = vst [vmem:[%s224 + $0x30] sm:$0xff] %v237
              %v239 = vld [vmem:[%s223 + $0x38] sm:$0xff]
              %240 = vst [vmem:[%s224 + $0x38] sm:$0xff] %v239
              %v241 = vld [vmem:[%s223 + $0x40] sm:$0xff]
              %242 = vst [vmem:[%s224 + $0x40] sm:$0xff] %v241
              %v243 = vld [vmem:[%s223 + $0x48] sm:$0xff]
              %244 = vst [vmem:[%s224 + $0x48] sm:$0xff] %v243
              %v245 = vld [vmem:[%s223 + $0x50] sm:$0xff]
              %246 = vst [vmem:[%s224 + $0x50] sm:$0xff] %v245
              %v247 = vld [vmem:[%s223 + $0x58] sm:$0xff]
              %248 = vst [vmem:[%s224 + $0x58] sm:$0xff] %v247
            $region56: #{basic_block_r1_forward.6} parent=50 // loop_footer
              %s222 = sadd.s32 1, %s218
            $region57: #{basic_block_r1_forward.6} parent=50 // loop_footer_branch
              %217 = sbr.rel target = $region53
            $region58: #{basic_block_r1_forward.6} parent=50 // loop_exit
              _
          $region51: #{basic_block_r1_forward.6} parent=35 // pred_fallthru
            _
          %p249 = pneg %p213
          // Predicated region
          $region59: #{basic_block_r1_forward.6} parent=35 // pred_check
            _
          $region60: #{basic_block_r1_forward.6} parent=35 // pred_check_branch
            %251 = sbr.rel (%p213) target = $region62
          $region61: #{basic_block_r1_forward.6} parent=35 // pred_region
            %s252 = sand.u32 96, 7
          $region62: #{basic_block_r1_forward.6} parent=35 // pred_fallthru
            _
        $region36: #{basic_block_r1_forward.6} parent=31 // pred_fallthru
          _
        // Predicated region
        $region37: #{basic_block_r1_forward.6} parent=31 // pred_check
          %p197 = pneg %p193
        $region38: #{basic_block_r1_forward.6} parent=31 // pred_check_branch
          %199 = sbr.rel (%p197) target = $region40
        $region39: #{basic_block_r1_forward.6} parent=31 // pred_region
          %s200 = sshll.u32 1, 96
          %s201 = ssub.s32 %s200, 1
          loop: start=0, step=1, limit=1
          $region41: #{basic_block_r1_forward.6} parent=39 // loop_pre_header
            _
          $region42: #{basic_block_r1_forward.6} parent=39 // loop_header
            %s203 = sphi 0, %s207
            %p204 = scmp.ge.s32.totalorder %s203, 1
            %s208 = sphi %s191, %s191
            %s209 = sphi [#allocation2], [#allocation2]
          $region43: #{basic_block_r1_forward.6} parent=39 // loop_header_branch
            %206 = sbr.rel (%p204) target = $region47
          $region44: #{basic_block_r1_forward.6} parent=39 // loop_body
            %v210 = vld [vmem:[%s208] sm:%s201]
            %211 = vst [vmem:[%s209] sm:%s201] %v210
          $region45: #{basic_block_r1_forward.6} parent=39 // loop_footer
            %s207 = sadd.s32 1, %s203
          $region46: #{basic_block_r1_forward.6} parent=39 // loop_footer_branch
            %202 = sbr.rel target = $region42
          $region47: #{basic_block_r1_forward.6} parent=39 // loop_exit
            _
        $region40: #{basic_block_r1_forward.6} parent=31 // pred_fallthru
          _
        // Predicated region
        $region63: #{basic_block_r1_forward.6} parent=31 // pred_check
          _
        $region64: #{basic_block_r1_forward.6} parent=31 // pred_check_branch
          %255 = sbr.rel (0) target = $region66
        $region65: #{basic_block_r1_forward.6} parent=31 // pred_region
          %256 = vsyncadd [#allocation3], 1536
        $region66: #{basic_block_r1_forward.6} parent=31 // pred_fallthru
          _
      $region32: #{basic_block_r1_forward.6} parent=27 // pred_fallthru
        _
      %p257 = scmp.lt.s32.totalorder %s16, 0
      %s258 = ssub.s32 0, %s16
      %s259 = scalar_select %p257, %s258, %s16
      %s260 = sand.u32 %s259, 1
      %s261 = ssub.s32 0, %s260
      %s262 = scalar_select %p257, %s261, %s260
      %p263 = scmp.ne.s32.totalorder %s262, 0
      %p264 = scmp.lt.s32.totalorder %s262, 0
      %p265 = pnand %p264, %p263
      %p266 = pneg %p265
      %s267 = sadd.s32 %s262, 2
      %s268 = scalar_select %p266, %s267, %s262
      %s269 = smul.u32 %s16, 64
      %s270 = smul.u32 %s268, 96
      %s271 = scalar_lea.vmem [#allocation2], %s270
      %s272 = scalar_lea.sflag [#allocation3], %s268
      %s273 = smul.u32 96, 1
      %s274 = sshll.u32 %s273, 4
      %275 = dma.done %s272, %s274
      %s276 = sadd.s32 %s16, 1
      %p277 = scmp.lt.s32.totalorder %s276, 4
      // Predicated region
      $region67: #{basic_block_r1_forward.6} parent=27 // pred_check
        %p278 = pneg %p277
      $region68: #{basic_block_r1_forward.6} parent=27 // pred_check_branch
        %280 = sbr.rel (%p278) target = $region70
      $region69: #{basic_block_r1_forward.6} parent=27 // pred_region
        %s281 = ssub.s32 1, %s268
        %s282 = smul.u32 %s276, 64
        %s283 = scalar_lea.vmem %s2, %s282
        %s284 = smul.u32 %s281, 96
        %s285 = scalar_lea.vmem [#allocation2], %s284
        %s286 = scalar_lea.sflag [#allocation3], %s281
        %p288 = scmp.lt.u32.totalorder 96, 8
        %p289 = pneg %p288
        // Predicated region
        $region71: #{basic_block_r1_forward.6} parent=69 // pred_check
          _
        $region72: #{basic_block_r1_forward.6} parent=69 // pred_check_branch
          %291 = sbr.rel (%p288) target = $region74
        $region73: #{basic_block_r1_forward.6} parent=69 // pred_region
          %s307 = sand.u32 96, 7
          %p308 = scmp.eq.s32.totalorder %s307, 0
          // Predicated region
          $region86: #{basic_block_r1_forward.6} parent=73 // pred_check
            %p309 = pneg %p308
          $region87: #{basic_block_r1_forward.6} parent=73 // pred_check_branch
            %311 = sbr.rel (%p309) target = $region89
          $region88: #{basic_block_r1_forward.6} parent=73 // pred_region
            loop: start=0, step=1, limit=1
            $region90: #{basic_block_r1_forward.6} parent=88 // loop_pre_header
              _
            $region91: #{basic_block_r1_forward.6} parent=88 // loop_header
              %s313 = sphi 0, %s317
              %p314 = scmp.ge.s32.totalorder %s313, 1
              %s318 = sphi %s283, %s283
              %s319 = sphi %s285, %s285
            $region92: #{basic_block_r1_forward.6} parent=88 // loop_header_branch
              %316 = sbr.rel (%p314) target = $region96
            $region93: #{basic_block_r1_forward.6} parent=88 // loop_body
              %v320 = vld [vmem:[%s318] sm:$0xff]
              %321 = vst [vmem:[%s319] sm:$0xff] %v320
              %v322 = vld [vmem:[%s318 + $0x8] sm:$0xff]
              %323 = vst [vmem:[%s319 + $0x8] sm:$0xff] %v322
              %v324 = vld [vmem:[%s318 + $0x10] sm:$0xff]
              %325 = vst [vmem:[%s319 + $0x10] sm:$0xff] %v324
              %v326 = vld [vmem:[%s318 + $0x18] sm:$0xff]
              %327 = vst [vmem:[%s319 + $0x18] sm:$0xff] %v326
              %v328 = vld [vmem:[%s318 + $0x20] sm:$0xff]
              %329 = vst [vmem:[%s319 + $0x20] sm:$0xff] %v328
              %v330 = vld [vmem:[%s318 + $0x28] sm:$0xff]
              %331 = vst [vmem:[%s319 + $0x28] sm:$0xff] %v330
              %v332 = vld [vmem:[%s318 + $0x30] sm:$0xff]
              %333 = vst [vmem:[%s319 + $0x30] sm:$0xff] %v332
              %v334 = vld [vmem:[%s318 + $0x38] sm:$0xff]
              %335 = vst [vmem:[%s319 + $0x38] sm:$0xff] %v334
              %v336 = vld [vmem:[%s318 + $0x40] sm:$0xff]
              %337 = vst [vmem:[%s319 + $0x40] sm:$0xff] %v336
              %v338 = vld [vmem:[%s318 + $0x48] sm:$0xff]
              %339 = vst [vmem:[%s319 + $0x48] sm:$0xff] %v338
              %v340 = vld [vmem:[%s318 + $0x50] sm:$0xff]
              %341 = vst [vmem:[%s319 + $0x50] sm:$0xff] %v340
              %v342 = vld [vmem:[%s318 + $0x58] sm:$0xff]
              %343 = vst [vmem:[%s319 + $0x58] sm:$0xff] %v342
            $region94: #{basic_block_r1_forward.6} parent=88 // loop_footer
              %s317 = sadd.s32 1, %s313
            $region95: #{basic_block_r1_forward.6} parent=88 // loop_footer_branch
              %312 = sbr.rel target = $region91
            $region96: #{basic_block_r1_forward.6} parent=88 // loop_exit
              _
          $region89: #{basic_block_r1_forward.6} parent=73 // pred_fallthru
            _
          %p344 = pneg %p308
          // Predicated region
          $region97: #{basic_block_r1_forward.6} parent=73 // pred_check
            _
          $region98: #{basic_block_r1_forward.6} parent=73 // pred_check_branch
            %346 = sbr.rel (%p308) target = $region100
          $region99: #{basic_block_r1_forward.6} parent=73 // pred_region
            %s347 = sand.u32 96, 7
          $region100: #{basic_block_r1_forward.6} parent=73 // pred_fallthru
            _
        $region74: #{basic_block_r1_forward.6} parent=69 // pred_fallthru
          _
        // Predicated region
        $region75: #{basic_block_r1_forward.6} parent=69 // pred_check
          %p292 = pneg %p288
        $region76: #{basic_block_r1_forward.6} parent=69 // pred_check_branch
          %294 = sbr.rel (%p292) target = $region78
        $region77: #{basic_block_r1_forward.6} parent=69 // pred_region
          %s295 = sshll.u32 1, 96
          %s296 = ssub.s32 %s295, 1
          loop: start=0, step=1, limit=1
          $region79: #{basic_block_r1_forward.6} parent=77 // loop_pre_header
            _
          $region80: #{basic_block_r1_forward.6} parent=77 // loop_header
            %s298 = sphi 0, %s302
            %p299 = scmp.ge.s32.totalorder %s298, 1
            %s303 = sphi %s283, %s283
            %s304 = sphi %s285, %s285
          $region81: #{basic_block_r1_forward.6} parent=77 // loop_header_branch
            %301 = sbr.rel (%p299) target = $region85
          $region82: #{basic_block_r1_forward.6} parent=77 // loop_body
            %v305 = vld [vmem:[%s303] sm:%s296]
            %306 = vst [vmem:[%s304] sm:%s296] %v305
          $region83: #{basic_block_r1_forward.6} parent=77 // loop_footer
            %s302 = sadd.s32 1, %s298
          $region84: #{basic_block_r1_forward.6} parent=77 // loop_footer_branch
            %297 = sbr.rel target = $region80
          $region85: #{basic_block_r1_forward.6} parent=77 // loop_exit
            _
        $region78: #{basic_block_r1_forward.6} parent=69 // pred_fallthru
          _
        // Predicated region
        $region101: #{basic_block_r1_forward.6} parent=69 // pred_check
          _
        $region102: #{basic_block_r1_forward.6} parent=69 // pred_check_branch
          %350 = sbr.rel (0) target = $region104
        $region103: #{basic_block_r1_forward.6} parent=69 // pred_region
          %351 = vsyncadd %s286, 1536
        $region104: #{basic_block_r1_forward.6} parent=69 // pred_fallthru
          _
      $region70: #{basic_block_r1_forward.6} parent=27 // pred_fallthru
        _
      %v352 = vld [vmem:[%s271] sm:$0xff]
      %v353 = vld [vmem:[%s271 + $0x8] sm:$0xff]
      %v354 = vld [vmem:[%s271 + $0x10] sm:$0xff]
      %v355 = vld [vmem:[%s271 + $0x18] sm:$0xff]
      %v356 = vld [vmem:[%s271 + $0x20] sm:$0xff]
      %v357 = vld [vmem:[%s271 + $0x28] sm:$0xff]
      %v358 = vld [vmem:[%s271 + $0x30] sm:$0xff]
      %v359 = vld [vmem:[%s271 + $0x38] sm:$0xff]
      %v360 = vld [vmem:[%s271 + $0x40] sm:$0xff]
      %v361 = vld [vmem:[%s271 + $0x48] sm:$0xff]
      %v362 = vld [vmem:[%s271 + $0x50] sm:$0xff]
      %v363 = vld [vmem:[%s271 + $0x58] sm:$0xff]
      %v364 = vld [vmem:[%s1] sm:$0xff]
      %v365 = vld [vmem:[%s1 + $0x8] sm:$0xff]
      %v366 = vld [vmem:[%s1 + $0x10] sm:$0xff]
      %v367 = vld [vmem:[%s1 + $0x18] sm:$0xff]
      %v368 = vld [vmem:[%s1 + $0x20] sm:$0xff]
      %v369 = vld [vmem:[%s1 + $0x28] sm:$0xff]
      %v370 = vld [vmem:[%s1 + $0x30] sm:$0xff]
      %v371 = vld [vmem:[%s1 + $0x38] sm:$0xff]
      %v372 = vld [vmem:[%s1 + $0x40] sm:$0xff]
      %v373 = vld [vmem:[%s1 + $0x48] sm:$0xff]
      %v374 = vld [vmem:[%s1 + $0x50] sm:$0xff]
      %v375 = vld [vmem:[%s1 + $0x58] sm:$0xff]
      %v376 = vld [vmem:[%s1 + $0x60] sm:$0xff]
      %v377 = vld [vmem:[%s1 + $0x68] sm:$0xff]
      %v378 = vld [vmem:[%s1 + $0x70] sm:$0xff]
      %v379 = vld [vmem:[%s1 + $0x78] sm:$0xff]
      %s380 = scalar_lea.vmem %s1, 128
      %v381 = vld [vmem:[%s380] sm:$0xff]
      %v382 = vld [vmem:[%s380 + $0x8] sm:$0xff]
      %v383 = vld [vmem:[%s380 + $0x10] sm:$0xff]
      %v384 = vld [vmem:[%s380 + $0x18] sm:$0xff]
      %v385 = vld [vmem:[%s380 + $0x20] sm:$0xff]
      %v386 = vld [vmem:[%s380 + $0x28] sm:$0xff]
      %v387 = vld [vmem:[%s380 + $0x30] sm:$0xff]
      %v388 = vld [vmem:[%s380 + $0x38] sm:$0xff]
      %v389 = vld [vmem:[%s380 + $0x40] sm:$0xff]
      %v390 = vld [vmem:[%s380 + $0x48] sm:$0xff]
      %v391 = vld [vmem:[%s380 + $0x50] sm:$0xff]
      %v392 = vld [vmem:[%s380 + $0x58] sm:$0xff]
      %v393 = vld [vmem:[%s380 + $0x60] sm:$0xff]
      %v394 = vld [vmem:[%s380 + $0x68] sm:$0xff]
      %v395 = vld [vmem:[%s380 + $0x70] sm:$0xff]
      %v396 = vld [vmem:[%s380 + $0x78] sm:$0xff]
      %vm406 = vcmask 1041408
      %v407 = vrot.slane %v352, 6
      %v408 = vrot.slane %v353, 6
      %v409 = vsel %vm406, %v407, %v408
      %v410 = vrot.slane %v354, 6
      %v411 = vsel %vm406, %v408, %v410
      %v412 = vrot.slane %v355, 6
      %v413 = vsel %vm406, %v410, %v412
      %v414 = vrot.slane %v356, 6
      %v415 = vsel %vm406, %v412, %v414
      %v416 = vrot.slane %v357, 6
      %v417 = vsel %vm406, %v414, %v416
      %v418 = vrot.slane %v358, 6
      %v419 = vsel %vm406, %v416, %v418
      %v420 = vrot.slane %v359, 6
      %v421 = vsel %vm406, %v418, %v420
      %v422 = vrot.slane %v360, 6
      %v423 = vsel %vm406, %v420, %v422
      %432 = vmatprep.subr.mxu0 0.0
      %433 = vmatpush1.msra.mxu0 %v396
      %434 = vmatprep.subr.mxu0 0.0
      %435 = vmatpush1.msra.mxu0 %v395
      %436 = vmatprep.subr.mxu0 0.0
      %437 = vmatpush1.msra.mxu0 %v394
      %438 = vmatprep.subr.mxu0 0.0
      %439 = vmatpush1.msra.mxu0 %v393
      %440 = vmatprep.subr.mxu0 0.0
      %441 = vmatpush1.msra.mxu0 %v392
      %442 = vmatprep.subr.mxu0 0.0
      %443 = vmatpush1.msra.mxu0 %v391
      %444 = vmatprep.subr.mxu0 0.0
      %445 = vmatpush1.msra.mxu0 %v390
      %446 = vmatprep.subr.mxu0 0.0
      %447 = vmatpush1.msra.mxu0 %v389
      %448 = vmatprep.subr.mxu0 0.0
      %449 = vmatpush1.msra.mxu0 %v388
      %450 = vmatprep.subr.mxu0 0.0
      %451 = vmatpush1.msra.mxu0 %v387
      %452 = vmatprep.subr.mxu0 0.0
      %453 = vmatpush1.msra.mxu0 %v386
      %454 = vmatprep.subr.mxu0 0.0
      %455 = vmatpush1.msra.mxu0 %v385
      %456 = vmatprep.subr.mxu0 0.0
      %457 = vmatpush1.msra.mxu0 %v384
      %458 = vmatprep.subr.mxu0 0.0
      %459 = vmatpush1.msra.mxu0 %v383
      %460 = vmatprep.subr.mxu0 0.0
      %461 = vmatpush1.msra.mxu0 %v382
      %462 = vmatprep.subr.mxu0 0.0
      %463 = vmatpush1.msra.mxu0 %v381
      %464 = vmatprep.subr.mxu0 0.0
      %465 = vmatpush2.msra.mxu0 0.0
      %466 = vmatprep.subr.mxu0 0.0
      %467 = vmatpush2.msra.mxu0 0.0
      %468 = vmatprep.subr.mxu0 0.0
      %469 = vmatpush2.msra.mxu0 0.0
      %470 = vmatprep.subr.mxu0 0.0
      %471 = vmatpush2.msra.mxu0 0.0
      %472 = vmatprep.subr.mxu0 0.0
      %473 = vmatpush2.msra.mxu0 0.0
      %474 = vmatprep.subr.mxu0 0.0
      %475 = vmatpush2.msra.mxu0 0.0
      %476 = vmatprep.subr.mxu0 0.0
      %477 = vmatpush2.msra.mxu0 0.0
      %478 = vmatprep.subr.mxu0 0.0
      %479 = vmatpush2.msra.mxu0 0.0
      %480 = vmatprep.subr.mxu0 0.0
      %481 = vmatpush2.msra.mxu0 0.0
      %482 = vmatprep.subr.mxu0 0.0
      %483 = vmatpush2.msra.mxu0 0.0
      %484 = vmatprep.subr.mxu0 0.0
      %485 = vmatpush2.msra.mxu0 0.0
      %486 = vmatprep.subr.mxu0 0.0
      %487 = vmatpush2.msra.mxu0 0.0
      %488 = vmatprep.subr.mxu0 0.0
      %489 = vmatpush2.msra.mxu0 0.0
      %490 = vmatprep.subr.mxu0 0.0
      %491 = vmatpush2.msra.mxu0 0.0
      %492 = vmatprep.subr.mxu0 0.0
      %493 = vmatpush2.msra.mxu0 0.0
      %494 = vmatprep.subr.mxu0 0.0
      %495 = vmatpush2.msra.mxu0 0.0
      %496 = vmatprep.mubr.f32.mxu0 0.0
      %497 = vmatmul.mubr.f32.gmra.mxu0 %v409
      %v498 = vpop.f32.mrf.mxu0
      %v499 = vadd.f32 0.0, %v498
      %v500 = vpop.f32.mrf.mxu0
      %501 = vmatprep.mubr.f32.mxu0 0.0
      %502 = vmatmul.mubr.f32.gmra.mxu0 %v411
      %v503 = vpop.f32.mrf.mxu0
      %v504 = vadd.f32 0.0, %v503
      %v505 = vpop.f32.mrf.mxu0
      %506 = vmatprep.mubr.f32.mxu0 0.0
      %507 = vmatmul.mubr.f32.gmra.mxu0 %v413
      %v508 = vpop.f32.mrf.mxu0
      %v509 = vadd.f32 0.0, %v508
      %v510 = vpop.f32.mrf.mxu0
      %511 = vmatprep.mubr.f32.mxu0 0.0
      %512 = vmatmul.mubr.f32.gmra.mxu0 %v415
      %v513 = vpop.f32.mrf.mxu0
      %v514 = vadd.f32 0.0, %v513
      %v515 = vpop.f32.mrf.mxu0
      %516 = vmatprep.mubr.f32.mxu0 0.0
      %517 = vmatmul.mubr.f32.gmra.mxu0 %v417
      %v518 = vpop.f32.mrf.mxu0
      %v519 = vadd.f32 0.0, %v518
      %v520 = vpop.f32.mrf.mxu0
      %521 = vmatprep.mubr.f32.mxu0 0.0
      %522 = vmatmul.mubr.f32.gmra.mxu0 %v419
      %v523 = vpop.f32.mrf.mxu0
      %v524 = vadd.f32 0.0, %v523
      %v525 = vpop.f32.mrf.mxu0
      %526 = vmatprep.mubr.f32.mxu0 0.0
      %527 = vmatmul.mubr.f32.gmra.mxu0 %v421
      %v528 = vpop.f32.mrf.mxu0
      %v529 = vadd.f32 0.0, %v528
      %v530 = vpop.f32.mrf.mxu0
      %531 = vmatprep.mubr.f32.mxu0 0.0
      %532 = vmatmul.mubr.f32.gmra.mxu0 %v423
      %v533 = vpop.f32.mrf.mxu0
      %v534 = vadd.f32 0.0, %v533
      %v535 = vpop.f32.mrf.mxu0
      %536 = vdwg.mxu0
      %vm537 = vcmask 1042432
      %v538 = vrot.slane %v352, 5
      %v539 = vrot.slane %v353, 5
      %v540 = vsel %vm537, %v538, %v539
      %v541 = vrot.slane %v354, 5
      %v542 = vsel %vm537, %v539, %v541
      %v543 = vrot.slane %v355, 5
      %v544 = vsel %vm537, %v541, %v543
      %v545 = vrot.slane %v356, 5
      %v546 = vsel %vm537, %v543, %v545
      %v547 = vrot.slane %v357, 5
      %v548 = vsel %vm537, %v545, %v547
      %v549 = vrot.slane %v358, 5
      %v550 = vsel %vm537, %v547, %v549
      %v551 = vrot.slane %v359, 5
      %v552 = vsel %vm537, %v549, %v551
      %v553 = vrot.slane %v360, 5
      %v554 = vsel %vm537, %v551, %v553
      %563 = vmatprep.subr.mxu0 0.0
      %564 = vmatpush1.msra.mxu0 %v379
      %565 = vmatprep.subr.mxu0 0.0
      %566 = vmatpush1.msra.mxu0 %v378
      %567 = vmatprep.subr.mxu0 0.0
      %568 = vmatpush1.msra.mxu0 %v377
      %569 = vmatprep.subr.mxu0 0.0
      %570 = vmatpush1.msra.mxu0 %v376
      %571 = vmatprep.subr.mxu0 0.0
      %572 = vmatpush1.msra.mxu0 %v375
      %573 = vmatprep.subr.mxu0 0.0
      %574 = vmatpush1.msra.mxu0 %v374
      %575 = vmatprep.subr.mxu0 0.0
      %576 = vmatpush1.msra.mxu0 %v373
      %577 = vmatprep.subr.mxu0 0.0
      %578 = vmatpush1.msra.mxu0 %v372
      %579 = vmatprep.subr.mxu0 0.0
      %580 = vmatpush1.msra.mxu0 %v371
      %581 = vmatprep.subr.mxu0 0.0
      %582 = vmatpush1.msra.mxu0 %v370
      %583 = vmatprep.subr.mxu0 0.0
      %584 = vmatpush1.msra.mxu0 %v369
      %585 = vmatprep.subr.mxu0 0.0
      %586 = vmatpush1.msra.mxu0 %v368
      %587 = vmatprep.subr.mxu0 0.0
      %588 = vmatpush1.msra.mxu0 %v367
      %589 = vmatprep.subr.mxu0 0.0
      %590 = vmatpush1.msra.mxu0 %v366
      %591 = vmatprep.subr.mxu0 0.0
      %592 = vmatpush1.msra.mxu0 %v365
      %593 = vmatprep.subr.mxu0 0.0
      %594 = vmatpush1.msra.mxu0 %v364
      %595 = vmatprep.subr.mxu0 0.0
      %596 = vmatpush2.msra.mxu0 0.0
      %597 = vmatprep.subr.mxu0 0.0
      %598 = vmatpush2.msra.mxu0 0.0
      %599 = vmatprep.subr.mxu0 0.0
      %600 = vmatpush2.msra.mxu0 0.0
      %601 = vmatprep.subr.mxu0 0.0
      %602 = vmatpush2.msra.mxu0 0.0
      %603 = vmatprep.subr.mxu0 0.0
      %604 = vmatpush2.msra.mxu0 0.0
      %605 = vmatprep.subr.mxu0 0.0
      %606 = vmatpush2.msra.mxu0 0.0
      %607 = vmatprep.subr.mxu0 0.0
      %608 = vmatpush2.msra.mxu0 0.0
      %609 = vmatprep.subr.mxu0 0.0
      %610 = vmatpush2.msra.mxu0 0.0
      %611 = vmatprep.subr.mxu0 0.0
      %612 = vmatpush2.msra.mxu0 0.0
      %613 = vmatprep.subr.mxu0 0.0
      %614 = vmatpush2.msra.mxu0 0.0
      %615 = vmatprep.subr.mxu0 0.0
      %616 = vmatpush2.msra.mxu0 0.0
      %617 = vmatprep.subr.mxu0 0.0
      %618 = vmatpush2.msra.mxu0 0.0
      %619 = vmatprep.subr.mxu0 0.0
      %620 = vmatpush2.msra.mxu0 0.0
      %621 = vmatprep.subr.mxu0 0.0
      %622 = vmatpush2.msra.mxu0 0.0
      %623 = vmatprep.subr.mxu0 0.0
      %624 = vmatpush2.msra.mxu0 0.0
      %625 = vmatprep.subr.mxu0 0.0
      %626 = vmatpush2.msra.mxu0 0.0
      %627 = vmatprep.mubr.f32.mxu0 0.0
      %628 = vmatmul.mubr.f32.gmra.mxu0 %v540
      %v629 = vpop.f32.mrf.mxu0
      %v630 = vadd.f32 %v499, %v629
      %v631 = vpop.f32.mrf.mxu0
      %632 = vmatprep.mubr.f32.mxu0 0.0
      %633 = vmatmul.mubr.f32.gmra.mxu0 %v542
      %v634 = vpop.f32.mrf.mxu0
      %v635 = vadd.f32 %v504, %v634
      %v636 = vpop.f32.mrf.mxu0
      %637 = vmatprep.mubr.f32.mxu0 0.0
      %638 = vmatmul.mubr.f32.gmra.mxu0 %v544
      %v639 = vpop.f32.mrf.mxu0
      %v640 = vadd.f32 %v509, %v639
      %v641 = vpop.f32.mrf.mxu0
      %642 = vmatprep.mubr.f32.mxu0 0.0
      %643 = vmatmul.mubr.f32.gmra.mxu0 %v546
      %v644 = vpop.f32.mrf.mxu0
      %v645 = vadd.f32 %v514, %v644
      %v646 = vpop.f32.mrf.mxu0
      %647 = vmatprep.mubr.f32.mxu0 0.0
      %648 = vmatmul.mubr.f32.gmra.mxu0 %v548
      %v649 = vpop.f32.mrf.mxu0
      %v650 = vadd.f32 %v519, %v649
      %v651 = vpop.f32.mrf.mxu0
      %652 = vmatprep.mubr.f32.mxu0 0.0
      %653 = vmatmul.mubr.f32.gmra.mxu0 %v550
      %v654 = vpop.f32.mrf.mxu0
      %v655 = vadd.f32 %v524, %v654
      %v656 = vpop.f32.mrf.mxu0
      %657 = vmatprep.mubr.f32.mxu0 0.0
      %658 = vmatmul.mubr.f32.gmra.mxu0 %v552
      %v659 = vpop.f32.mrf.mxu0
      %v660 = vadd.f32 %v529, %v659
      %v661 = vpop.f32.mrf.mxu0
      %662 = vmatprep.mubr.f32.mxu0 0.0
      %663 = vmatmul.mubr.f32.gmra.mxu0 %v554
      %v664 = vpop.f32.mrf.mxu0
      %v665 = vadd.f32 %v534, %v664
      %v666 = vpop.f32.mrf.mxu0
      %667 = vdwg.mxu0
      %s668 = scalar_lea.vmem %s1, 256
      %v669 = vld [vmem:[%s668] sm:$0xff]
      %v670 = vld [vmem:[%s668 + $0x8] sm:$0xff]
      %v671 = vld [vmem:[%s668 + $0x10] sm:$0xff]
      %v672 = vld [vmem:[%s668 + $0x18] sm:$0xff]
      %v673 = vld [vmem:[%s668 + $0x20] sm:$0xff]
      %v674 = vld [vmem:[%s668 + $0x28] sm:$0xff]
      %v675 = vld [vmem:[%s668 + $0x30] sm:$0xff]
      %v676 = vld [vmem:[%s668 + $0x38] sm:$0xff]
      %v677 = vld [vmem:[%s668 + $0x40] sm:$0xff]
      %v678 = vld [vmem:[%s668 + $0x48] sm:$0xff]
      %v679 = vld [vmem:[%s668 + $0x50] sm:$0xff]
      %v680 = vld [vmem:[%s668 + $0x58] sm:$0xff]
      %v681 = vld [vmem:[%s668 + $0x60] sm:$0xff]
      %v682 = vld [vmem:[%s668 + $0x68] sm:$0xff]
      %v683 = vld [vmem:[%s668 + $0x70] sm:$0xff]
      %v684 = vld [vmem:[%s668 + $0x78] sm:$0xff]
      %vm685 = vcmask 1040384
      %v686 = vrot.slane %v352, 7
      %v687 = vrot.slane %v353, 7
      %v688 = vsel %vm685, %v686, %v687
      %v689 = vrot.slane %v354, 7
      %v690 = vsel %vm685, %v687, %v689
      %v691 = vrot.slane %v355, 7
      %v692 = vsel %vm685, %v689, %v691
      %v693 = vrot.slane %v356, 7
      %v694 = vsel %vm685, %v691, %v693
      %v695 = vrot.slane %v357, 7
      %v696 = vsel %vm685, %v693, %v695
      %v697 = vrot.slane %v358, 7
      %v698 = vsel %vm685, %v695, %v697
      %v699 = vrot.slane %v359, 7
      %v700 = vsel %vm685, %v697, %v699
      %v701 = vrot.slane %v360, 7
      %v702 = vsel %vm685, %v699, %v701
      %711 = vmatprep.subr.mxu0 0.0
      %712 = vmatpush1.msra.mxu0 %v684
      %713 = vmatprep.subr.mxu0 0.0
      %714 = vmatpush1.msra.mxu0 %v683
      %715 = vmatprep.subr.mxu0 0.0
      %716 = vmatpush1.msra.mxu0 %v682
      %717 = vmatprep.subr.mxu0 0.0
      %718 = vmatpush1.msra.mxu0 %v681
      %719 = vmatprep.subr.mxu0 0.0
      %720 = vmatpush1.msra.mxu0 %v680
      %721 = vmatprep.subr.mxu0 0.0
      %722 = vmatpush1.msra.mxu0 %v679
      %723 = vmatprep.subr.mxu0 0.0
      %724 = vmatpush1.msra.mxu0 %v678
      %725 = vmatprep.subr.mxu0 0.0
      %726 = vmatpush1.msra.mxu0 %v677
      %727 = vmatprep.subr.mxu0 0.0
      %728 = vmatpush1.msra.mxu0 %v676
      %729 = vmatprep.subr.mxu0 0.0
      %730 = vmatpush1.msra.mxu0 %v675
      %731 = vmatprep.subr.mxu0 0.0
      %732 = vmatpush1.msra.mxu0 %v674
      %733 = vmatprep.subr.mxu0 0.0
      %734 = vmatpush1.msra.mxu0 %v673
      %735 = vmatprep.subr.mxu0 0.0
      %736 = vmatpush1.msra.mxu0 %v672
      %737 = vmatprep.subr.mxu0 0.0
      %738 = vmatpush1.msra.mxu0 %v671
      %739 = vmatprep.subr.mxu0 0.0
      %740 = vmatpush1.msra.mxu0 %v670
      %741 = vmatprep.subr.mxu0 0.0
      %742 = vmatpush1.msra.mxu0 %v669
      %743 = vmatprep.subr.mxu0 0.0
      %744 = vmatpush2.msra.mxu0 0.0
      %745 = vmatprep.subr.mxu0 0.0
      %746 = vmatpush2.msra.mxu0 0.0
      %747 = vmatprep.subr.mxu0 0.0
      %748 = vmatpush2.msra.mxu0 0.0
      %749 = vmatprep.subr.mxu0 0.0
      %750 = vmatpush2.msra.mxu0 0.0
      %751 = vmatprep.subr.mxu0 0.0
      %752 = vmatpush2.msra.mxu0 0.0
      %753 = vmatprep.subr.mxu0 0.0
      %754 = vmatpush2.msra.mxu0 0.0
      %755 = vmatprep.subr.mxu0 0.0
      %756 = vmatpush2.msra.mxu0 0.0
      %757 = vmatprep.subr.mxu0 0.0
      %758 = vmatpush2.msra.mxu0 0.0
      %759 = vmatprep.subr.mxu0 0.0
      %760 = vmatpush2.msra.mxu0 0.0
      %761 = vmatprep.subr.mxu0 0.0
      %762 = vmatpush2.msra.mxu0 0.0
      %763 = vmatprep.subr.mxu0 0.0
      %764 = vmatpush2.msra.mxu0 0.0
      %765 = vmatprep.subr.mxu0 0.0
      %766 = vmatpush2.msra.mxu0 0.0
      %767 = vmatprep.subr.mxu0 0.0
      %768 = vmatpush2.msra.mxu0 0.0
      %769 = vmatprep.subr.mxu0 0.0
      %770 = vmatpush2.msra.mxu0 0.0
      %771 = vmatprep.subr.mxu0 0.0
      %772 = vmatpush2.msra.mxu0 0.0
      %773 = vmatprep.subr.mxu0 0.0
      %774 = vmatpush2.msra.mxu0 0.0
      %775 = vmatprep.mubr.f32.mxu0 0.0
      %776 = vmatmul.mubr.f32.gmra.mxu0 %v688
      %v777 = vpop.f32.mrf.mxu0
      %v778 = vadd.f32 0.0, %v777
      %v779 = vpop.f32.mrf.mxu0
      %780 = vmatprep.mubr.f32.mxu0 0.0
      %781 = vmatmul.mubr.f32.gmra.mxu0 %v690
      %v782 = vpop.f32.mrf.mxu0
      %v783 = vadd.f32 0.0, %v782
      %v784 = vpop.f32.mrf.mxu0
      %785 = vmatprep.mubr.f32.mxu0 0.0
      %786 = vmatmul.mubr.f32.gmra.mxu0 %v692
      %v787 = vpop.f32.mrf.mxu0
      %v788 = vadd.f32 0.0, %v787
      %v789 = vpop.f32.mrf.mxu0
      %790 = vmatprep.mubr.f32.mxu0 0.0
      %791 = vmatmul.mubr.f32.gmra.mxu0 %v694
      %v792 = vpop.f32.mrf.mxu0
      %v793 = vadd.f32 0.0, %v792
      %v794 = vpop.f32.mrf.mxu0
      %795 = vmatprep.mubr.f32.mxu0 0.0
      %796 = vmatmul.mubr.f32.gmra.mxu0 %v696
      %v797 = vpop.f32.mrf.mxu0
      %v798 = vadd.f32 0.0, %v797
      %v799 = vpop.f32.mrf.mxu0
      %800 = vmatprep.mubr.f32.mxu0 0.0
      %801 = vmatmul.mubr.f32.gmra.mxu0 %v698
      %v802 = vpop.f32.mrf.mxu0
      %v803 = vadd.f32 0.0, %v802
      %v804 = vpop.f32.mrf.mxu0
      %805 = vmatprep.mubr.f32.mxu0 0.0
      %806 = vmatmul.mubr.f32.gmra.mxu0 %v700
      %v807 = vpop.f32.mrf.mxu0
      %v808 = vadd.f32 0.0, %v807
      %v809 = vpop.f32.mrf.mxu0
      %810 = vmatprep.mubr.f32.mxu0 0.0
      %811 = vmatmul.mubr.f32.gmra.mxu0 %v702
      %v812 = vpop.f32.mrf.mxu0
      %v813 = vadd.f32 0.0, %v812
      %v814 = vpop.f32.mrf.mxu0
      %815 = vdwg.mxu0
      %v816 = vadd.f32 %v630, %v778
      %v817 = vadd.f32 %v635, %v783
      %v818 = vadd.f32 %v640, %v788
      %v819 = vadd.f32 %v645, %v793
      %v820 = vadd.f32 %v650, %v798
      %v821 = vadd.f32 %v655, %v803
      %v822 = vadd.f32 %v660, %v808
      %v823 = vadd.f32 %v665, %v813
      %s824 = scalar_lea.vmem %s1, 384
      %v825 = vld [vmem:[%s824] sm:$0xff]
      %v826 = vld [vmem:[%s824 + $0x8] sm:$0xff]
      %v827 = vld [vmem:[%s824 + $0x10] sm:$0xff]
      %v828 = vld [vmem:[%s824 + $0x18] sm:$0xff]
      %v829 = vld [vmem:[%s824 + $0x20] sm:$0xff]
      %v830 = vld [vmem:[%s824 + $0x28] sm:$0xff]
      %v831 = vld [vmem:[%s824 + $0x30] sm:$0xff]
      %v832 = vld [vmem:[%s824 + $0x38] sm:$0xff]
      %v833 = vld [vmem:[%s824 + $0x40] sm:$0xff]
      %v834 = vld [vmem:[%s824 + $0x48] sm:$0xff]
      %v835 = vld [vmem:[%s824 + $0x50] sm:$0xff]
      %v836 = vld [vmem:[%s824 + $0x58] sm:$0xff]
      %v837 = vld [vmem:[%s824 + $0x60] sm:$0xff]
      %v838 = vld [vmem:[%s824 + $0x68] sm:$0xff]
      %v839 = vld [vmem:[%s824 + $0x70] sm:$0xff]
      %v840 = vld [vmem:[%s824 + $0x78] sm:$0xff]
      %v842 = vrot.slane %v361, 7
      %v843 = vsel %vm685, %v701, %v842
      %845 = vmatprep.subr.mxu0 0.0
      %846 = vmatpush1.msra.mxu0 %v840
      %847 = vmatprep.subr.mxu0 0.0
      %848 = vmatpush1.msra.mxu0 %v839
      %849 = vmatprep.subr.mxu0 0.0
      %850 = vmatpush1.msra.mxu0 %v838
      %851 = vmatprep.subr.mxu0 0.0
      %852 = vmatpush1.msra.mxu0 %v837
      %853 = vmatprep.subr.mxu0 0.0
      %854 = vmatpush1.msra.mxu0 %v836
      %855 = vmatprep.subr.mxu0 0.0
      %856 = vmatpush1.msra.mxu0 %v835
      %857 = vmatprep.subr.mxu0 0.0
      %858 = vmatpush1.msra.mxu0 %v834
      %859 = vmatprep.subr.mxu0 0.0
      %860 = vmatpush1.msra.mxu0 %v833
      %861 = vmatprep.subr.mxu0 0.0
      %862 = vmatpush1.msra.mxu0 %v832
      %863 = vmatprep.subr.mxu0 0.0
      %864 = vmatpush1.msra.mxu0 %v831
      %865 = vmatprep.subr.mxu0 0.0
      %866 = vmatpush1.msra.mxu0 %v830
      %867 = vmatprep.subr.mxu0 0.0
      %868 = vmatpush1.msra.mxu0 %v829
      %869 = vmatprep.subr.mxu0 0.0
      %870 = vmatpush1.msra.mxu0 %v828
      %871 = vmatprep.subr.mxu0 0.0
      %872 = vmatpush1.msra.mxu0 %v827
      %873 = vmatprep.subr.mxu0 0.0
      %874 = vmatpush1.msra.mxu0 %v826
      %875 = vmatprep.subr.mxu0 0.0
      %876 = vmatpush1.msra.mxu0 %v825
      %877 = vmatprep.subr.mxu0 0.0
      %878 = vmatpush2.msra.mxu0 0.0
      %879 = vmatprep.subr.mxu0 0.0
      %880 = vmatpush2.msra.mxu0 0.0
      %881 = vmatprep.subr.mxu0 0.0
      %882 = vmatpush2.msra.mxu0 0.0
      %883 = vmatprep.subr.mxu0 0.0
      %884 = vmatpush2.msra.mxu0 0.0
      %885 = vmatprep.subr.mxu0 0.0
      %886 = vmatpush2.msra.mxu0 0.0
      %887 = vmatprep.subr.mxu0 0.0
      %888 = vmatpush2.msra.mxu0 0.0
      %889 = vmatprep.subr.mxu0 0.0
      %890 = vmatpush2.msra.mxu0 0.0
      %891 = vmatprep.subr.mxu0 0.0
      %892 = vmatpush2.msra.mxu0 0.0
      %893 = vmatprep.subr.mxu0 0.0
      %894 = vmatpush2.msra.mxu0 0.0
      %895 = vmatprep.subr.mxu0 0.0
      %896 = vmatpush2.msra.mxu0 0.0
      %897 = vmatprep.subr.mxu0 0.0
      %898 = vmatpush2.msra.mxu0 0.0
      %899 = vmatprep.subr.mxu0 0.0
      %900 = vmatpush2.msra.mxu0 0.0
      %901 = vmatprep.subr.mxu0 0.0
      %902 = vmatpush2.msra.mxu0 0.0
      %903 = vmatprep.subr.mxu0 0.0
      %904 = vmatpush2.msra.mxu0 0.0
      %905 = vmatprep.subr.mxu0 0.0
      %906 = vmatpush2.msra.mxu0 0.0
      %907 = vmatprep.subr.mxu0 0.0
      %908 = vmatpush2.msra.mxu0 0.0
      %909 = vmatprep.mubr.f32.mxu0 0.0
      %910 = vmatmul.mubr.f32.gmra.mxu0 %v690
      %v911 = vpop.f32.mrf.mxu0
      %v912 = vadd.f32 0.0, %v911
      %v913 = vpop.f32.mrf.mxu0
      %914 = vmatprep.mubr.f32.mxu0 0.0
      %915 = vmatmul.mubr.f32.gmra.mxu0 %v692
      %v916 = vpop.f32.mrf.mxu0
      %v917 = vadd.f32 0.0, %v916
      %v918 = vpop.f32.mrf.mxu0
      %919 = vmatprep.mubr.f32.mxu0 0.0
      %920 = vmatmul.mubr.f32.gmra.mxu0 %v694
      %v921 = vpop.f32.mrf.mxu0
      %v922 = vadd.f32 0.0, %v921
      %v923 = vpop.f32.mrf.mxu0
      %924 = vmatprep.mubr.f32.mxu0 0.0
      %925 = vmatmul.mubr.f32.gmra.mxu0 %v696
      %v926 = vpop.f32.mrf.mxu0
      %v927 = vadd.f32 0.0, %v926
      %v928 = vpop.f32.mrf.mxu0
      %929 = vmatprep.mubr.f32.mxu0 0.0
      %930 = vmatmul.mubr.f32.gmra.mxu0 %v698
      %v931 = vpop.f32.mrf.mxu0
      %v932 = vadd.f32 0.0, %v931
      %v933 = vpop.f32.mrf.mxu0
      %934 = vmatprep.mubr.f32.mxu0 0.0
      %935 = vmatmul.mubr.f32.gmra.mxu0 %v700
      %v936 = vpop.f32.mrf.mxu0
      %v937 = vadd.f32 0.0, %v936
      %v938 = vpop.f32.mrf.mxu0
      %939 = vmatprep.mubr.f32.mxu0 0.0
      %940 = vmatmul.mubr.f32.gmra.mxu0 %v702
      %v941 = vpop.f32.mrf.mxu0
      %v942 = vadd.f32 0.0, %v941
      %v943 = vpop.f32.mrf.mxu0
      %944 = vmatprep.mubr.f32.mxu0 0.0
      %945 = vmatmul.mubr.f32.gmra.mxu0 %v843
      %v946 = vpop.f32.mrf.mxu0
      %v947 = vadd.f32 0.0, %v946
      %v948 = vpop.f32.mrf.mxu0
      %949 = vdwg.mxu0
      %v950 = vadd.f32 %v816, %v912
      %v951 = vadd.f32 %v817, %v917
      %v952 = vadd.f32 %v818, %v922
      %v953 = vadd.f32 %v819, %v927
      %v954 = vadd.f32 %v820, %v932
      %v955 = vadd.f32 %v821, %v937
      %v956 = vadd.f32 %v822, %v942
      %v957 = vadd.f32 %v823, %v947
      %s958 = scalar_lea.vmem %s1, 512
      %v959 = vld [vmem:[%s958] sm:$0xff]
      %v960 = vld [vmem:[%s958 + $0x8] sm:$0xff]
      %v961 = vld [vmem:[%s958 + $0x10] sm:$0xff]
      %v962 = vld [vmem:[%s958 + $0x18] sm:$0xff]
      %v963 = vld [vmem:[%s958 + $0x20] sm:$0xff]
      %v964 = vld [vmem:[%s958 + $0x28] sm:$0xff]
      %v965 = vld [vmem:[%s958 + $0x30] sm:$0xff]
      %v966 = vld [vmem:[%s958 + $0x38] sm:$0xff]
      %v967 = vld [vmem:[%s958 + $0x40] sm:$0xff]
      %v968 = vld [vmem:[%s958 + $0x48] sm:$0xff]
      %v969 = vld [vmem:[%s958 + $0x50] sm:$0xff]
      %v970 = vld [vmem:[%s958 + $0x58] sm:$0xff]
      %v971 = vld [vmem:[%s958 + $0x60] sm:$0xff]
      %v972 = vld [vmem:[%s958 + $0x68] sm:$0xff]
      %v973 = vld [vmem:[%s958 + $0x70] sm:$0xff]
      %v974 = vld [vmem:[%s958 + $0x78] sm:$0xff]
      %975 = vmatprep.subr.mxu0 0.0
      %976 = vmatpush1.msra.mxu0 %v974
      %977 = vmatprep.subr.mxu0 0.0
      %978 = vmatpush1.msra.mxu0 %v973
      %979 = vmatprep.subr.mxu0 0.0
      %980 = vmatpush1.msra.mxu0 %v972
      %981 = vmatprep.subr.mxu0 0.0
      %982 = vmatpush1.msra.mxu0 %v971
      %983 = vmatprep.subr.mxu0 0.0
      %984 = vmatpush1.msra.mxu0 %v970
      %985 = vmatprep.subr.mxu0 0.0
      %986 = vmatpush1.msra.mxu0 %v969
      %987 = vmatprep.subr.mxu0 0.0
      %988 = vmatpush1.msra.mxu0 %v968
      %989 = vmatprep.subr.mxu0 0.0
      %990 = vmatpush1.msra.mxu0 %v967
      %991 = vmatprep.subr.mxu0 0.0
      %992 = vmatpush1.msra.mxu0 %v966
      %993 = vmatprep.subr.mxu0 0.0
      %994 = vmatpush1.msra.mxu0 %v965
      %995 = vmatprep.subr.mxu0 0.0
      %996 = vmatpush1.msra.mxu0 %v964
      %997 = vmatprep.subr.mxu0 0.0
      %998 = vmatpush1.msra.mxu0 %v963
      %999 = vmatprep.subr.mxu0 0.0
      %1000 = vmatpush1.msra.mxu0 %v962
      %1001 = vmatprep.subr.mxu0 0.0
      %1002 = vmatpush1.msra.mxu0 %v961
      %1003 = vmatprep.subr.mxu0 0.0
      %1004 = vmatpush1.msra.mxu0 %v960
      %1005 = vmatprep.subr.mxu0 0.0
      %1006 = vmatpush1.msra.mxu0 %v959
      %1007 = vmatprep.subr.mxu0 0.0
      %1008 = vmatpush2.msra.mxu0 0.0
      %1009 = vmatprep.subr.mxu0 0.0
      %1010 = vmatpush2.msra.mxu0 0.0
      %1011 = vmatprep.subr.mxu0 0.0
      %1012 = vmatpush2.msra.mxu0 0.0
      %1013 = vmatprep.subr.mxu0 0.0
      %1014 = vmatpush2.msra.mxu0 0.0
      %1015 = vmatprep.subr.mxu0 0.0
      %1016 = vmatpush2.msra.mxu0 0.0
      %1017 = vmatprep.subr.mxu0 0.0
      %1018 = vmatpush2.msra.mxu0 0.0
      %1019 = vmatprep.subr.mxu0 0.0
      %1020 = vmatpush2.msra.mxu0 0.0
      %1021 = vmatprep.subr.mxu0 0.0
      %1022 = vmatpush2.msra.mxu0 0.0
      %1023 = vmatprep.subr.mxu0 0.0
      %1024 = vmatpush2.msra.mxu0 0.0
      %1025 = vmatprep.subr.mxu0 0.0
      %1026 = vmatpush2.msra.mxu0 0.0
      %1027 = vmatprep.subr.mxu0 0.0
      %1028 = vmatpush2.msra.mxu0 0.0
      %1029 = vmatprep.subr.mxu0 0.0
      %1030 = vmatpush2.msra.mxu0 0.0
      %1031 = vmatprep.subr.mxu0 0.0
      %1032 = vmatpush2.msra.mxu0 0.0
      %1033 = vmatprep.subr.mxu0 0.0
      %1034 = vmatpush2.msra.mxu0 0.0
      %1035 = vmatprep.subr.mxu0 0.0
      %1036 = vmatpush2.msra.mxu0 0.0
      %1037 = vmatprep.subr.mxu0 0.0
      %1038 = vmatpush2.msra.mxu0 0.0
      %1039 = vmatprep.mubr.f32.mxu0 0.0
      %1040 = vmatmul.mubr.f32.gmra.mxu0 %v354
      %v1041 = vpop.f32.mrf.mxu0
      %v1042 = vadd.f32 0.0, %v1041
      %v1043 = vpop.f32.mrf.mxu0
      %1044 = vmatprep.mubr.f32.mxu0 0.0
      %1045 = vmatmul.mubr.f32.gmra.mxu0 %v355
      %v1046 = vpop.f32.mrf.mxu0
      %v1047 = vadd.f32 0.0, %v1046
      %v1048 = vpop.f32.mrf.mxu0
      %1049 = vmatprep.mubr.f32.mxu0 0.0
      %1050 = vmatmul.mubr.f32.gmra.mxu0 %v356
      %v1051 = vpop.f32.mrf.mxu0
      %v1052 = vadd.f32 0.0, %v1051
      %v1053 = vpop.f32.mrf.mxu0
      %1054 = vmatprep.mubr.f32.mxu0 0.0
      %1055 = vmatmul.mubr.f32.gmra.mxu0 %v357
      %v1056 = vpop.f32.mrf.mxu0
      %v1057 = vadd.f32 0.0, %v1056
      %v1058 = vpop.f32.mrf.mxu0
      %1059 = vmatprep.mubr.f32.mxu0 0.0
      %1060 = vmatmul.mubr.f32.gmra.mxu0 %v358
      %v1061 = vpop.f32.mrf.mxu0
      %v1062 = vadd.f32 0.0, %v1061
      %v1063 = vpop.f32.mrf.mxu0
      %1064 = vmatprep.mubr.f32.mxu0 0.0
      %1065 = vmatmul.mubr.f32.gmra.mxu0 %v359
      %v1066 = vpop.f32.mrf.mxu0
      %v1067 = vadd.f32 0.0, %v1066
      %v1068 = vpop.f32.mrf.mxu0
      %1069 = vmatprep.mubr.f32.mxu0 0.0
      %1070 = vmatmul.mubr.f32.gmra.mxu0 %v360
      %v1071 = vpop.f32.mrf.mxu0
      %v1072 = vadd.f32 0.0, %v1071
      %v1073 = vpop.f32.mrf.mxu0
      %1074 = vmatprep.mubr.f32.mxu0 0.0
      %1075 = vmatmul.mubr.f32.gmra.mxu0 %v361
      %v1076 = vpop.f32.mrf.mxu0
      %v1077 = vadd.f32 0.0, %v1076
      %v1078 = vpop.f32.mrf.mxu0
      %1079 = vdwg.mxu0
      %v1080 = vadd.f32 %v950, %v1042
      %v1081 = vadd.f32 %v951, %v1047
      %v1082 = vadd.f32 %v952, %v1052
      %v1083 = vadd.f32 %v953, %v1057
      %v1084 = vadd.f32 %v954, %v1062
      %v1085 = vadd.f32 %v955, %v1067
      %v1086 = vadd.f32 %v956, %v1072
      %v1087 = vadd.f32 %v957, %v1077
      %s1088 = scalar_lea.vmem %s1, 640
      %v1089 = vld [vmem:[%s1088] sm:$0xff]
      %v1090 = vld [vmem:[%s1088 + $0x8] sm:$0xff]
      %v1091 = vld [vmem:[%s1088 + $0x10] sm:$0xff]
      %v1092 = vld [vmem:[%s1088 + $0x18] sm:$0xff]
      %v1093 = vld [vmem:[%s1088 + $0x20] sm:$0xff]
      %v1094 = vld [vmem:[%s1088 + $0x28] sm:$0xff]
      %v1095 = vld [vmem:[%s1088 + $0x30] sm:$0xff]
      %v1096 = vld [vmem:[%s1088 + $0x38] sm:$0xff]
      %v1097 = vld [vmem:[%s1088 + $0x40] sm:$0xff]
      %v1098 = vld [vmem:[%s1088 + $0x48] sm:$0xff]
      %v1099 = vld [vmem:[%s1088 + $0x50] sm:$0xff]
      %v1100 = vld [vmem:[%s1088 + $0x58] sm:$0xff]
      %v1101 = vld [vmem:[%s1088 + $0x60] sm:$0xff]
      %v1102 = vld [vmem:[%s1088 + $0x68] sm:$0xff]
      %v1103 = vld [vmem:[%s1088 + $0x70] sm:$0xff]
      %v1104 = vld [vmem:[%s1088 + $0x78] sm:$0xff]
      %vm1106 = vcmask 1046528
      %v1107 = vrot.slane %v354, 1
      %v1108 = vrot.slane %v355, 1
      %v1109 = vsel %vm1106, %v1107, %v1108
      %v1110 = vrot.slane %v356, 1
      %v1111 = vsel %vm1106, %v1108, %v1110
      %v1112 = vrot.slane %v357, 1
      %v1113 = vsel %vm1106, %v1110, %v1112
      %v1114 = vrot.slane %v358, 1
      %v1115 = vsel %vm1106, %v1112, %v1114
      %v1116 = vrot.slane %v359, 1
      %v1117 = vsel %vm1106, %v1114, %v1116
      %v1118 = vrot.slane %v360, 1
      %v1119 = vsel %vm1106, %v1116, %v1118
      %v1120 = vrot.slane %v361, 1
      %v1121 = vsel %vm1106, %v1118, %v1120
      %v1122 = vrot.slane %v362, 1
      %v1123 = vsel %vm1106, %v1120, %v1122
      %1132 = vmatprep.subr.mxu0 0.0
      %1133 = vmatpush1.msra.mxu0 %v1104
      %1134 = vmatprep.subr.mxu0 0.0
      %1135 = vmatpush1.msra.mxu0 %v1103
      %1136 = vmatprep.subr.mxu0 0.0
      %1137 = vmatpush1.msra.mxu0 %v1102
      %1138 = vmatprep.subr.mxu0 0.0
      %1139 = vmatpush1.msra.mxu0 %v1101
      %1140 = vmatprep.subr.mxu0 0.0
      %1141 = vmatpush1.msra.mxu0 %v1100
      %1142 = vmatprep.subr.mxu0 0.0
      %1143 = vmatpush1.msra.mxu0 %v1099
      %1144 = vmatprep.subr.mxu0 0.0
      %1145 = vmatpush1.msra.mxu0 %v1098
      %1146 = vmatprep.subr.mxu0 0.0
      %1147 = vmatpush1.msra.mxu0 %v1097
      %1148 = vmatprep.subr.mxu0 0.0
      %1149 = vmatpush1.msra.mxu0 %v1096
      %1150 = vmatprep.subr.mxu0 0.0
      %1151 = vmatpush1.msra.mxu0 %v1095
      %1152 = vmatprep.subr.mxu0 0.0
      %1153 = vmatpush1.msra.mxu0 %v1094
      %1154 = vmatprep.subr.mxu0 0.0
      %1155 = vmatpush1.msra.mxu0 %v1093
      %1156 = vmatprep.subr.mxu0 0.0
      %1157 = vmatpush1.msra.mxu0 %v1092
      %1158 = vmatprep.subr.mxu0 0.0
      %1159 = vmatpush1.msra.mxu0 %v1091
      %1160 = vmatprep.subr.mxu0 0.0
      %1161 = vmatpush1.msra.mxu0 %v1090
      %1162 = vmatprep.subr.mxu0 0.0
      %1163 = vmatpush1.msra.mxu0 %v1089
      %1164 = vmatprep.subr.mxu0 0.0
      %1165 = vmatpush2.msra.mxu0 0.0
      %1166 = vmatprep.subr.mxu0 0.0
      %1167 = vmatpush2.msra.mxu0 0.0
      %1168 = vmatprep.subr.mxu0 0.0
      %1169 = vmatpush2.msra.mxu0 0.0
      %1170 = vmatprep.subr.mxu0 0.0
      %1171 = vmatpush2.msra.mxu0 0.0
      %1172 = vmatprep.subr.mxu0 0.0
      %1173 = vmatpush2.msra.mxu0 0.0
      %1174 = vmatprep.subr.mxu0 0.0
      %1175 = vmatpush2.msra.mxu0 0.0
      %1176 = vmatprep.subr.mxu0 0.0
      %1177 = vmatpush2.msra.mxu0 0.0
      %1178 = vmatprep.subr.mxu0 0.0
      %1179 = vmatpush2.msra.mxu0 0.0
      %1180 = vmatprep.subr.mxu0 0.0
      %1181 = vmatpush2.msra.mxu0 0.0
      %1182 = vmatprep.subr.mxu0 0.0
      %1183 = vmatpush2.msra.mxu0 0.0
      %1184 = vmatprep.subr.mxu0 0.0
      %1185 = vmatpush2.msra.mxu0 0.0
      %1186 = vmatprep.subr.mxu0 0.0
      %1187 = vmatpush2.msra.mxu0 0.0
      %1188 = vmatprep.subr.mxu0 0.0
      %1189 = vmatpush2.msra.mxu0 0.0
      %1190 = vmatprep.subr.mxu0 0.0
      %1191 = vmatpush2.msra.mxu0 0.0
      %1192 = vmatprep.subr.mxu0 0.0
      %1193 = vmatpush2.msra.mxu0 0.0
      %1194 = vmatprep.subr.mxu0 0.0
      %1195 = vmatpush2.msra.mxu0 0.0
      %1196 = vmatprep.mubr.f32.mxu0 0.0
      %1197 = vmatmul.mubr.f32.gmra.mxu0 %v1109
      %v1198 = vpop.f32.mrf.mxu0
      %v1199 = vadd.f32 0.0, %v1198
      %v1200 = vpop.f32.mrf.mxu0
      %1201 = vmatprep.mubr.f32.mxu0 0.0
      %1202 = vmatmul.mubr.f32.gmra.mxu0 %v1111
      %v1203 = vpop.f32.mrf.mxu0
      %v1204 = vadd.f32 0.0, %v1203
      %v1205 = vpop.f32.mrf.mxu0
      %1206 = vmatprep.mubr.f32.mxu0 0.0
      %1207 = vmatmul.mubr.f32.gmra.mxu0 %v1113
      %v1208 = vpop.f32.mrf.mxu0
      %v1209 = vadd.f32 0.0, %v1208
      %v1210 = vpop.f32.mrf.mxu0
      %1211 = vmatprep.mubr.f32.mxu0 0.0
      %1212 = vmatmul.mubr.f32.gmra.mxu0 %v1115
      %v1213 = vpop.f32.mrf.mxu0
      %v1214 = vadd.f32 0.0, %v1213
      %v1215 = vpop.f32.mrf.mxu0
      %1216 = vmatprep.mubr.f32.mxu0 0.0
      %1217 = vmatmul.mubr.f32.gmra.mxu0 %v1117
      %v1218 = vpop.f32.mrf.mxu0
      %v1219 = vadd.f32 0.0, %v1218
      %v1220 = vpop.f32.mrf.mxu0
      %1221 = vmatprep.mubr.f32.mxu0 0.0
      %1222 = vmatmul.mubr.f32.gmra.mxu0 %v1119
      %v1223 = vpop.f32.mrf.mxu0
      %v1224 = vadd.f32 0.0, %v1223
      %v1225 = vpop.f32.mrf.mxu0
      %1226 = vmatprep.mubr.f32.mxu0 0.0
      %1227 = vmatmul.mubr.f32.gmra.mxu0 %v1121
      %v1228 = vpop.f32.mrf.mxu0
      %v1229 = vadd.f32 0.0, %v1228
      %v1230 = vpop.f32.mrf.mxu0
      %1231 = vmatprep.mubr.f32.mxu0 0.0
      %1232 = vmatmul.mubr.f32.gmra.mxu0 %v1123
      %v1233 = vpop.f32.mrf.mxu0
      %v1234 = vadd.f32 0.0, %v1233
      %v1235 = vpop.f32.mrf.mxu0
      %1236 = vdwg.mxu0
      %v1237 = vadd.f32 %v1080, %v1199
      %v1238 = vadd.f32 %v1081, %v1204
      %v1239 = vadd.f32 %v1082, %v1209
      %v1240 = vadd.f32 %v1083, %v1214
      %v1241 = vadd.f32 %v1084, %v1219
      %v1242 = vadd.f32 %v1085, %v1224
      %v1243 = vadd.f32 %v1086, %v1229
      %v1244 = vadd.f32 %v1087, %v1234
      %s1245 = scalar_lea.vmem %s1, 768
      %v1246 = vld [vmem:[%s1245] sm:$0xff]
      %v1247 = vld [vmem:[%s1245 + $0x8] sm:$0xff]
      %v1248 = vld [vmem:[%s1245 + $0x10] sm:$0xff]
      %v1249 = vld [vmem:[%s1245 + $0x18] sm:$0xff]
      %v1250 = vld [vmem:[%s1245 + $0x20] sm:$0xff]
      %v1251 = vld [vmem:[%s1245 + $0x28] sm:$0xff]
      %v1252 = vld [vmem:[%s1245 + $0x30] sm:$0xff]
      %v1253 = vld [vmem:[%s1245 + $0x38] sm:$0xff]
      %v1254 = vld [vmem:[%s1245 + $0x40] sm:$0xff]
      %v1255 = vld [vmem:[%s1245 + $0x48] sm:$0xff]
      %v1256 = vld [vmem:[%s1245 + $0x50] sm:$0xff]
      %v1257 = vld [vmem:[%s1245 + $0x58] sm:$0xff]
      %v1258 = vld [vmem:[%s1245 + $0x60] sm:$0xff]
      %v1259 = vld [vmem:[%s1245 + $0x68] sm:$0xff]
      %v1260 = vld [vmem:[%s1245 + $0x70] sm:$0xff]
      %v1261 = vld [vmem:[%s1245 + $0x78] sm:$0xff]
      %v1263 = vrot.slane %v363, 1
      %v1264 = vsel %vm1106, %v1122, %v1263
      %1266 = vmatprep.subr.mxu0 0.0
      %1267 = vmatpush1.msra.mxu0 %v1261
      %1268 = vmatprep.subr.mxu0 0.0
      %1269 = vmatpush1.msra.mxu0 %v1260
      %1270 = vmatprep.subr.mxu0 0.0
      %1271 = vmatpush1.msra.mxu0 %v1259
      %1272 = vmatprep.subr.mxu0 0.0
      %1273 = vmatpush1.msra.mxu0 %v1258
      %1274 = vmatprep.subr.mxu0 0.0
      %1275 = vmatpush1.msra.mxu0 %v1257
      %1276 = vmatprep.subr.mxu0 0.0
      %1277 = vmatpush1.msra.mxu0 %v1256
      %1278 = vmatprep.subr.mxu0 0.0
      %1279 = vmatpush1.msra.mxu0 %v1255
      %1280 = vmatprep.subr.mxu0 0.0
      %1281 = vmatpush1.msra.mxu0 %v1254
      %1282 = vmatprep.subr.mxu0 0.0
      %1283 = vmatpush1.msra.mxu0 %v1253
      %1284 = vmatprep.subr.mxu0 0.0
      %1285 = vmatpush1.msra.mxu0 %v1252
      %1286 = vmatprep.subr.mxu0 0.0
      %1287 = vmatpush1.msra.mxu0 %v1251
      %1288 = vmatprep.subr.mxu0 0.0
      %1289 = vmatpush1.msra.mxu0 %v1250
      %1290 = vmatprep.subr.mxu0 0.0
      %1291 = vmatpush1.msra.mxu0 %v1249
      %1292 = vmatprep.subr.mxu0 0.0
      %1293 = vmatpush1.msra.mxu0 %v1248
      %1294 = vmatprep.subr.mxu0 0.0
      %1295 = vmatpush1.msra.mxu0 %v1247
      %1296 = vmatprep.subr.mxu0 0.0
      %1297 = vmatpush1.msra.mxu0 %v1246
      %1298 = vmatprep.subr.mxu0 0.0
      %1299 = vmatpush2.msra.mxu0 0.0
      %1300 = vmatprep.subr.mxu0 0.0
      %1301 = vmatpush2.msra.mxu0 0.0
      %1302 = vmatprep.subr.mxu0 0.0
      %1303 = vmatpush2.msra.mxu0 0.0
      %1304 = vmatprep.subr.mxu0 0.0
      %1305 = vmatpush2.msra.mxu0 0.0
      %1306 = vmatprep.subr.mxu0 0.0
      %1307 = vmatpush2.msra.mxu0 0.0
      %1308 = vmatprep.subr.mxu0 0.0
      %1309 = vmatpush2.msra.mxu0 0.0
      %1310 = vmatprep.subr.mxu0 0.0
      %1311 = vmatpush2.msra.mxu0 0.0
      %1312 = vmatprep.subr.mxu0 0.0
      %1313 = vmatpush2.msra.mxu0 0.0
      %1314 = vmatprep.subr.mxu0 0.0
      %1315 = vmatpush2.msra.mxu0 0.0
      %1316 = vmatprep.subr.mxu0 0.0
      %1317 = vmatpush2.msra.mxu0 0.0
      %1318 = vmatprep.subr.mxu0 0.0
      %1319 = vmatpush2.msra.mxu0 0.0
      %1320 = vmatprep.subr.mxu0 0.0
      %1321 = vmatpush2.msra.mxu0 0.0
      %1322 = vmatprep.subr.mxu0 0.0
      %1323 = vmatpush2.msra.mxu0 0.0
      %1324 = vmatprep.subr.mxu0 0.0
      %1325 = vmatpush2.msra.mxu0 0.0
      %1326 = vmatprep.subr.mxu0 0.0
      %1327 = vmatpush2.msra.mxu0 0.0
      %1328 = vmatprep.subr.mxu0 0.0
      %1329 = vmatpush2.msra.mxu0 0.0
      %1330 = vmatprep.mubr.f32.mxu0 0.0
      %1331 = vmatmul.mubr.f32.gmra.mxu0 %v1111
      %v1332 = vpop.f32.mrf.mxu0
      %v1333 = vadd.f32 0.0, %v1332
      %v1334 = vpop.f32.mrf.mxu0
      %1335 = vmatprep.mubr.f32.mxu0 0.0
      %1336 = vmatmul.mubr.f32.gmra.mxu0 %v1113
      %v1337 = vpop.f32.mrf.mxu0
      %v1338 = vadd.f32 0.0, %v1337
      %v1339 = vpop.f32.mrf.mxu0
      %1340 = vmatprep.mubr.f32.mxu0 0.0
      %1341 = vmatmul.mubr.f32.gmra.mxu0 %v1115
      %v1342 = vpop.f32.mrf.mxu0
      %v1343 = vadd.f32 0.0, %v1342
      %v1344 = vpop.f32.mrf.mxu0
      %1345 = vmatprep.mubr.f32.mxu0 0.0
      %1346 = vmatmul.mubr.f32.gmra.mxu0 %v1117
      %v1347 = vpop.f32.mrf.mxu0
      %v1348 = vadd.f32 0.0, %v1347
      %v1349 = vpop.f32.mrf.mxu0
      %1350 = vmatprep.mubr.f32.mxu0 0.0
      %1351 = vmatmul.mubr.f32.gmra.mxu0 %v1119
      %v1352 = vpop.f32.mrf.mxu0
      %v1353 = vadd.f32 0.0, %v1352
      %v1354 = vpop.f32.mrf.mxu0
      %1355 = vmatprep.mubr.f32.mxu0 0.0
      %1356 = vmatmul.mubr.f32.gmra.mxu0 %v1121
      %v1357 = vpop.f32.mrf.mxu0
      %v1358 = vadd.f32 0.0, %v1357
      %v1359 = vpop.f32.mrf.mxu0
      %1360 = vmatprep.mubr.f32.mxu0 0.0
      %1361 = vmatmul.mubr.f32.gmra.mxu0 %v1123
      %v1362 = vpop.f32.mrf.mxu0
      %v1363 = vadd.f32 0.0, %v1362
      %v1364 = vpop.f32.mrf.mxu0
      %1365 = vmatprep.mubr.f32.mxu0 0.0
      %1366 = vmatmul.mubr.f32.gmra.mxu0 %v1264
      %v1367 = vpop.f32.mrf.mxu0
      %v1368 = vadd.f32 0.0, %v1367
      %v1369 = vpop.f32.mrf.mxu0
      %1370 = vdwg.mxu0
      %v1371 = vadd.f32 %v1237, %v1333
      %v1372 = vadd.f32 %v1238, %v1338
      %v1373 = vadd.f32 %v1239, %v1343
      %v1374 = vadd.f32 %v1240, %v1348
      %v1375 = vadd.f32 %v1241, %v1353
      %v1376 = vadd.f32 %v1242, %v1358
      %v1377 = vadd.f32 %v1243, %v1363
      %v1378 = vadd.f32 %v1244, %v1368
      %s1379 = scalar_lea.vmem %s1, 896
      %v1380 = vld [vmem:[%s1379] sm:$0xff]
      %v1381 = vld [vmem:[%s1379 + $0x8] sm:$0xff]
      %v1382 = vld [vmem:[%s1379 + $0x10] sm:$0xff]
      %v1383 = vld [vmem:[%s1379 + $0x18] sm:$0xff]
      %v1384 = vld [vmem:[%s1379 + $0x20] sm:$0xff]
      %v1385 = vld [vmem:[%s1379 + $0x28] sm:$0xff]
      %v1386 = vld [vmem:[%s1379 + $0x30] sm:$0xff]
      %v1387 = vld [vmem:[%s1379 + $0x38] sm:$0xff]
      %v1388 = vld [vmem:[%s1379 + $0x40] sm:$0xff]
      %v1389 = vld [vmem:[%s1379 + $0x48] sm:$0xff]
      %v1390 = vld [vmem:[%s1379 + $0x50] sm:$0xff]
      %v1391 = vld [vmem:[%s1379 + $0x58] sm:$0xff]
      %v1392 = vld [vmem:[%s1379 + $0x60] sm:$0xff]
      %v1393 = vld [vmem:[%s1379 + $0x68] sm:$0xff]
      %v1394 = vld [vmem:[%s1379 + $0x70] sm:$0xff]
      %v1395 = vld [vmem:[%s1379 + $0x78] sm:$0xff]
      %vm1396 = vcmask 1045504
      %v1397 = vrot.slane %v355, 2
      %v1398 = vrot.slane %v356, 2
      %v1399 = vsel %vm1396, %v1397, %v1398
      %v1400 = vrot.slane %v357, 2
      %v1401 = vsel %vm1396, %v1398, %v1400
      %v1402 = vrot.slane %v358, 2
      %v1403 = vsel %vm1396, %v1400, %v1402
      %v1404 = vrot.slane %v359, 2
      %v1405 = vsel %vm1396, %v1402, %v1404
      %v1406 = vrot.slane %v360, 2
      %v1407 = vsel %vm1396, %v1404, %v1406
      %v1408 = vrot.slane %v361, 2
      %v1409 = vsel %vm1396, %v1406, %v1408
      %v1410 = vrot.slane %v362, 2
      %v1411 = vsel %vm1396, %v1408, %v1410
      %v1412 = vrot.slane %v363, 2
      %v1413 = vsel %vm1396, %v1410, %v1412
      %1422 = vmatprep.subr.mxu0 0.0
      %1423 = vmatpush1.msra.mxu0 %v1395
      %1424 = vmatprep.subr.mxu0 0.0
      %1425 = vmatpush1.msra.mxu0 %v1394
      %1426 = vmatprep.subr.mxu0 0.0
      %1427 = vmatpush1.msra.mxu0 %v1393
      %1428 = vmatprep.subr.mxu0 0.0
      %1429 = vmatpush1.msra.mxu0 %v1392
      %1430 = vmatprep.subr.mxu0 0.0
      %1431 = vmatpush1.msra.mxu0 %v1391
      %1432 = vmatprep.subr.mxu0 0.0
      %1433 = vmatpush1.msra.mxu0 %v1390
      %1434 = vmatprep.subr.mxu0 0.0
      %1435 = vmatpush1.msra.mxu0 %v1389
      %1436 = vmatprep.subr.mxu0 0.0
      %1437 = vmatpush1.msra.mxu0 %v1388
      %1438 = vmatprep.subr.mxu0 0.0
      %1439 = vmatpush1.msra.mxu0 %v1387
      %1440 = vmatprep.subr.mxu0 0.0
      %1441 = vmatpush1.msra.mxu0 %v1386
      %1442 = vmatprep.subr.mxu0 0.0
      %1443 = vmatpush1.msra.mxu0 %v1385
      %1444 = vmatprep.subr.mxu0 0.0
      %1445 = vmatpush1.msra.mxu0 %v1384
      %1446 = vmatprep.subr.mxu0 0.0
      %1447 = vmatpush1.msra.mxu0 %v1383
      %1448 = vmatprep.subr.mxu0 0.0
      %1449 = vmatpush1.msra.mxu0 %v1382
      %1450 = vmatprep.subr.mxu0 0.0
      %1451 = vmatpush1.msra.mxu0 %v1381
      %1452 = vmatprep.subr.mxu0 0.0
      %1453 = vmatpush1.msra.mxu0 %v1380
      %1454 = vmatprep.subr.mxu0 0.0
      %1455 = vmatpush2.msra.mxu0 0.0
      %1456 = vmatprep.subr.mxu0 0.0
      %1457 = vmatpush2.msra.mxu0 0.0
      %1458 = vmatprep.subr.mxu0 0.0
      %1459 = vmatpush2.msra.mxu0 0.0
      %1460 = vmatprep.subr.mxu0 0.0
      %1461 = vmatpush2.msra.mxu0 0.0
      %1462 = vmatprep.subr.mxu0 0.0
      %1463 = vmatpush2.msra.mxu0 0.0
      %1464 = vmatprep.subr.mxu0 0.0
      %1465 = vmatpush2.msra.mxu0 0.0
      %1466 = vmatprep.subr.mxu0 0.0
      %1467 = vmatpush2.msra.mxu0 0.0
      %1468 = vmatprep.subr.mxu0 0.0
      %1469 = vmatpush2.msra.mxu0 0.0
      %1470 = vmatprep.subr.mxu0 0.0
      %1471 = vmatpush2.msra.mxu0 0.0
      %1472 = vmatprep.subr.mxu0 0.0
      %1473 = vmatpush2.msra.mxu0 0.0
      %1474 = vmatprep.subr.mxu0 0.0
      %1475 = vmatpush2.msra.mxu0 0.0
      %1476 = vmatprep.subr.mxu0 0.0
      %1477 = vmatpush2.msra.mxu0 0.0
      %1478 = vmatprep.subr.mxu0 0.0
      %1479 = vmatpush2.msra.mxu0 0.0
      %1480 = vmatprep.subr.mxu0 0.0
      %1481 = vmatpush2.msra.mxu0 0.0
      %1482 = vmatprep.subr.mxu0 0.0
      %1483 = vmatpush2.msra.mxu0 0.0
      %1484 = vmatprep.subr.mxu0 0.0
      %1485 = vmatpush2.msra.mxu0 0.0
      %1486 = vmatprep.mubr.f32.mxu0 0.0
      %1487 = vmatmul.mubr.f32.gmra.mxu0 %v1399
      %v1488 = vpop.f32.mrf.mxu0
      %v1489 = vadd.f32 0.0, %v1488
      %v1490 = vpop.f32.mrf.mxu0
      %1491 = vmatprep.mubr.f32.mxu0 0.0
      %1492 = vmatmul.mubr.f32.gmra.mxu0 %v1401
      %v1493 = vpop.f32.mrf.mxu0
      %v1494 = vadd.f32 0.0, %v1493
      %v1495 = vpop.f32.mrf.mxu0
      %1496 = vmatprep.mubr.f32.mxu0 0.0
      %1497 = vmatmul.mubr.f32.gmra.mxu0 %v1403
      %v1498 = vpop.f32.mrf.mxu0
      %v1499 = vadd.f32 0.0, %v1498
      %v1500 = vpop.f32.mrf.mxu0
      %1501 = vmatprep.mubr.f32.mxu0 0.0
      %1502 = vmatmul.mubr.f32.gmra.mxu0 %v1405
      %v1503 = vpop.f32.mrf.mxu0
      %v1504 = vadd.f32 0.0, %v1503
      %v1505 = vpop.f32.mrf.mxu0
      %1506 = vmatprep.mubr.f32.mxu0 0.0
      %1507 = vmatmul.mubr.f32.gmra.mxu0 %v1407
      %v1508 = vpop.f32.mrf.mxu0
      %v1509 = vadd.f32 0.0, %v1508
      %v1510 = vpop.f32.mrf.mxu0
      %1511 = vmatprep.mubr.f32.mxu0 0.0
      %1512 = vmatmul.mubr.f32.gmra.mxu0 %v1409
      %v1513 = vpop.f32.mrf.mxu0
      %v1514 = vadd.f32 0.0, %v1513
      %v1515 = vpop.f32.mrf.mxu0
      %1516 = vmatprep.mubr.f32.mxu0 0.0
      %1517 = vmatmul.mubr.f32.gmra.mxu0 %v1411
      %v1518 = vpop.f32.mrf.mxu0
      %v1519 = vadd.f32 0.0, %v1518
      %v1520 = vpop.f32.mrf.mxu0
      %1521 = vmatprep.mubr.f32.mxu0 0.0
      %1522 = vmatmul.mubr.f32.gmra.mxu0 %v1413
      %v1523 = vpop.f32.mrf.mxu0
      %v1524 = vadd.f32 0.0, %v1523
      %v1525 = vpop.f32.mrf.mxu0
      %1526 = vdwg.mxu0
      %v1527 = vadd.f32 %v1371, %v1489
      %v1528 = vadd.f32 %v1372, %v1494
      %v1529 = vadd.f32 %v1373, %v1499
      %v1530 = vadd.f32 %v1374, %v1504
      %v1531 = vadd.f32 %v1375, %v1509
      %v1532 = vadd.f32 %v1376, %v1514
      %v1533 = vadd.f32 %v1377, %v1519
      %v1534 = vadd.f32 %v1378, %v1524
      %s1535 = scalar_lea.vmem %s1, 1024
      %v1536 = vld [vmem:[%s1535] sm:$0xff]
      %v1537 = vld [vmem:[%s1535 + $0x8] sm:$0xff]
      %v1538 = vld [vmem:[%s1535 + $0x10] sm:$0xff]
      %v1539 = vld [vmem:[%s1535 + $0x18] sm:$0xff]
      %v1540 = vld [vmem:[%s1535 + $0x20] sm:$0xff]
      %v1541 = vld [vmem:[%s1535 + $0x28] sm:$0xff]
      %v1542 = vld [vmem:[%s1535 + $0x30] sm:$0xff]
      %v1543 = vld [vmem:[%s1535 + $0x38] sm:$0xff]
      %v1544 = vld [vmem:[%s1535 + $0x40] sm:$0xff]
      %v1545 = vld [vmem:[%s1535 + $0x48] sm:$0xff]
      %v1546 = vld [vmem:[%s1535 + $0x50] sm:$0xff]
      %v1547 = vld [vmem:[%s1535 + $0x58] sm:$0xff]
      %v1548 = vld [vmem:[%s1535 + $0x60] sm:$0xff]
      %v1549 = vld [vmem:[%s1535 + $0x68] sm:$0xff]
      %v1550 = vld [vmem:[%s1535 + $0x70] sm:$0xff]
      %v1551 = vld [vmem:[%s1535 + $0x78] sm:$0xff]
      %vm1552 = vcmask 1044480
      %v1553 = vrot.slane %v355, 3
      %v1554 = vrot.slane %v356, 3
      %v1555 = vsel %vm1552, %v1553, %v1554
      %v1556 = vrot.slane %v357, 3
      %v1557 = vsel %vm1552, %v1554, %v1556
      %v1558 = vrot.slane %v358, 3
      %v1559 = vsel %vm1552, %v1556, %v1558
      %v1560 = vrot.slane %v359, 3
      %v1561 = vsel %vm1552, %v1558, %v1560
      %v1562 = vrot.slane %v360, 3
      %v1563 = vsel %vm1552, %v1560, %v1562
      %v1564 = vrot.slane %v361, 3
      %v1565 = vsel %vm1552, %v1562, %v1564
      %v1566 = vrot.slane %v362, 3
      %v1567 = vsel %vm1552, %v1564, %v1566
      %v1568 = vrot.slane %v363, 3
      %v1569 = vsel %vm1552, %v1566, %v1568
      %1578 = vmatprep.subr.mxu0 0.0
      %1579 = vmatpush1.msra.mxu0 %v1551
      %1580 = vmatprep.subr.mxu0 0.0
      %1581 = vmatpush1.msra.mxu0 %v1550
      %1582 = vmatprep.subr.mxu0 0.0
      %1583 = vmatpush1.msra.mxu0 %v1549
      %1584 = vmatprep.subr.mxu0 0.0
      %1585 = vmatpush1.msra.mxu0 %v1548
      %1586 = vmatprep.subr.mxu0 0.0
      %1587 = vmatpush1.msra.mxu0 %v1547
      %1588 = vmatprep.subr.mxu0 0.0
      %1589 = vmatpush1.msra.mxu0 %v1546
      %1590 = vmatprep.subr.mxu0 0.0
      %1591 = vmatpush1.msra.mxu0 %v1545
      %1592 = vmatprep.subr.mxu0 0.0
      %1593 = vmatpush1.msra.mxu0 %v1544
      %1594 = vmatprep.subr.mxu0 0.0
      %1595 = vmatpush1.msra.mxu0 %v1543
      %1596 = vmatprep.subr.mxu0 0.0
      %1597 = vmatpush1.msra.mxu0 %v1542
      %1598 = vmatprep.subr.mxu0 0.0
      %1599 = vmatpush1.msra.mxu0 %v1541
      %1600 = vmatprep.subr.mxu0 0.0
      %1601 = vmatpush1.msra.mxu0 %v1540
      %1602 = vmatprep.subr.mxu0 0.0
      %1603 = vmatpush1.msra.mxu0 %v1539
      %1604 = vmatprep.subr.mxu0 0.0
      %1605 = vmatpush1.msra.mxu0 %v1538
      %1606 = vmatprep.subr.mxu0 0.0
      %1607 = vmatpush1.msra.mxu0 %v1537
      %1608 = vmatprep.subr.mxu0 0.0
      %1609 = vmatpush1.msra.mxu0 %v1536
      %1610 = vmatprep.subr.mxu0 0.0
      %1611 = vmatpush2.msra.mxu0 0.0
      %1612 = vmatprep.subr.mxu0 0.0
      %1613 = vmatpush2.msra.mxu0 0.0
      %1614 = vmatprep.subr.mxu0 0.0
      %1615 = vmatpush2.msra.mxu0 0.0
      %1616 = vmatprep.subr.mxu0 0.0
      %1617 = vmatpush2.msra.mxu0 0.0
      %1618 = vmatprep.subr.mxu0 0.0
      %1619 = vmatpush2.msra.mxu0 0.0
      %1620 = vmatprep.subr.mxu0 0.0
      %1621 = vmatpush2.msra.mxu0 0.0
      %1622 = vmatprep.subr.mxu0 0.0
      %1623 = vmatpush2.msra.mxu0 0.0
      %1624 = vmatprep.subr.mxu0 0.0
      %1625 = vmatpush2.msra.mxu0 0.0
      %1626 = vmatprep.subr.mxu0 0.0
      %1627 = vmatpush2.msra.mxu0 0.0
      %1628 = vmatprep.subr.mxu0 0.0
      %1629 = vmatpush2.msra.mxu0 0.0
      %1630 = vmatprep.subr.mxu0 0.0
      %1631 = vmatpush2.msra.mxu0 0.0
      %1632 = vmatprep.subr.mxu0 0.0
      %1633 = vmatpush2.msra.mxu0 0.0
      %1634 = vmatprep.subr.mxu0 0.0
      %1635 = vmatpush2.msra.mxu0 0.0
      %1636 = vmatprep.subr.mxu0 0.0
      %1637 = vmatpush2.msra.mxu0 0.0
      %1638 = vmatprep.subr.mxu0 0.0
      %1639 = vmatpush2.msra.mxu0 0.0
      %1640 = vmatprep.subr.mxu0 0.0
      %1641 = vmatpush2.msra.mxu0 0.0
      %1642 = vmatprep.mubr.f32.mxu0 0.0
      %1643 = vmatmul.mubr.f32.gmra.mxu0 %v1555
      %v1644 = vpop.f32.mrf.mxu0
      %v1645 = vadd.f32 0.0, %v1644
      %v1646 = vpop.f32.mrf.mxu0
      %1647 = vmatprep.mubr.f32.mxu0 0.0
      %1648 = vmatmul.mubr.f32.gmra.mxu0 %v1557
      %v1649 = vpop.f32.mrf.mxu0
      %v1650 = vadd.f32 0.0, %v1649
      %v1651 = vpop.f32.mrf.mxu0
      %1652 = vmatprep.mubr.f32.mxu0 0.0
      %1653 = vmatmul.mubr.f32.gmra.mxu0 %v1559
      %v1654 = vpop.f32.mrf.mxu0
      %v1655 = vadd.f32 0.0, %v1654
      %v1656 = vpop.f32.mrf.mxu0
      %1657 = vmatprep.mubr.f32.mxu0 0.0
      %1658 = vmatmul.mubr.f32.gmra.mxu0 %v1561
      %v1659 = vpop.f32.mrf.mxu0
      %v1660 = vadd.f32 0.0, %v1659
      %v1661 = vpop.f32.mrf.mxu0
      %1662 = vmatprep.mubr.f32.mxu0 0.0
      %1663 = vmatmul.mubr.f32.gmra.mxu0 %v1563
      %v1664 = vpop.f32.mrf.mxu0
      %v1665 = vadd.f32 0.0, %v1664
      %v1666 = vpop.f32.mrf.mxu0
      %1667 = vmatprep.mubr.f32.mxu0 0.0
      %1668 = vmatmul.mubr.f32.gmra.mxu0 %v1565
      %v1669 = vpop.f32.mrf.mxu0
      %v1670 = vadd.f32 0.0, %v1669
      %v1671 = vpop.f32.mrf.mxu0
      %1672 = vmatprep.mubr.f32.mxu0 0.0
      %1673 = vmatmul.mubr.f32.gmra.mxu0 %v1567
      %v1674 = vpop.f32.mrf.mxu0
      %v1675 = vadd.f32 0.0, %v1674
      %v1676 = vpop.f32.mrf.mxu0
      %1677 = vmatprep.mubr.f32.mxu0 0.0
      %1678 = vmatmul.mubr.f32.gmra.mxu0 %v1569
      %v1679 = vpop.f32.mrf.mxu0
      %v1680 = vadd.f32 0.0, %v1679
      %v1681 = vpop.f32.mrf.mxu0
      %1682 = vdwg.mxu0
      %v1683 = vadd.f32 %v1527, %v1645
      %v1684 = vadd.f32 %v1528, %v1650
      %v1685 = vadd.f32 %v1529, %v1655
      %v1686 = vadd.f32 %v1530, %v1660
      %v1687 = vadd.f32 %v1531, %v1665
      %v1688 = vadd.f32 %v1532, %v1670
      %v1689 = vadd.f32 %v1533, %v1675
      %v1690 = vadd.f32 %v1534, %v1680
      %v1691 = vld [vmem:[%s174] sm:$0xff]
      %v1692 = vld [vmem:[%s174 + $0x8] sm:$0xff]
      %v1693 = vld [vmem:[%s174 + $0x10] sm:$0xff]
      %v1694 = vld [vmem:[%s174 + $0x18] sm:$0xff]
      %v1695 = vld [vmem:[%s174 + $0x20] sm:$0xff]
      %v1696 = vld [vmem:[%s174 + $0x28] sm:$0xff]
      %v1697 = vld [vmem:[%s174 + $0x30] sm:$0xff]
      %v1698 = vld [vmem:[%s174 + $0x38] sm:$0xff]
      %vm1699 = vcmp.gt.f32.partialorder %v1691, 0.5
      %vm1700 = vcmp.gt.f32.partialorder %v1692, 0.5
      %vm1701 = vcmp.gt.f32.partialorder %v1693, 0.5
      %vm1702 = vcmp.gt.f32.partialorder %v1694, 0.5
      %vm1703 = vcmp.gt.f32.partialorder %v1695, 0.5
      %vm1704 = vcmp.gt.f32.partialorder %v1696, 0.5
      %vm1705 = vcmp.gt.f32.partialorder %v1697, 0.5
      %vm1706 = vcmp.gt.f32.partialorder %v1698, 0.5
      %vm1707 = vcmask 7168
      %v1708 = vsel %vm1707, %v1691, 0.0
      %v1709 = vsel %vm1707, %v1692, 0.0
      %v1710 = vadd.f32 %v1708, %v1709
      %v1711 = vsel %vm1707, %v1693, 0.0
      %v1712 = vadd.f32 %v1710, %v1711
      %v1713 = vsel %vm1707, %v1694, 0.0
      %v1714 = vadd.f32 %v1712, %v1713
      %v1715 = vsel %vm1707, %v1695, 0.0
      %v1716 = vadd.f32 %v1714, %v1715
      %v1717 = vsel %vm1707, %v1696, 0.0
      %v1718 = vadd.f32 %v1716, %v1717
      %v1719 = vsel %vm1707, %v1697, 0.0
      %v1720 = vadd.f32 %v1718, %v1719
      %v1721 = vsel %vm1707, %v1698, 0.0
      %v1722 = vadd.f32 %v1720, %v1721
      %v1723 = vrot.slane %v1722, 4
      %v1724 = vadd.f32 %v1722, %v1723
      %v1725 = vrot.slane %v1724, 2
      %v1726 = vadd.f32 %v1724, %v1725
      %v1727 = vrot.slane %v1726, 1
      %v1728 = vadd.f32 %v1726, %v1727
      %v1729 = vmax.f32 %v1728, 1.0
      %1730 = vst [vmem:[%s180] sm:$0xff] %v1683
      %1731 = vst [vmem:[%s180 + $0x8] sm:$0xff] %v1684
      %1732 = vst [vmem:[%s180 + $0x10] sm:$0xff] %v1685
      %1733 = vst [vmem:[%s180 + $0x18] sm:$0xff] %v1686
      %1734 = vst [vmem:[%s180 + $0x20] sm:$0xff] %v1687
      %1735 = vst [vmem:[%s180 + $0x28] sm:$0xff] %v1688
      %1736 = vst [vmem:[%s180 + $0x30] sm:$0xff] %v1689
      %1737 = vst [vmem:[%s180 + $0x38] sm:$0xff] %v1690
      %v1738 = vsel %vm1699, 1, 0
      %v1739 = vsel %vm1700, 1, 0
      %v1740 = vsel %vm1701, 1, 0
      %v1741 = vsel %vm1702, 1, 0
      %v1742 = vsel %vm1703, 1, 0
      %v1743 = vsel %vm1704, 1, 0
      %v1744 = vsel %vm1705, 1, 0
      %v1745 = vsel %vm1706, 1, 0
      %1746 = vset.pattern.permute.xlu0 0
      %1747 = vperm.xlu0 %1746, %v1738
      %v1748 = vpop.permute.xlu0 %1747
      %1749 = vset.pattern.permute.xlu0 0
      %1750 = vperm.xlu0 %1749, %v1739
      %v1751 = vpop.permute.xlu0 %1750
      %1752 = vset.pattern.permute.xlu0 0
      %1753 = vperm.xlu0 %1752, %v1740
      %v1754 = vpop.permute.xlu0 %1753
      %1755 = vset.pattern.permute.xlu0 0
      %1756 = vperm.xlu0 %1755, %v1741
      %v1757 = vpop.permute.xlu0 %1756
      %1758 = vset.pattern.permute.xlu0 0
      %1759 = vperm.xlu0 %1758, %v1742
      %v1760 = vpop.permute.xlu0 %1759
      %1761 = vset.pattern.permute.xlu0 0
      %1762 = vperm.xlu0 %1761, %v1743
      %v1763 = vpop.permute.xlu0 %1762
      %1764 = vset.pattern.permute.xlu0 0
      %1765 = vperm.xlu0 %1764, %v1744
      %v1766 = vpop.permute.xlu0 %1765
      %1767 = vset.pattern.permute.xlu0 0
      %1768 = vperm.xlu0 %1767, %v1745
      %v1769 = vpop.permute.xlu0 %1768
      %vm1770 = vcmp.eq.s32.totalorder %v1748, 1
      %vm1771 = vcmp.eq.s32.totalorder %v1751, 1
      %vm1772 = vcmp.eq.s32.totalorder %v1754, 1
      %vm1773 = vcmp.eq.s32.totalorder %v1757, 1
      %vm1774 = vcmp.eq.s32.totalorder %v1760, 1
      %vm1775 = vcmp.eq.s32.totalorder %v1763, 1
      %vm1776 = vcmp.eq.s32.totalorder %v1766, 1
      %vm1777 = vcmp.eq.s32.totalorder %v1769, 1
      %v1778 = vsel %vm1770, %v1683, 0.0
      %v1779 = vsel %vm1771, %v1684, 0.0
      %v1780 = vsel %vm1772, %v1685, 0.0
      %v1781 = vsel %vm1773, %v1686, 0.0
      %v1782 = vsel %vm1774, %v1687, 0.0
      %v1783 = vsel %vm1775, %v1688, 0.0
      %v1784 = vsel %vm1776, %v1689, 0.0
      %v1785 = vsel %vm1777, %v1690, 0.0
      %v1786 = vadd.f32 %v1778, %v1779
      %v1787 = vadd.f32 %v1786, %v1780
      %v1788 = vadd.f32 %v1787, %v1781
      %v1789 = vadd.f32 %v1788, %v1782
      %v1790 = vadd.f32 %v1789, %v1783
      %v1791 = vadd.f32 %v1790, %v1784
      %v1792 = vadd.f32 %v1791, %v1785
      %v1793 = vrot.slane %v1792, 4
      %v1794 = vadd.f32 %v1792, %v1793
      %v1795 = vrot.slane %v1794, 2
      %v1796 = vadd.f32 %v1794, %v1795
      %v1797 = vrot.slane %v1796, 1
      %v1798 = vadd.f32 %v1796, %v1797
      %1800 = vset.pattern.permute.xlu0 0
      %1801 = vperm.xlu0 %1800, %v1729
      %v1802 = vpop.permute.xlu0 %1801
      %v1804 = vrcp.pop %v1802
      %v1805 = vmul.f32 %v1798, %v1804
      %v1806 = vsub.f32 %v1683, %v1805
      %v1807 = vsub.f32 %v1684, %v1805
      %v1808 = vsub.f32 %v1685, %v1805
      %v1809 = vsub.f32 %v1686, %v1805
      %v1810 = vsub.f32 %v1687, %v1805
      %v1811 = vsub.f32 %v1688, %v1805
      %v1812 = vsub.f32 %v1689, %v1805
      %v1813 = vsub.f32 %v1690, %v1805
      %v1814 = vsel %vm1770, %v1806, 0.0
      %v1815 = vsel %vm1771, %v1807, 0.0
      %v1816 = vsel %vm1772, %v1808, 0.0
      %v1817 = vsel %vm1773, %v1809, 0.0
      %v1818 = vsel %vm1774, %v1810, 0.0
      %v1819 = vsel %vm1775, %v1811, 0.0
      %v1820 = vsel %vm1776, %v1812, 0.0
      %v1821 = vsel %vm1777, %v1813, 0.0
      %1822 = vst [vmem:[%s185] sm:$0x1] %v1798
      %v1823 = vmul.f32 %v1814, %v1814
      %v1824 = vmul.f32 %v1815, %v1815
      %v1825 = vmul.f32 %v1816, %v1816
      %v1826 = vmul.f32 %v1817, %v1817
      %v1827 = vmul.f32 %v1818, %v1818
      %v1828 = vmul.f32 %v1819, %v1819
      %v1829 = vmul.f32 %v1820, %v1820
      %v1830 = vmul.f32 %v1821, %v1821
      %v1831 = vadd.f32 %v1823, %v1824
      %v1832 = vadd.f32 %v1831, %v1825
      %v1833 = vadd.f32 %v1832, %v1826
      %v1834 = vadd.f32 %v1833, %v1827
      %v1835 = vadd.f32 %v1834, %v1828
      %v1836 = vadd.f32 %v1835, %v1829
      %v1837 = vadd.f32 %v1836, %v1830
      %v1838 = vrot.slane %v1837, 4
      %v1839 = vadd.f32 %v1837, %v1838
      %v1840 = vrot.slane %v1839, 2
      %v1841 = vadd.f32 %v1839, %v1840
      %v1842 = vrot.slane %v1841, 1
      %v1843 = vadd.f32 %v1841, %v1842
      %1844 = vst [vmem:[%s185 + $0x1] sm:$0x1] %v1843
      %s1845 = smul.u32 8, %s16
      %p1846 = scmp.lt.s32.totalorder %s1845, 31
      %s1847 = scalar_select %p1846, %s1845, 31
      %s1848 = smul.addr %s1847, 8
      %s1849 = scalar_lea.vmem %s3, %s1848
      %p1850 = scmp.lt.s32.totalorder %s16, 3
      %s1851 = scalar_select %p1850, %s16, 3
      %s1852 = smul.addr %s1851, 8
      %s1853 = scalar_lea.vmem %s4, %s1852
      // Predicated region
      $region105: #{basic_block_r1_forward.6} parent=27 // pred_check
        %p1854 = pneg %p81
      $region106: #{basic_block_r1_forward.6} parent=27 // pred_check_branch
        %1856 = sbr.rel (%p1854) target = $region108
      $region107: #{basic_block_r1_forward.6} parent=27 // pred_region
        %s1857 = smul.u32 8, %s16
      $region108: #{basic_block_r1_forward.6} parent=27 // pred_fallthru
        _
      // Predicated region
      $region109: #{basic_block_r1_forward.6} parent=27 // pred_check
        %p1858 = pneg %p107
      $region110: #{basic_block_r1_forward.6} parent=27 // pred_check_branch
        %1860 = sbr.rel (%p1858) target = $region112
      $region111: #{basic_block_r1_forward.6} parent=27 // pred_region
        _
      $region112: #{basic_block_r1_forward.6} parent=27 // pred_fallthru
        _
    $region28: #{basic_block_r1_forward.6} parent=5 // pred_fallthru
      _
    %p1861 = scmp.le.s32.totalorder 2, %s11
    // Predicated region
    $region113: #{basic_block_r1_forward.6} parent=5 // pred_check
      %p1862 = pneg %p1861
    $region114: #{basic_block_r1_forward.6} parent=5 // pred_check_branch
      %1864 = sbr.rel (%p1862) target = $region116
    $region115: #{basic_block_r1_forward.6} parent=5 // pred_region
      %s1865 = ssub.s32 %s11, 2
      // Predicated region
      $region117: #{basic_block_r1_forward.6} parent=115 // pred_check
        %p1866 = pneg %p87
      $region118: #{basic_block_r1_forward.6} parent=115 // pred_check_branch
        %1868 = sbr.rel (%p1866) target = $region120
      $region119: #{basic_block_r1_forward.6} parent=115 // pred_region
        %s1869 = smul.u32 8, %s17
        %p1870 = scmp.lt.s32.totalorder %s1869, 31
        %s1871 = scalar_select %p1870, %s1869, 31
        %s1872 = smul.addr %s1871, 8
        %s1873 = scalar_lea.vmem %s3, %s1872
      $region120: #{basic_block_r1_forward.6} parent=115 // pred_fallthru
        _
      // Predicated region
      $region121: #{basic_block_r1_forward.6} parent=115 // pred_check
        %p1874 = pneg %p113
      $region122: #{basic_block_r1_forward.6} parent=115 // pred_check_branch
        %1876 = sbr.rel (%p1874) target = $region124
      $region123: #{basic_block_r1_forward.6} parent=115 // pred_region
        %p1877 = scmp.lt.s32.totalorder %s17, 3
        %s1878 = scalar_select %p1877, %s17, 3
        %s1879 = smul.addr %s1878, 8
        %s1880 = scalar_lea.vmem %s4, %s1879
      $region124: #{basic_block_r1_forward.6} parent=115 // pred_fallthru
        _
    $region116: #{basic_block_r1_forward.6} parent=5 // pred_fallthru
      _
  $region6: #{basic_block_r1_forward.6} parent=0 // loop_footer
    %s15 = sadd.s32 1, %s11
  $region7: #{basic_block_r1_forward.6} parent=0 // loop_footer_branch
    %10 = sbr.rel target = $region3
  $region8: #{basic_block_r1_forward.6} parent=0 // loop_exit
    _
  %1881 = vsyncmov [#allocation3]
  %s1882 = vpop.sfrf %1881
  %p1883 = scmp.eq.s32.totalorder %s1882, 0
  %p1884 = pneg %p1883
  %1886 = shalt.err (%p1884)
  %s1887 = scalar_lea.sflag [#allocation3], 1
  %1888 = vsyncmov %s1887
  %s1889 = vpop.sfrf %1888
  %p1890 = scmp.eq.s32.totalorder %s1889, 0
  %p1891 = pneg %p1890
  %1893 = shalt.err (%p1891)

</llo_original>
